<compile_context>
chip_gen: v7x
topology: tpu7x:2x2x1
jax: 0.10.0
libtpu: 0.0.40
codegen_flags: <defaults>
</compile_context>

<pallas_src>
import numpy as np
import jax
import jax.numpy as jnp
from jax import lax
from jax.experimental import pallas as pl
from jax.experimental.pallas import tpu as pltpu


_VMEM = pl.BlockSpec(memory_space=pltpu.MemorySpace.VMEM)
_NP = 8   # char-batch rows padded to one full sublane group


# ----------------------------------------------------------------------------
# Fused forward+reverse LSTM cell (block-diagonal recurrent weight)
# ----------------------------------------------------------------------------
def _bilstm_cell_fused(gates_pre, h, c, whh, H2):
    """One fused fwd+rev LSTM step.

    h, c      : (B, 2H)  = [h_f | h_r], [c_f | c_r]
    gates_pre : (B, 8H)  x-projection + bias, gate layout
                [i_f i_r | f_f f_r | o_f o_r | g_f g_r]  (each slab = 2H lanes)
    whh       : (2H, 8H) block-diagonal recurrent weight
    """
    gates = gates_pre + jnp.dot(h, whh, preferred_element_type=jnp.float32)
    sig = jax.nn.sigmoid(gates[:, 0:3 * H2])        # one EUP pass over 6H lanes
    i = sig[:, 0:H2]
    f = sig[:, H2:2 * H2]
    o = sig[:, 2 * H2:3 * H2]
    g = jnp.tanh(gates[:, 3 * H2:4 * H2])           # one tanh over 2H lanes
    c_new = f * c + i * g
    h_new = o * jnp.tanh(c_new)
    return h_new, c_new


# ----------------------------------------------------------------------------
# Single fused kernel: char BiLSTM + select/scatter + word BiLSTM + MLP
# ----------------------------------------------------------------------------
def _tagger_kernel(x_ref, cef_ref, cer_ref, sc_ref,
                   cwih_f_ref, cwih_r_ref, cwhh_ref, cb_ref,
                   wwih_f_ref, wwih_r_ref, wwhh_ref, wb_ref,
                   w1a_ref, w1b_ref, b1_ref, w2_ref, b2_ref,
                   out_ref, cgin_ref):
    """
    x_ref      : (T, WE)        word embeddings
    cef/cer    : (L*NP, CE)     char embeddings (fwd / rev ids), row = t*NP + n
    sc_ref     : (T, L*NP)      fused select+scatter matrix
                                S[i, t*NP+n] = 1  iff  needs_chars[n]==i and sel[n]==t
    cwih_f/r   : (CE, 8HC)      char input projections (fused gate layout)
    cwhh       : (2HC, 8HC)     block-diagonal char recurrent weight
    cb         : (1, 8HC)
    wwih_f/r   : (WE, 8H)       word input projections (fwd cols / rev cols)
    wwhh       : (2H, 8H)
    wb         : (1, 8H)        full fused bias (both directions)
    w1a / w1b  : (2H, MLP)      proj1 weight halves (rev/fwd rows zeroed)
    b1         : (1, MLP)
    w2         : (MLP, NTpad)   lane-padded proj2 weight^T
    b2         : (1, NTpad)
    out_ref    : (T, NTpad)
    cgin_ref   : (L*NP, 8HC)    scratch for hoisted char input projections
    """
    T = x_ref.shape[0]
    LN = cef_ref.shape[0]
    L = LN // _NP
    HC2 = cwhh_ref.shape[0]      # 2 * HC  (= WEMBED)
    H2 = wwhh_ref.shape[0]       # 2 * H

    # ---- char path: fused fwd+rev char LSTM --------------------------------
    # Hoisted input projections: one pair of well-shaped matmuls, bias fused.
    cgin_ref[...] = (
        jnp.dot(cef_ref[...], cwih_f_ref[...], preferred_element_type=jnp.float32)
        + jnp.dot(cer_ref[...], cwih_r_ref[...], preferred_element_type=jnp.float32)
        + cb_ref[...])

    cwhh = cwhh_ref[...]
    hc = jnp.zeros((_NP, HC2), jnp.float32)
    cc = jnp.zeros((_NP, HC2), jnp.float32)
    hc_hist = []
    for t in range(L):                                   # fully unrolled
        gpre = cgin_ref[pl.ds(t * _NP, _NP), :]          # aligned (8, 8HC) slab
        hc, cc = _bilstm_cell_fused(gpre, hc, cc, cwhh, HC2)
        hc_hist.append(hc)
    h_char = jnp.concatenate(hc_hist, axis=0)            # (L*NP, 2HC)

    # Select hidden-at-time-(len+1) per unk word AND scatter-add it into the
    # right word-embedding row, all as one tiny matmul.
    x = x_ref[...] + jnp.dot(sc_ref[...], h_char,
                             preferred_element_type=jnp.float32)

    # ---- word path: fused fwd+rev word BiLSTM ------------------------------
    # gin_f carries the forward-gate columns (+ full fused bias), gin_r the
    # reverse-gate columns; the reverse direction's time flip is done by
    # static row indexing below (no lax.rev on the critical path).
    gin_f = (jnp.dot(x, wwih_f_ref[...], preferred_element_type=jnp.float32)
             + wb_ref[...])                              # (T, 8H) value
    gin_r = jnp.dot(x, wwih_r_ref[...], preferred_element_type=jnp.float32)

    wwhh = wwhh_ref[...]
    hw = jnp.zeros((1, H2), jnp.float32)
    cw = jnp.zeros((1, H2), jnp.float32)
    hw_hist = []
    for t in range(T):                                   # fully unrolled
        gpre = gin_f[t:t + 1, :] + gin_r[T - 1 - t:T - t, :]
        hw, cw = _bilstm_cell_fused(gpre, hw, cw, wwhh, H2)
        hw_hist.append(hw)
    # row t of hfwd = [h_fwd(t) | h_rev after step t (i.e. output time T-1-t)]
    hfwd = jnp.concatenate(hw_hist, axis=0)              # (T, 2H)
    hrev = jnp.concatenate(hw_hist[::-1], axis=0)        # (T, 2H), rows flipped

    # Fused MLP epilogue (reference module applies NO nonlinearity).
    # proj1: forward half reads hfwd, reverse half reads the flipped rows.
    h1 = (jnp.dot(hfwd, w1a_ref[...], preferred_element_type=jnp.float32)
          + jnp.dot(hrev, w1b_ref[...], preferred_element_type=jnp.float32)
          + b1_ref[...])
    out_ref[...] = (jnp.dot(h1, w2_ref[...], preferred_element_type=jnp.float32)
                    + b2_ref[...])


def tagger_forward_pallas(x, cef, cer, sc,
                          cwih_f, cwih_r, cwhh, cb,
                          wwih_f, wwih_r, wwhh, wb,
                          w1a, w1b, b1, w2_pad, b2_pad):
    T = x.shape[0]
    LN = cef.shape[0]
    G8 = cwhh.shape[1]                 # 8 * HC
    nt_pad = w2_pad.shape[1]
    return pl.pallas_call(
        _tagger_kernel,
        out_shape=jax.ShapeDtypeStruct((T, nt_pad), jnp.float32),
        in_specs=[_VMEM] * 17,
        out_specs=_VMEM,
        scratch_shapes=[pltpu.VMEM((LN, G8), jnp.float32)],
    )(x, cef, cer, sc,
      cwih_f, cwih_r, cwhh, cb,
      wwih_f, wwih_r, wwhh, wb,
      w1a, w1b, b1, w2_pad, b2_pad)


# ----------------------------------------------------------------------------
# Parameter preparation: block-diagonal direction fusion + gate re-layout
# ----------------------------------------------------------------------------
def _fuse_bilstm_params(w_ih_f, w_hh_f, b_ih_f, b_hh_f,
                        w_ih_r, w_hh_r, b_ih_r, b_hh_r):
    """PyTorch gate rows [i f g o] -> fused columns [i_f i_r f_f f_r o_f o_r g_f g_r]."""
    w_ih_f = np.asarray(w_ih_f, np.float32)
    w_hh_f = np.asarray(w_hh_f, np.float32)
    w_ih_r = np.asarray(w_ih_r, np.float32)
    w_hh_r = np.asarray(w_hh_r, np.float32)
    b_f = np.asarray(b_ih_f, np.float32) + np.asarray(b_hh_f, np.float32)
    b_r = np.asarray(b_ih_r, np.float32) + np.asarray(b_hh_r, np.float32)
    H = w_hh_f.shape[1]
    Din = w_ih_f.shape[1]
    pt = {'i': 0, 'f': 1, 'g': 2, 'o': 3}
    wih_f_big = np.zeros((Din, 8 * H), np.float32)
    wih_r_big = np.zeros((Din, 8 * H), np.float32)
    whh_big = np.zeros((2 * H, 8 * H), np.float32)
    b_big = np.zeros((1, 8 * H), np.float32)
    for k, gname in enumerate(('i', 'f', 'o', 'g')):
        rows = slice(pt[gname] * H, (pt[gname] + 1) * H)
        colf = slice(2 * k * H, (2 * k + 1) * H)
        colr = slice((2 * k + 1) * H, (2 * k + 2) * H)
        wih_f_big[:, colf] = w_ih_f[rows].T
        wih_r_big[:, colr] = w_ih_r[rows].T
        whh_big[0:H, colf] = w_hh_f[rows].T
        whh_big[H:2 * H, colr] = w_hh_r[rows].T
        b_big[0, colf] = b_f[rows]
        b_big[0, colr] = b_r[rows]
    return (jnp.asarray(wih_f_big), jnp.asarray(wih_r_big),
            jnp.asarray(whh_big), jnp.asarray(b_big))


# ----------------------------------------------------------------------------
# Model (deterministic synthetic parameters; shapes follow Model.__init__)
# ----------------------------------------------------------------------------
class PallasTagger:
    def __init__(self, key, *, nwords, nchars, ntags, WE, CE, H, MLP,
                 UNK, CUNK):
        ks = iter(jax.random.split(key, 32))
        nrm = lambda shp, s=0.1: (s * jax.random.normal(next(ks), shp)
                                  ).astype(jnp.float32)
        HC = WE // 2  # char-LSTM hidden size = WEMBED_SIZE / 2
        self.ntags = ntags

        # nn.Embedding (padding_idx rows zeroed, as PyTorch does at init)
        self.lookup_w = nrm((nwords, WE)).at[UNK].set(0.0)
        self.lookup_c = nrm((nchars, CE)).at[CUNK].set(0.0)

        # nn.LSTM(WE, H, bidirectional=True) — PyTorch layout
        self.w_ih_f, self.w_hh_f = nrm((4 * H, WE)), nrm((4 * H, H))
        self.b_ih_f, self.b_hh_f = nrm((4 * H,)), nrm((4 * H,))
        self.w_ih_r, self.w_hh_r = nrm((4 * H, WE)), nrm((4 * H, H))
        self.b_ih_r, self.b_hh_r = nrm((4 * H,)), nrm((4 * H,))

        # nn.LSTM(CE, WE//2) forward and reverse char LSTMs
        self.cw_ih_f, self.cw_hh_f = nrm((4 * HC, CE)), nrm((4 * HC, HC))
        self.cb_ih_f, self.cb_hh_f = nrm((4 * HC,)), nrm((4 * HC,))
        self.cw_ih_r, self.cw_hh_r = nrm((4 * HC, CE)), nrm((4 * HC, HC))
        self.cb_ih_r, self.cb_hh_r = nrm((4 * HC,)), nrm((4 * HC,))

        # nn.Linear(2H, MLP), nn.Linear(MLP, ntags)
        self.p1_w, self.p1_b = nrm((MLP, 2 * H)), nrm((MLP,))
        self.p2_w, self.p2_b = nrm((ntags, MLP)), nrm((ntags,))

        # ---- kernel-layout params: fused / transposed / zero-padded ONCE ----
        (self.k_cwih_f, self.k_cwih_r, self.k_cwhh, self.k_cb) = _fuse_bilstm_params(
            self.cw_ih_f, self.cw_hh_f, self.cb_ih_f, self.cb_hh_f,
            self.cw_ih_r, self.cw_hh_r, self.cb_ih_r, self.cb_hh_r)
        (self.k_wwih_f, self.k_wwih_r, self.k_wwhh, self.k_wb) = _fuse_bilstm_params(
            self.w_ih_f, self.w_hh_f, self.b_ih_f, self.b_hh_f,
            self.w_ih_r, self.w_hh_r, self.b_ih_r, self.b_hh_r)

        w1t = np.asarray(self.p1_w, np.float32).T                 # (2H, MLP)
        w1a = np.zeros_like(w1t); w1a[:H, :] = w1t[:H, :]         # fwd half
        w1b = np.zeros_like(w1t); w1b[H:, :] = w1t[H:, :]         # rev half
        self.k_w1a = jnp.asarray(w1a)
        self.k_w1b = jnp.asarray(w1b)
        self.k_b1 = jnp.asarray(self.p1_b).reshape(1, -1).astype(jnp.float32)

        nt_pad = pl.cdiv(ntags, 128) * 128                        # lane-dense logits
        self.k_w2_pad = (jnp.zeros((MLP, nt_pad), jnp.float32)
                         .at[:, :ntags].set(self.p2_w.T))
        self.k_b2_pad = (jnp.zeros((1, nt_pad), jnp.float32)
                         .at[:, :ntags].set(self.p2_b))

    # --- forward --------------------------------------------------------
    def forward(self, word_ids, needs_chars, fwd_char_ids, rev_char_ids,
                char_sel_t, *, use_pallas=True):
        T = len(word_ids)
        embeddings = self.lookup_w[jnp.asarray(word_ids)]            # (T, WE)

        if use_pallas:
            N = len(needs_chars)
            if N > 0:
                L = int(np.asarray(fwd_char_ids).shape[1])
                fwd_p = np.zeros((_NP, L), np.int32)
                rev_p = np.zeros((_NP, L), np.int32)
                fwd_p[:N] = np.asarray(fwd_char_ids, np.int32)
                rev_p[:N] = np.asarray(rev_char_ids, np.int32)
                # fused select(time = len(w)+1) + scatter(row = needs_chars[n])
                sc = np.zeros((T, L * _NP), np.float32)
                for n in range(N):
                    sc[int(needs_chars[n]), int(char_sel_t[n]) * _NP + n] = 1.0
            else:
                L = 1
                fwd_p = np.zeros((_NP, L), np.int32)
                rev_p = np.zeros((_NP, L), np.int32)
                sc = np.zeros((T, L * _NP), np.float32)

            CE = self.lookup_c.shape[1]
            ce_f = self.lookup_c[jnp.asarray(fwd_p).T].reshape(L * _NP, CE)
            ce_r = self.lookup_c[jnp.asarray(rev_p).T].reshape(L * _NP, CE)

            padded = tagger_forward_pallas(
                embeddings, ce_f, ce_r, jnp.asarray(sc),
                self.k_cwih_f, self.k_cwih_r, self.k_cwhh, self.k_cb,
                self.k_wwih_f, self.k_wwih_r, self.k_wwhh, self.k_wb,
                self.k_w1a, self.k_w1b, self.k_b1,
                self.k_w2_pad, self.k_b2_pad)
            return padded[:, :self.ntags]

        # ---------------- pure-JAX reference path (original layouts) ----------
        if len(needs_chars) > 0:
            ce_f = self.lookup_c[jnp.asarray(fwd_char_ids).T]        # (L, N, CE)
            ce_r = self.lookup_c[jnp.asarray(rev_char_ids).T]
            out_f = lstm_ref(ce_f, self.cw_ih_f, self.cw_hh_f,
                             self.cb_ih_f, self.cb_hh_f)
            out_r = lstm_ref(ce_r, self.cw_ih_r, self.cw_hh_r,
                             self.cb_ih_r, self.cb_hh_r)
            char_emb = jnp.concatenate([out_f, out_r], axis=2)       # (L, N, WE)
            sel_t = jnp.asarray(char_sel_t)
            unk_emb = char_emb[sel_t, jnp.arange(sel_t.shape[0])]    # (N, WE)
            embeddings = embeddings.at[jnp.asarray(needs_chars)].add(unk_emb)

        x = embeddings[:, None, :]                                   # (T, 1, WE)
        fwd = lstm_ref(x, self.w_ih_f, self.w_hh_f, self.b_ih_f, self.b_hh_f)
        bwd = lstm_ref(x[::-1], self.w_ih_r, self.w_hh_r,
                       self.b_ih_r, self.b_hh_r)[::-1]
        h = jnp.concatenate([fwd, bwd], axis=2)[:, 0, :]             # (T, 2H)
        return mlp_ref(h, self.p1_w, self.p1_b, self.p2_w, self.p2_b)


# ----------------------------------------------------------------------------
# Pure-JAX reference (PyTorch gate order i, f, g, o)
# ----------------------------------------------------------------------------
def lstm_ref(x, w_ih, w_hh, b_ih, b_hh):
    T, B, _ = x.shape
    H = w_hh.shape[1]
    wih_t, whh_t = w_ih.T, w_hh.T
    b = (b_ih + b_hh).reshape(1, -1)

    def step(carry, xt):
        h, c = carry
        gates = xt @ wih_t + h @ whh_t + b
        i = jax.nn.sigmoid(gates[:, 0:H])
        f = jax.nn.sigmoid(gates[:, H:2 * H])
        g = jnp.tanh(gates[:, 2 * H:3 * H])
        o = jax.nn.sigmoid(gates[:, 3 * H:4 * H])
        c = f * c + i * g
        h = o * jnp.tanh(c)
        return (h, c), h

    init = (jnp.zeros((B, H), jnp.float32), jnp.zeros((B, H), jnp.float32))
    _, hs = lax.scan(step, init, x.astype(jnp.float32))
    return hs


def mlp_ref(x, w1, b1, w2, b2):
    return (x @ w1.T + b1) @ w2.T + b2


# ----------------------------------------------------------------------------
# Main
# ----------------------------------------------------------------------------
if __name__ == "__main__":
    # Small, forward-consistent sizes (2H = 2*HC = 128 -> lane-dense fused carry)
    nwords, nchars, ntags = 100, 30, 10
    WE, CE, H, MLP = 128, 32, 64, 128
    UNK, CUNK = 0, 0
    pad_char = nchars - 1
    T = 8                      # sentence length

    key = jax.random.PRNGKey(0)
    k_model, k_words, k_chars = jax.random.split(key, 3)

    model = PallasTagger(k_model, nwords=nwords, nchars=nchars, ntags=ntags,
                         WE=WE, CE=CE, H=H, MLP=MLP, UNK=UNK, CUNK=CUNK)

    # Synthetic "sentence": positions 1, 4, 6 are rare words -> UNK + char path
    needs_chars = [1, 4, 6]
    word_ids = np.array(
        jax.random.randint(k_words, (T,), 1, nwords), dtype=np.int32)
    for j in needs_chars:
        word_ids[j] = UNK

    # Build padded fwd / rev char id matrices exactly like the PyTorch code:
    # char_ids = [pad] + chars + [pad]; pad to max_len; rev = reverse then pad.
    word_lens = [3, 5, 2]
    char_seqs = []
    ck = k_chars
    for L in word_lens:
        ck, sub = jax.random.split(ck)
        cs = list(np.array(jax.random.randint(sub, (L,), 1, nchars - 1)))
        char_seqs.append([pad_char] + [int(c) for c in cs] + [pad_char])
    max_len = max(len(s) for s in char_seqs)
    fwd_char_ids = np.array(
        [s + [pad_char] * (max_len - len(s)) for s in char_seqs], np.int32)
    rev_char_ids = np.array(
        [s[::-1] + [pad_char] * (max_len - len(s)) for s in char_seqs],
        np.int32)
    # char_embeddings[len(w)+1, i] is selected per unk word i
    char_sel_t = np.array([L + 1 for L in word_lens], np.int32)

    logits = model.forward(word_ids, needs_chars, fwd_char_ids, rev_char_ids,
                           char_sel_t, use_pallas=True)
    logits = jax.block_until_ready(logits)

    ref = model.forward(word_ids, needs_chars, fwd_char_ids, rev_char_ids,
                        char_sel_t, use_pallas=False)
    ref = jax.block_until_ready(ref)

    assert logits.shape == (T, ntags)
    np.testing.assert_allclose(np.asarray(logits), np.asarray(ref),
                               rtol=2e-5, atol=2e-5)
    print("KERNEL_OK")
</pallas_src>

<mosaic_0001>
module attributes {stable_mosaic.version = 11 : i64} {
  func.func @_tagger_kernel(%arg0: memref<8x128xf32, #tpu.memory_space<vmem>>, %arg1: memref<56x32xf32, #tpu.memory_space<vmem>>, %arg2: memref<56x32xf32, #tpu.memory_space<vmem>>, %arg3: memref<8x56xf32, #tpu.memory_space<vmem>>, %arg4: memref<32x512xf32, #tpu.memory_space<vmem>>, %arg5: memref<32x512xf32, #tpu.memory_space<vmem>>, %arg6: memref<128x512xf32, #tpu.memory_space<vmem>>, %arg7: memref<1x512xf32, #tpu.memory_space<vmem>>, %arg8: memref<128x512xf32, #tpu.memory_space<vmem>>, %arg9: memref<128x512xf32, #tpu.memory_space<vmem>>, %arg10: memref<128x512xf32, #tpu.memory_space<vmem>>, %arg11: memref<1x512xf32, #tpu.memory_space<vmem>>, %arg12: memref<128x128xf32, #tpu.memory_space<vmem>>, %arg13: memref<128x128xf32, #tpu.memory_space<vmem>>, %arg14: memref<1x128xf32, #tpu.memory_space<vmem>>, %arg15: memref<128x128xf32, #tpu.memory_space<vmem>>, %arg16: memref<1x128xf32, #tpu.memory_space<vmem>>, %arg17: memref<8x128xf32, #tpu.memory_space<vmem>>, %arg18: memref<56x512xf32, #tpu.memory_space<vmem>>) attributes {dimension_semantics = [], scalar_prefetch = 0 : i64, scratch_operands = 1 : i64, tpu.core_type = #tpu.core_type<tc>} {
    %c0 = arith.constant 0 : index
    %c0_0 = arith.constant 0 : index
    %0 = vector.load %arg1[%c0, %c0_0] : memref<56x32xf32, #tpu.memory_space<vmem>>, vector<56x32xf32>
    %c0_1 = arith.constant 0 : index
    %c0_2 = arith.constant 0 : index
    %1 = vector.load %arg4[%c0_1, %c0_2] : memref<32x512xf32, #tpu.memory_space<vmem>>, vector<32x512xf32>
    %cst = arith.constant dense<0.000000e+00> : vector<56x512xf32>
    %2 = tpu.matmul %0, %1, %cst {dimension_numbers = #tpu.dot_dimension_numbers<[1], [0], [0], [1], [0, 0, 1, 1], [], []>} : vector<56x32xf32>, vector<32x512xf32>, vector<56x512xf32> -> vector<56x512xf32>
    %c0_3 = arith.constant 0 : index
    %c0_4 = arith.constant 0 : index
    %3 = vector.load %arg2[%c0_3, %c0_4] : memref<56x32xf32, #tpu.memory_space<vmem>>, vector<56x32xf32>
    %c0_5 = arith.constant 0 : index
    %c0_6 = arith.constant 0 : index
    %4 = vector.load %arg5[%c0_5, %c0_6] : memref<32x512xf32, #tpu.memory_space<vmem>>, vector<32x512xf32>
    %cst_7 = arith.constant dense<0.000000e+00> : vector<56x512xf32>
    %5 = tpu.matmul %3, %4, %cst_7 {dimension_numbers = #tpu.dot_dimension_numbers<[1], [0], [0], [1], [0, 0, 1, 1], [], []>} : vector<56x32xf32>, vector<32x512xf32>, vector<56x512xf32> -> vector<56x512xf32>
    %6 = arith.addf %2, %5 : vector<56x512xf32>
    %c0_8 = arith.constant 0 : index
    %c0_9 = arith.constant 0 : index
    %7 = vector.load %arg7[%c0_8, %c0_9] : memref<1x512xf32, #tpu.memory_space<vmem>>, vector<1x512xf32>
    %8 = vector.broadcast %7 : vector<1x512xf32> to vector<56x512xf32>
    %9 = arith.addf %6, %8 : vector<56x512xf32>
    %c0_10 = arith.constant 0 : index
    %c0_11 = arith.constant 0 : index
    %10 = vector.load %arg18[%c0_10, %c0_11] : memref<56x512xf32, #tpu.memory_space<vmem>>, vector<56x512xf32>
    tpu.vector_store %arg18[%c0_10, %c0_11], %9 {strides = array<i32>} : memref<56x512xf32, #tpu.memory_space<vmem>>, vector<56x512xf32>,
    %c0_12 = arith.constant 0 : index
    %c0_13 = arith.constant 0 : index
    %11 = vector.load %arg6[%c0_12, %c0_13] : memref<128x512xf32, #tpu.memory_space<vmem>>, vector<128x512xf32>
    %cst_14 = arith.constant 0.000000e+00 : f32
    %12 = vector.broadcast %cst_14 : f32 to vector<8x128xf32>
    %cst_15 = arith.constant 0.000000e+00 : f32
    %13 = vector.broadcast %cst_15 : f32 to vector<8x128xf32>
    %c0_16 = arith.constant 0 : index
    %c0_17 = arith.constant 0 : index
    %14 = vector.load %arg18[%c0_16, %c0_17] : memref<56x512xf32, #tpu.memory_space<vmem>>, vector<8x512xf32>
    %cst_18 = arith.constant dense<0.000000e+00> : vector<8x512xf32>
    %15 = tpu.matmul %12, %11, %cst_18 {dimension_numbers = #tpu.dot_dimension_numbers<[1], [0], [0], [1], [0, 0, 1, 1], [], []>} : vector<8x128xf32>, vector<128x512xf32>, vector<8x512xf32> -> vector<8x512xf32>
    %16 = arith.addf %14, %15 : vector<8x512xf32>
    %17 = vector.extract_strided_slice %16 {offsets = [0, 0], sizes = [8, 384], strides = [1, 1]} : vector<8x512xf32> to vector<8x384xf32>
    %18 = arith.negf %17 : vector<8x384xf32>
    %19 = math.exp %18 : vector<8x384xf32>
    %cst_19 = arith.constant 1.000000e+00 : f32
    %20 = vector.broadcast %cst_19 : f32 to vector<8x384xf32>
    %21 = arith.addf %20, %19 : vector<8x384xf32>
    %22 = arith.divf %20, %21 : vector<8x384xf32>
    %23 = vector.extract_strided_slice %22 {offsets = [0, 0], sizes = [8, 128], strides = [1, 1]} : vector<8x384xf32> to vector<8x128xf32>
    %24 = vector.extract_strided_slice %22 {offsets = [0, 128], sizes = [8, 128], strides = [1, 1]} : vector<8x384xf32> to vector<8x128xf32>
    %25 = vector.extract_strided_slice %22 {offsets = [0, 256], sizes = [8, 128], strides = [1, 1]} : vector<8x384xf32> to vector<8x128xf32>
    %26 = vector.extract_strided_slice %16 {offsets = [0, 384], sizes = [8, 128], strides = [1, 1]} : vector<8x512xf32> to vector<8x128xf32>
    %27 = math.tanh %26 : vector<8x128xf32>
    %28 = arith.mulf %24, %13 : vector<8x128xf32>
    %29 = arith.mulf %23, %27 : vector<8x128xf32>
    %30 = arith.addf %28, %29 : vector<8x128xf32>
    %31 = math.tanh %30 : vector<8x128xf32>
    %32 = arith.mulf %25, %31 : vector<8x128xf32>
    %c8 = arith.constant 8 : index
    %c0_20 = arith.constant 0 : index
    %33 = vector.load %arg18[%c8, %c0_20] : memref<56x512xf32, #tpu.memory_space<vmem>>, vector<8x512xf32>
    %cst_21 = arith.constant dense<0.000000e+00> : vector<8x512xf32>
    %34 = tpu.matmul %32, %11, %cst_21 {dimension_numbers = #tpu.dot_dimension_numbers<[1], [0], [0], [1], [0, 0, 1, 1], [], []>} : vector<8x128xf32>, vector<128x512xf32>, vector<8x512xf32> -> vector<8x512xf32>
    %35 = arith.addf %33, %34 : vector<8x512xf32>
    %36 = vector.extract_strided_slice %35 {offsets = [0, 0], sizes = [8, 384], strides = [1, 1]} : vector<8x512xf32> to vector<8x384xf32>
    %37 = arith.negf %36 : vector<8x384xf32>
    %38 = math.exp %37 : vector<8x384xf32>
    %cst_22 = arith.constant 1.000000e+00 : f32
    %39 = vector.broadcast %cst_22 : f32 to vector<8x384xf32>
    %40 = arith.addf %39, %38 : vector<8x384xf32>
    %41 = arith.divf %39, %40 : vector<8x384xf32>
    %42 = vector.extract_strided_slice %41 {offsets = [0, 0], sizes = [8, 128], strides = [1, 1]} : vector<8x384xf32> to vector<8x128xf32>
    %43 = vector.extract_strided_slice %41 {offsets = [0, 128], sizes = [8, 128], strides = [1, 1]} : vector<8x384xf32> to vector<8x128xf32>
    %44 = vector.extract_strided_slice %41 {offsets = [0, 256], sizes = [8, 128], strides = [1, 1]} : vector<8x384xf32> to vector<8x128xf32>
    %45 = vector.extract_strided_slice %35 {offsets = [0, 384], sizes = [8, 128], strides = [1, 1]} : vector<8x512xf32> to vector<8x128xf32>
    %46 = math.tanh %45 : vector<8x128xf32>
    %47 = arith.mulf %43, %30 : vector<8x128xf32>
    %48 = arith.mulf %42, %46 : vector<8x128xf32>
    %49 = arith.addf %47, %48 : vector<8x128xf32>
    %50 = math.tanh %49 : vector<8x128xf32>
    %51 = arith.mulf %44, %50 : vector<8x128xf32>
    %c16 = arith.constant 16 : index
    %c0_23 = arith.constant 0 : index
    %52 = vector.load %arg18[%c16, %c0_23] : memref<56x512xf32, #tpu.memory_space<vmem>>, vector<8x512xf32>
    %cst_24 = arith.constant dense<0.000000e+00> : vector<8x512xf32>
    %53 = tpu.matmul %51, %11, %cst_24 {dimension_numbers = #tpu.dot_dimension_numbers<[1], [0], [0], [1], [0, 0, 1, 1], [], []>} : vector<8x128xf32>, vector<128x512xf32>, vector<8x512xf32> -> vector<8x512xf32>
    %54 = arith.addf %52, %53 : vector<8x512xf32>
    %55 = vector.extract_strided_slice %54 {offsets = [0, 0], sizes = [8, 384], strides = [1, 1]} : vector<8x512xf32> to vector<8x384xf32>
    %56 = arith.negf %55 : vector<8x384xf32>
    %57 = math.exp %56 : vector<8x384xf32>
    %cst_25 = arith.constant 1.000000e+00 : f32
    %58 = vector.broadcast %cst_25 : f32 to vector<8x384xf32>
    %59 = arith.addf %58, %57 : vector<8x384xf32>
    %60 = arith.divf %58, %59 : vector<8x384xf32>
    %61 = vector.extract_strided_slice %60 {offsets = [0, 0], sizes = [8, 128], strides = [1, 1]} : vector<8x384xf32> to vector<8x128xf32>
    %62 = vector.extract_strided_slice %60 {offsets = [0, 128], sizes = [8, 128], strides = [1, 1]} : vector<8x384xf32> to vector<8x128xf32>
    %63 = vector.extract_strided_slice %60 {offsets = [0, 256], sizes = [8, 128], strides = [1, 1]} : vector<8x384xf32> to vector<8x128xf32>
    %64 = vector.extract_strided_slice %54 {offsets = [0, 384], sizes = [8, 128], strides = [1, 1]} : vector<8x512xf32> to vector<8x128xf32>
    %65 = math.tanh %64 : vector<8x128xf32>
    %66 = arith.mulf %62, %49 : vector<8x128xf32>
    %67 = arith.mulf %61, %65 : vector<8x128xf32>
    %68 = arith.addf %66, %67 : vector<8x128xf32>
    %69 = math.tanh %68 : vector<8x128xf32>
    %70 = arith.mulf %63, %69 : vector<8x128xf32>
    %c24 = arith.constant 24 : index
    %c0_26 = arith.constant 0 : index
    %71 = vector.load %arg18[%c24, %c0_26] : memref<56x512xf32, #tpu.memory_space<vmem>>, vector<8x512xf32>
    %cst_27 = arith.constant dense<0.000000e+00> : vector<8x512xf32>
    %72 = tpu.matmul %70, %11, %cst_27 {dimension_numbers = #tpu.dot_dimension_numbers<[1], [0], [0], [1], [0, 0, 1, 1], [], []>} : vector<8x128xf32>, vector<128x512xf32>, vector<8x512xf32> -> vector<8x512xf32>
    %73 = arith.addf %71, %72 : vector<8x512xf32>
    %74 = vector.extract_strided_slice %73 {offsets = [0, 0], sizes = [8, 384], strides = [1, 1]} : vector<8x512xf32> to vector<8x384xf32>
    %75 = arith.negf %74 : vector<8x384xf32>
    %76 = math.exp %75 : vector<8x384xf32>
    %cst_28 = arith.constant 1.000000e+00 : f32
    %77 = vector.broadcast %cst_28 : f32 to vector<8x384xf32>
    %78 = arith.addf %77, %76 : vector<8x384xf32>
    %79 = arith.divf %77, %78 : vector<8x384xf32>
    %80 = vector.extract_strided_slice %79 {offsets = [0, 0], sizes = [8, 128], strides = [1, 1]} : vector<8x384xf32> to vector<8x128xf32>
    %81 = vector.extract_strided_slice %79 {offsets = [0, 128], sizes = [8, 128], strides = [1, 1]} : vector<8x384xf32> to vector<8x128xf32>
    %82 = vector.extract_strided_slice %79 {offsets = [0, 256], sizes = [8, 128], strides = [1, 1]} : vector<8x384xf32> to vector<8x128xf32>
    %83 = vector.extract_strided_slice %73 {offsets = [0, 384], sizes = [8, 128], strides = [1, 1]} : vector<8x512xf32> to vector<8x128xf32>
    %84 = math.tanh %83 : vector<8x128xf32>
    %85 = arith.mulf %81, %68 : vector<8x128xf32>
    %86 = arith.mulf %80, %84 : vector<8x128xf32>
    %87 = arith.addf %85, %86 : vector<8x128xf32>
    %88 = math.tanh %87 : vector<8x128xf32>
    %89 = arith.mulf %82, %88 : vector<8x128xf32>
    %c32 = arith.constant 32 : index
    %c0_29 = arith.constant 0 : index
    %90 = vector.load %arg18[%c32, %c0_29] : memref<56x512xf32, #tpu.memory_space<vmem>>, vector<8x512xf32>
    %cst_30 = arith.constant dense<0.000000e+00> : vector<8x512xf32>
    %91 = tpu.matmul %89, %11, %cst_30 {dimension_numbers = #tpu.dot_dimension_numbers<[1], [0], [0], [1], [0, 0, 1, 1], [], []>} : vector<8x128xf32>, vector<128x512xf32>, vector<8x512xf32> -> vector<8x512xf32>
    %92 = arith.addf %90, %91 : vector<8x512xf32>
    %93 = vector.extract_strided_slice %92 {offsets = [0, 0], sizes = [8, 384], strides = [1, 1]} : vector<8x512xf32> to vector<8x384xf32>
    %94 = arith.negf %93 : vector<8x384xf32>
    %95 = math.exp %94 : vector<8x384xf32>
    %cst_31 = arith.constant 1.000000e+00 : f32
    %96 = vector.broadcast %cst_31 : f32 to vector<8x384xf32>
    %97 = arith.addf %96, %95 : vector<8x384xf32>
    %98 = arith.divf %96, %97 : vector<8x384xf32>
    %99 = vector.extract_strided_slice %98 {offsets = [0, 0], sizes = [8, 128], strides = [1, 1]} : vector<8x384xf32> to vector<8x128xf32>
    %100 = vector.extract_strided_slice %98 {offsets = [0, 128], sizes = [8, 128], strides = [1, 1]} : vector<8x384xf32> to vector<8x128xf32>
    %101 = vector.extract_strided_slice %98 {offsets = [0, 256], sizes = [8, 128], strides = [1, 1]} : vector<8x384xf32> to vector<8x128xf32>
    %102 = vector.extract_strided_slice %92 {offsets = [0, 384], sizes = [8, 128], strides = [1, 1]} : vector<8x512xf32> to vector<8x128xf32>
    %103 = math.tanh %102 : vector<8x128xf32>
    %104 = arith.mulf %100, %87 : vector<8x128xf32>
    %105 = arith.mulf %99, %103 : vector<8x128xf32>
    %106 = arith.addf %104, %105 : vector<8x128xf32>
    %107 = math.tanh %106 : vector<8x128xf32>
    %108 = arith.mulf %101, %107 : vector<8x128xf32>
    %c40 = arith.constant 40 : index
    %c0_32 = arith.constant 0 : index
    %109 = vector.load %arg18[%c40, %c0_32] : memref<56x512xf32, #tpu.memory_space<vmem>>, vector<8x512xf32>
    %cst_33 = arith.constant dense<0.000000e+00> : vector<8x512xf32>
    %110 = tpu.matmul %108, %11, %cst_33 {dimension_numbers = #tpu.dot_dimension_numbers<[1], [0], [0], [1], [0, 0, 1, 1], [], []>} : vector<8x128xf32>, vector<128x512xf32>, vector<8x512xf32> -> vector<8x512xf32>
    %111 = arith.addf %109, %110 : vector<8x512xf32>
    %112 = vector.extract_strided_slice %111 {offsets = [0, 0], sizes = [8, 384], strides = [1, 1]} : vector<8x512xf32> to vector<8x384xf32>
    %113 = arith.negf %112 : vector<8x384xf32>
    %114 = math.exp %113 : vector<8x384xf32>
    %cst_34 = arith.constant 1.000000e+00 : f32
    %115 = vector.broadcast %cst_34 : f32 to vector<8x384xf32>
    %116 = arith.addf %115, %114 : vector<8x384xf32>
    %117 = arith.divf %115, %116 : vector<8x384xf32>
    %118 = vector.extract_strided_slice %117 {offsets = [0, 0], sizes = [8, 128], strides = [1, 1]} : vector<8x384xf32> to vector<8x128xf32>
    %119 = vector.extract_strided_slice %117 {offsets = [0, 128], sizes = [8, 128], strides = [1, 1]} : vector<8x384xf32> to vector<8x128xf32>
    %120 = vector.extract_strided_slice %117 {offsets = [0, 256], sizes = [8, 128], strides = [1, 1]} : vector<8x384xf32> to vector<8x128xf32>
    %121 = vector.extract_strided_slice %111 {offsets = [0, 384], sizes = [8, 128], strides = [1, 1]} : vector<8x512xf32> to vector<8x128xf32>
    %122 = math.tanh %121 : vector<8x128xf32>
    %123 = arith.mulf %119, %106 : vector<8x128xf32>
    %124 = arith.mulf %118, %122 : vector<8x128xf32>
    %125 = arith.addf %123, %124 : vector<8x128xf32>
    %126 = math.tanh %125 : vector<8x128xf32>
    %127 = arith.mulf %120, %126 : vector<8x128xf32>
    %c48 = arith.constant 48 : index
    %c0_35 = arith.constant 0 : index
    %128 = vector.load %arg18[%c48, %c0_35] : memref<56x512xf32, #tpu.memory_space<vmem>>, vector<8x512xf32>
    %cst_36 = arith.constant dense<0.000000e+00> : vector<8x512xf32>
    %129 = tpu.matmul %127, %11, %cst_36 {dimension_numbers = #tpu.dot_dimension_numbers<[1], [0], [0], [1], [0, 0, 1, 1], [], []>} : vector<8x128xf32>, vector<128x512xf32>, vector<8x512xf32> -> vector<8x512xf32>
    %130 = arith.addf %128, %129 : vector<8x512xf32>
    %131 = vector.extract_strided_slice %130 {offsets = [0, 0], sizes = [8, 384], strides = [1, 1]} : vector<8x512xf32> to vector<8x384xf32>
    %132 = arith.negf %131 : vector<8x384xf32>
    %133 = math.exp %132 : vector<8x384xf32>
    %cst_37 = arith.constant 1.000000e+00 : f32
    %134 = vector.broadcast %cst_37 : f32 to vector<8x384xf32>
    %135 = arith.addf %134, %133 : vector<8x384xf32>
    %136 = arith.divf %134, %135 : vector<8x384xf32>
    %137 = vector.extract_strided_slice %136 {offsets = [0, 0], sizes = [8, 128], strides = [1, 1]} : vector<8x384xf32> to vector<8x128xf32>
    %138 = vector.extract_strided_slice %136 {offsets = [0, 128], sizes = [8, 128], strides = [1, 1]} : vector<8x384xf32> to vector<8x128xf32>
    %139 = vector.extract_strided_slice %136 {offsets = [0, 256], sizes = [8, 128], strides = [1, 1]} : vector<8x384xf32> to vector<8x128xf32>
    %140 = vector.extract_strided_slice %130 {offsets = [0, 384], sizes = [8, 128], strides = [1, 1]} : vector<8x512xf32> to vector<8x128xf32>
    %141 = math.tanh %140 : vector<8x128xf32>
    %142 = arith.mulf %138, %125 : vector<8x128xf32>
    %143 = arith.mulf %137, %141 : vector<8x128xf32>
    %144 = arith.addf %142, %143 : vector<8x128xf32>
    %145 = math.tanh %144 : vector<8x128xf32>
    %146 = arith.mulf %139, %145 : vector<8x128xf32>
    %147 = tpu.concatenate %32, %51, %70, %89, %108, %127, %146 in 0 : vector<8x128xf32>, vector<8x128xf32>, vector<8x128xf32>, vector<8x128xf32>, vector<8x128xf32>, vector<8x128xf32>, vector<8x128xf32> -> vector<56x128xf32>
    %c0_38 = arith.constant 0 : index
    %c0_39 = arith.constant 0 : index
    %148 = vector.load %arg0[%c0_38, %c0_39] : memref<8x128xf32, #tpu.memory_space<vmem>>, vector<8x128xf32>
    %c0_40 = arith.constant 0 : index
    %c0_41 = arith.constant 0 : index
    %149 = vector.load %arg3[%c0_40, %c0_41] : memref<8x56xf32, #tpu.memory_space<vmem>>, vector<8x56xf32>
    %cst_42 = arith.constant dense<0.000000e+00> : vector<8x128xf32>
    %150 = tpu.matmul %149, %147, %cst_42 {dimension_numbers = #tpu.dot_dimension_numbers<[1], [0], [0], [1], [0, 0, 1, 1], [], []>} : vector<8x56xf32>, vector<56x128xf32>, vector<8x128xf32> -> vector<8x128xf32>
    %151 = arith.addf %148, %150 : vector<8x128xf32>
    %c0_43 = arith.constant 0 : index
    %c0_44 = arith.constant 0 : index
    %152 = vector.load %arg8[%c0_43, %c0_44] : memref<128x512xf32, #tpu.memory_space<vmem>>, vector<128x512xf32>
    %cst_45 = arith.constant dense<0.000000e+00> : vector<8x512xf32>
    %153 = tpu.matmul %151, %152, %cst_45 {dimension_numbers = #tpu.dot_dimension_numbers<[1], [0], [0], [1], [0, 0, 1, 1], [], []>} : vector<8x128xf32>, vector<128x512xf32>, vector<8x512xf32> -> vector<8x512xf32>
    %c0_46 = arith.constant 0 : index
    %c0_47 = arith.constant 0 : index
    %154 = vector.load %arg11[%c0_46, %c0_47] : memref<1x512xf32, #tpu.memory_space<vmem>>, vector<1x512xf32>
    %155 = vector.broadcast %154 : vector<1x512xf32> to vector<8x512xf32>
    %156 = arith.addf %153, %155 : vector<8x512xf32>
    %c0_48 = arith.constant 0 : index
    %c0_49 = arith.constant 0 : index
    %157 = vector.load %arg9[%c0_48, %c0_49] : memref<128x512xf32, #tpu.memory_space<vmem>>, vector<128x512xf32>
    %cst_50 = arith.constant dense<0.000000e+00> : vector<8x512xf32>
    %158 = tpu.matmul %151, %157, %cst_50 {dimension_numbers = #tpu.dot_dimension_numbers<[1], [0], [0], [1], [0, 0, 1, 1], [], []>} : vector<8x128xf32>, vector<128x512xf32>, vector<8x512xf32> -> vector<8x512xf32>
    %c0_51 = arith.constant 0 : index
    %c0_52 = arith.constant 0 : index
    %159 = vector.load %arg10[%c0_51, %c0_52] : memref<128x512xf32, #tpu.memory_space<vmem>>, vector<128x512xf32>
    %cst_53 = arith.constant 0.000000e+00 : f32
    %160 = vector.broadcast %cst_53 : f32 to vector<1x128xf32>
    %cst_54 = arith.constant 0.000000e+00 : f32
    %161 = vector.broadcast %cst_54 : f32 to vector<1x128xf32>
    %162 = vector.extract_strided_slice %156 {offsets = [0, 0], sizes = [1, 512], strides = [1, 1]} : vector<8x512xf32> to vector<1x512xf32>
    %163 = vector.extract_strided_slice %158 {offsets = [7, 0], sizes = [1, 512], strides = [1, 1]} : vector<8x512xf32> to vector<1x512xf32>
    %164 = arith.addf %162, %163 : vector<1x512xf32>
    %cst_55 = arith.constant dense<0.000000e+00> : vector<1x512xf32>
    %165 = tpu.matmul %160, %159, %cst_55 {dimension_numbers = #tpu.dot_dimension_numbers<[1], [0], [0], [1], [0, 0, 1, 1], [], []>} : vector<1x128xf32>, vector<128x512xf32>, vector<1x512xf32> -> vector<1x512xf32>
    %166 = arith.addf %164, %165 : vector<1x512xf32>
    %167 = vector.extract_strided_slice %166 {offsets = [0, 0], sizes = [1, 384], strides = [1, 1]} : vector<1x512xf32> to vector<1x384xf32>
    %168 = arith.negf %167 : vector<1x384xf32>
    %169 = math.exp %168 : vector<1x384xf32>
    %cst_56 = arith.constant 1.000000e+00 : f32
    %170 = vector.broadcast %cst_56 : f32 to vector<1x384xf32>
    %171 = arith.addf %170, %169 : vector<1x384xf32>
    %172 = arith.divf %170, %171 : vector<1x384xf32>
    %173 = vector.extract_strided_slice %172 {offsets = [0, 0], sizes = [1, 128], strides = [1, 1]} : vector<1x384xf32> to vector<1x128xf32>
    %174 = vector.extract_strided_slice %172 {offsets = [0, 128], sizes = [1, 128], strides = [1, 1]} : vector<1x384xf32> to vector<1x128xf32>
    %175 = vector.extract_strided_slice %172 {offsets = [0, 256], sizes = [1, 128], strides = [1, 1]} : vector<1x384xf32> to vector<1x128xf32>
    %176 = vector.extract_strided_slice %166 {offsets = [0, 384], sizes = [1, 128], strides = [1, 1]} : vector<1x512xf32> to vector<1x128xf32>
    %177 = math.tanh %176 : vector<1x128xf32>
    %178 = arith.mulf %174, %161 : vector<1x128xf32>
    %179 = arith.mulf %173, %177 : vector<1x128xf32>
    %180 = arith.addf %178, %179 : vector<1x128xf32>
    %181 = math.tanh %180 : vector<1x128xf32>
    %182 = arith.mulf %175, %181 : vector<1x128xf32>
    %183 = vector.extract_strided_slice %156 {offsets = [1, 0], sizes = [1, 512], strides = [1, 1]} : vector<8x512xf32> to vector<1x512xf32>
    %184 = vector.extract_strided_slice %158 {offsets = [6, 0], sizes = [1, 512], strides = [1, 1]} : vector<8x512xf32> to vector<1x512xf32>
    %185 = arith.addf %183, %184 : vector<1x512xf32>
    %cst_57 = arith.constant dense<0.000000e+00> : vector<1x512xf32>
    %186 = tpu.matmul %182, %159, %cst_57 {dimension_numbers = #tpu.dot_dimension_numbers<[1], [0], [0], [1], [0, 0, 1, 1], [], []>} : vector<1x128xf32>, vector<128x512xf32>, vector<1x512xf32> -> vector<1x512xf32>
    %187 = arith.addf %185, %186 : vector<1x512xf32>
    %188 = vector.extract_strided_slice %187 {offsets = [0, 0], sizes = [1, 384], strides = [1, 1]} : vector<1x512xf32> to vector<1x384xf32>
    %189 = arith.negf %188 : vector<1x384xf32>
    %190 = math.exp %189 : vector<1x384xf32>
    %cst_58 = arith.constant 1.000000e+00 : f32
    %191 = vector.broadcast %cst_58 : f32 to vector<1x384xf32>
    %192 = arith.addf %191, %190 : vector<1x384xf32>
    %193 = arith.divf %191, %192 : vector<1x384xf32>
    %194 = vector.extract_strided_slice %193 {offsets = [0, 0], sizes = [1, 128], strides = [1, 1]} : vector<1x384xf32> to vector<1x128xf32>
    %195 = vector.extract_strided_slice %193 {offsets = [0, 128], sizes = [1, 128], strides = [1, 1]} : vector<1x384xf32> to vector<1x128xf32>
    %196 = vector.extract_strided_slice %193 {offsets = [0, 256], sizes = [1, 128], strides = [1, 1]} : vector<1x384xf32> to vector<1x128xf32>
    %197 = vector.extract_strided_slice %187 {offsets = [0, 384], sizes = [1, 128], strides = [1, 1]} : vector<1x512xf32> to vector<1x128xf32>
    %198 = math.tanh %197 : vector<1x128xf32>
    %199 = arith.mulf %195, %180 : vector<1x128xf32>
    %200 = arith.mulf %194, %198 : vector<1x128xf32>
    %201 = arith.addf %199, %200 : vector<1x128xf32>
    %202 = math.tanh %201 : vector<1x128xf32>
    %203 = arith.mulf %196, %202 : vector<1x128xf32>
    %204 = vector.extract_strided_slice %156 {offsets = [2, 0], sizes = [1, 512], strides = [1, 1]} : vector<8x512xf32> to vector<1x512xf32>
    %205 = vector.extract_strided_slice %158 {offsets = [5, 0], sizes = [1, 512], strides = [1, 1]} : vector<8x512xf32> to vector<1x512xf32>
    %206 = arith.addf %204, %205 : vector<1x512xf32>
    %cst_59 = arith.constant dense<0.000000e+00> : vector<1x512xf32>
    %207 = tpu.matmul %203, %159, %cst_59 {dimension_numbers = #tpu.dot_dimension_numbers<[1], [0], [0], [1], [0, 0, 1, 1], [], []>} : vector<1x128xf32>, vector<128x512xf32>, vector<1x512xf32> -> vector<1x512xf32>
    %208 = arith.addf %206, %207 : vector<1x512xf32>
    %209 = vector.extract_strided_slice %208 {offsets = [0, 0], sizes = [1, 384], strides = [1, 1]} : vector<1x512xf32> to vector<1x384xf32>
    %210 = arith.negf %209 : vector<1x384xf32>
    %211 = math.exp %210 : vector<1x384xf32>
    %cst_60 = arith.constant 1.000000e+00 : f32
    %212 = vector.broadcast %cst_60 : f32 to vector<1x384xf32>
    %213 = arith.addf %212, %211 : vector<1x384xf32>
    %214 = arith.divf %212, %213 : vector<1x384xf32>
    %215 = vector.extract_strided_slice %214 {offsets = [0, 0], sizes = [1, 128], strides = [1, 1]} : vector<1x384xf32> to vector<1x128xf32>
    %216 = vector.extract_strided_slice %214 {offsets = [0, 128], sizes = [1, 128], strides = [1, 1]} : vector<1x384xf32> to vector<1x128xf32>
    %217 = vector.extract_strided_slice %214 {offsets = [0, 256], sizes = [1, 128], strides = [1, 1]} : vector<1x384xf32> to vector<1x128xf32>
    %218 = vector.extract_strided_slice %208 {offsets = [0, 384], sizes = [1, 128], strides = [1, 1]} : vector<1x512xf32> to vector<1x128xf32>
    %219 = math.tanh %218 : vector<1x128xf32>
    %220 = arith.mulf %216, %201 : vector<1x128xf32>
    %221 = arith.mulf %215, %219 : vector<1x128xf32>
    %222 = arith.addf %220, %221 : vector<1x128xf32>
    %223 = math.tanh %222 : vector<1x128xf32>
    %224 = arith.mulf %217, %223 : vector<1x128xf32>
    %225 = vector.extract_strided_slice %156 {offsets = [3, 0], sizes = [1, 512], strides = [1, 1]} : vector<8x512xf32> to vector<1x512xf32>
    %226 = vector.extract_strided_slice %158 {offsets = [4, 0], sizes = [1, 512], strides = [1, 1]} : vector<8x512xf32> to vector<1x512xf32>
    %227 = arith.addf %225, %226 : vector<1x512xf32>
    %cst_61 = arith.constant dense<0.000000e+00> : vector<1x512xf32>
    %228 = tpu.matmul %224, %159, %cst_61 {dimension_numbers = #tpu.dot_dimension_numbers<[1], [0], [0], [1], [0, 0, 1, 1], [], []>} : vector<1x128xf32>, vector<128x512xf32>, vector<1x512xf32> -> vector<1x512xf32>
    %229 = arith.addf %227, %228 : vector<1x512xf32>
    %230 = vector.extract_strided_slice %229 {offsets = [0, 0], sizes = [1, 384], strides = [1, 1]} : vector<1x512xf32> to vector<1x384xf32>
    %231 = arith.negf %230 : vector<1x384xf32>
    %232 = math.exp %231 : vector<1x384xf32>
    %cst_62 = arith.constant 1.000000e+00 : f32
    %233 = vector.broadcast %cst_62 : f32 to vector<1x384xf32>
    %234 = arith.addf %233, %232 : vector<1x384xf32>
    %235 = arith.divf %233, %234 : vector<1x384xf32>
    %236 = vector.extract_strided_slice %235 {offsets = [0, 0], sizes = [1, 128], strides = [1, 1]} : vector<1x384xf32> to vector<1x128xf32>
    %237 = vector.extract_strided_slice %235 {offsets = [0, 128], sizes = [1, 128], strides = [1, 1]} : vector<1x384xf32> to vector<1x128xf32>
    %238 = vector.extract_strided_slice %235 {offsets = [0, 256], sizes = [1, 128], strides = [1, 1]} : vector<1x384xf32> to vector<1x128xf32>
    %239 = vector.extract_strided_slice %229 {offsets = [0, 384], sizes = [1, 128], strides = [1, 1]} : vector<1x512xf32> to vector<1x128xf32>
    %240 = math.tanh %239 : vector<1x128xf32>
    %241 = arith.mulf %237, %222 : vector<1x128xf32>
    %242 = arith.mulf %236, %240 : vector<1x128xf32>
    %243 = arith.addf %241, %242 : vector<1x128xf32>
    %244 = math.tanh %243 : vector<1x128xf32>
    %245 = arith.mulf %238, %244 : vector<1x128xf32>
    %246 = vector.extract_strided_slice %156 {offsets = [4, 0], sizes = [1, 512], strides = [1, 1]} : vector<8x512xf32> to vector<1x512xf32>
    %247 = vector.extract_strided_slice %158 {offsets = [3, 0], sizes = [1, 512], strides = [1, 1]} : vector<8x512xf32> to vector<1x512xf32>
    %248 = arith.addf %246, %247 : vector<1x512xf32>
    %cst_63 = arith.constant dense<0.000000e+00> : vector<1x512xf32>
    %249 = tpu.matmul %245, %159, %cst_63 {dimension_numbers = #tpu.dot_dimension_numbers<[1], [0], [0], [1], [0, 0, 1, 1], [], []>} : vector<1x128xf32>, vector<128x512xf32>, vector<1x512xf32> -> vector<1x512xf32>
    %250 = arith.addf %248, %249 : vector<1x512xf32>
    %251 = vector.extract_strided_slice %250 {offsets = [0, 0], sizes = [1, 384], strides = [1, 1]} : vector<1x512xf32> to vector<1x384xf32>
    %252 = arith.negf %251 : vector<1x384xf32>
    %253 = math.exp %252 : vector<1x384xf32>
    %cst_64 = arith.constant 1.000000e+00 : f32
    %254 = vector.broadcast %cst_64 : f32 to vector<1x384xf32>
    %255 = arith.addf %254, %253 : vector<1x384xf32>
    %256 = arith.divf %254, %255 : vector<1x384xf32>
    %257 = vector.extract_strided_slice %256 {offsets = [0, 0], sizes = [1, 128], strides = [1, 1]} : vector<1x384xf32> to vector<1x128xf32>
    %258 = vector.extract_strided_slice %256 {offsets = [0, 128], sizes = [1, 128], strides = [1, 1]} : vector<1x384xf32> to vector<1x128xf32>
    %259 = vector.extract_strided_slice %256 {offsets = [0, 256], sizes = [1, 128], strides = [1, 1]} : vector<1x384xf32> to vector<1x128xf32>
    %260 = vector.extract_strided_slice %250 {offsets = [0, 384], sizes = [1, 128], strides = [1, 1]} : vector<1x512xf32> to vector<1x128xf32>
    %261 = math.tanh %260 : vector<1x128xf32>
    %262 = arith.mulf %258, %243 : vector<1x128xf32>
    %263 = arith.mulf %257, %261 : vector<1x128xf32>
    %264 = arith.addf %262, %263 : vector<1x128xf32>
    %265 = math.tanh %264 : vector<1x128xf32>
    %266 = arith.mulf %259, %265 : vector<1x128xf32>
    %267 = vector.extract_strided_slice %156 {offsets = [5, 0], sizes = [1, 512], strides = [1, 1]} : vector<8x512xf32> to vector<1x512xf32>
    %268 = vector.extract_strided_slice %158 {offsets = [2, 0], sizes = [1, 512], strides = [1, 1]} : vector<8x512xf32> to vector<1x512xf32>
    %269 = arith.addf %267, %268 : vector<1x512xf32>
    %cst_65 = arith.constant dense<0.000000e+00> : vector<1x512xf32>
    %270 = tpu.matmul %266, %159, %cst_65 {dimension_numbers = #tpu.dot_dimension_numbers<[1], [0], [0], [1], [0, 0, 1, 1], [], []>} : vector<1x128xf32>, vector<128x512xf32>, vector<1x512xf32> -> vector<1x512xf32>
    %271 = arith.addf %269, %270 : vector<1x512xf32>
    %272 = vector.extract_strided_slice %271 {offsets = [0, 0], sizes = [1, 384], strides = [1, 1]} : vector<1x512xf32> to vector<1x384xf32>
    %273 = arith.negf %272 : vector<1x384xf32>
    %274 = math.exp %273 : vector<1x384xf32>
    %cst_66 = arith.constant 1.000000e+00 : f32
    %275 = vector.broadcast %cst_66 : f32 to vector<1x384xf32>
    %276 = arith.addf %275, %274 : vector<1x384xf32>
    %277 = arith.divf %275, %276 : vector<1x384xf32>
    %278 = vector.extract_strided_slice %277 {offsets = [0, 0], sizes = [1, 128], strides = [1, 1]} : vector<1x384xf32> to vector<1x128xf32>
    %279 = vector.extract_strided_slice %277 {offsets = [0, 128], sizes = [1, 128], strides = [1, 1]} : vector<1x384xf32> to vector<1x128xf32>
    %280 = vector.extract_strided_slice %277 {offsets = [0, 256], sizes = [1, 128], strides = [1, 1]} : vector<1x384xf32> to vector<1x128xf32>
    %281 = vector.extract_strided_slice %271 {offsets = [0, 384], sizes = [1, 128], strides = [1, 1]} : vector<1x512xf32> to vector<1x128xf32>
    %282 = math.tanh %281 : vector<1x128xf32>
    %283 = arith.mulf %279, %264 : vector<1x128xf32>
    %284 = arith.mulf %278, %282 : vector<1x128xf32>
    %285 = arith.addf %283, %284 : vector<1x128xf32>
    %286 = math.tanh %285 : vector<1x128xf32>
    %287 = arith.mulf %280, %286 : vector<1x128xf32>
    %288 = vector.extract_strided_slice %156 {offsets = [6, 0], sizes = [1, 512], strides = [1, 1]} : vector<8x512xf32> to vector<1x512xf32>
    %289 = vector.extract_strided_slice %158 {offsets = [1, 0], sizes = [1, 512], strides = [1, 1]} : vector<8x512xf32> to vector<1x512xf32>
    %290 = arith.addf %288, %289 : vector<1x512xf32>
    %cst_67 = arith.constant dense<0.000000e+00> : vector<1x512xf32>
    %291 = tpu.matmul %287, %159, %cst_67 {dimension_numbers = #tpu.dot_dimension_numbers<[1], [0], [0], [1], [0, 0, 1, 1], [], []>} : vector<1x128xf32>, vector<128x512xf32>, vector<1x512xf32> -> vector<1x512xf32>
    %292 = arith.addf %290, %291 : vector<1x512xf32>
    %293 = vector.extract_strided_slice %292 {offsets = [0, 0], sizes = [1, 384], strides = [1, 1]} : vector<1x512xf32> to vector<1x384xf32>
    %294 = arith.negf %293 : vector<1x384xf32>
    %295 = math.exp %294 : vector<1x384xf32>
    %cst_68 = arith.constant 1.000000e+00 : f32
    %296 = vector.broadcast %cst_68 : f32 to vector<1x384xf32>
    %297 = arith.addf %296, %295 : vector<1x384xf32>
    %298 = arith.divf %296, %297 : vector<1x384xf32>
    %299 = vector.extract_strided_slice %298 {offsets = [0, 0], sizes = [1, 128], strides = [1, 1]} : vector<1x384xf32> to vector<1x128xf32>
    %300 = vector.extract_strided_slice %298 {offsets = [0, 128], sizes = [1, 128], strides = [1, 1]} : vector<1x384xf32> to vector<1x128xf32>
    %301 = vector.extract_strided_slice %298 {offsets = [0, 256], sizes = [1, 128], strides = [1, 1]} : vector<1x384xf32> to vector<1x128xf32>
    %302 = vector.extract_strided_slice %292 {offsets = [0, 384], sizes = [1, 128], strides = [1, 1]} : vector<1x512xf32> to vector<1x128xf32>
    %303 = math.tanh %302 : vector<1x128xf32>
    %304 = arith.mulf %300, %285 : vector<1x128xf32>
    %305 = arith.mulf %299, %303 : vector<1x128xf32>
    %306 = arith.addf %304, %305 : vector<1x128xf32>
    %307 = math.tanh %306 : vector<1x128xf32>
    %308 = arith.mulf %301, %307 : vector<1x128xf32>
    %309 = vector.extract_strided_slice %156 {offsets = [7, 0], sizes = [1, 512], strides = [1, 1]} : vector<8x512xf32> to vector<1x512xf32>
    %310 = vector.extract_strided_slice %158 {offsets = [0, 0], sizes = [1, 512], strides = [1, 1]} : vector<8x512xf32> to vector<1x512xf32>
    %311 = arith.addf %309, %310 : vector<1x512xf32>
    %cst_69 = arith.constant dense<0.000000e+00> : vector<1x512xf32>
    %312 = tpu.matmul %308, %159, %cst_69 {dimension_numbers = #tpu.dot_dimension_numbers<[1], [0], [0], [1], [0, 0, 1, 1], [], []>} : vector<1x128xf32>, vector<128x512xf32>, vector<1x512xf32> -> vector<1x512xf32>
    %313 = arith.addf %311, %312 : vector<1x512xf32>
    %314 = vector.extract_strided_slice %313 {offsets = [0, 0], sizes = [1, 384], strides = [1, 1]} : vector<1x512xf32> to vector<1x384xf32>
    %315 = arith.negf %314 : vector<1x384xf32>
    %316 = math.exp %315 : vector<1x384xf32>
    %cst_70 = arith.constant 1.000000e+00 : f32
    %317 = vector.broadcast %cst_70 : f32 to vector<1x384xf32>
    %318 = arith.addf %317, %316 : vector<1x384xf32>
    %319 = arith.divf %317, %318 : vector<1x384xf32>
    %320 = vector.extract_strided_slice %319 {offsets = [0, 0], sizes = [1, 128], strides = [1, 1]} : vector<1x384xf32> to vector<1x128xf32>
    %321 = vector.extract_strided_slice %319 {offsets = [0, 128], sizes = [1, 128], strides = [1, 1]} : vector<1x384xf32> to vector<1x128xf32>
    %322 = vector.extract_strided_slice %319 {offsets = [0, 256], sizes = [1, 128], strides = [1, 1]} : vector<1x384xf32> to vector<1x128xf32>
    %323 = vector.extract_strided_slice %313 {offsets = [0, 384], sizes = [1, 128], strides = [1, 1]} : vector<1x512xf32> to vector<1x128xf32>
    %324 = math.tanh %323 : vector<1x128xf32>
    %325 = arith.mulf %321, %306 : vector<1x128xf32>
    %326 = arith.mulf %320, %324 : vector<1x128xf32>
    %327 = arith.addf %325, %326 : vector<1x128xf32>
    %328 = math.tanh %327 : vector<1x128xf32>
    %329 = arith.mulf %322, %328 : vector<1x128xf32>
    %330 = tpu.concatenate %182, %203, %224, %245, %266, %287, %308, %329 in 0 : vector<1x128xf32>, vector<1x128xf32>, vector<1x128xf32>, vector<1x128xf32>, vector<1x128xf32>, vector<1x128xf32>, vector<1x128xf32>, vector<1x128xf32> -> vector<8x128xf32>
    %331 = tpu.concatenate %329, %308, %287, %266, %245, %224, %203, %182 in 0 : vector<1x128xf32>, vector<1x128xf32>, vector<1x128xf32>, vector<1x128xf32>, vector<1x128xf32>, vector<1x128xf32>, vector<1x128xf32>, vector<1x128xf32> -> vector<8x128xf32>
    %c0_71 = arith.constant 0 : index
    %c0_72 = arith.constant 0 : index
    %332 = vector.load %arg12[%c0_71, %c0_72] : memref<128x128xf32, #tpu.memory_space<vmem>>, vector<128x128xf32>
    %cst_73 = arith.constant dense<0.000000e+00> : vector<8x128xf32>
    %333 = tpu.matmul %330, %332, %cst_73 {dimension_numbers = #tpu.dot_dimension_numbers<[1], [0], [0], [1], [0, 0, 1, 1], [], []>} : vector<8x128xf32>, vector<128x128xf32>, vector<8x128xf32> -> vector<8x128xf32>
    %c0_74 = arith.constant 0 : index
    %c0_75 = arith.constant 0 : index
    %334 = vector.load %arg13[%c0_74, %c0_75] : memref<128x128xf32, #tpu.memory_space<vmem>>, vector<128x128xf32>
    %cst_76 = arith.constant dense<0.000000e+00> : vector<8x128xf32>
    %335 = tpu.matmul %331, %334, %cst_76 {dimension_numbers = #tpu.dot_dimension_numbers<[1], [0], [0], [1], [0, 0, 1, 1], [], []>} : vector<8x128xf32>, vector<128x128xf32>, vector<8x128xf32> -> vector<8x128xf32>
    %336 = arith.addf %333, %335 : vector<8x128xf32>
    %c0_77 = arith.constant 0 : index
    %c0_78 = arith.constant 0 : index
    %337 = vector.load %arg14[%c0_77, %c0_78] : memref<1x128xf32, #tpu.memory_space<vmem>>, vector<1x128xf32>
    %338 = vector.broadcast %337 : vector<1x128xf32> to vector<8x128xf32>
    %339 = arith.addf %336, %338 : vector<8x128xf32>
    %c0_79 = arith.constant 0 : index
    %c0_80 = arith.constant 0 : index
    %340 = vector.load %arg15[%c0_79, %c0_80] : memref<128x128xf32, #tpu.memory_space<vmem>>, vector<128x128xf32>
    %cst_81 = arith.constant dense<0.000000e+00> : vector<8x128xf32>
    %341 = tpu.matmul %339, %340, %cst_81 {dimension_numbers = #tpu.dot_dimension_numbers<[1], [0], [0], [1], [0, 0, 1, 1], [], []>} : vector<8x128xf32>, vector<128x128xf32>, vector<8x128xf32> -> vector<8x128xf32>
    %c0_82 = arith.constant 0 : index
    %c0_83 = arith.constant 0 : index
    %342 = vector.load %arg16[%c0_82, %c0_83] : memref<1x128xf32, #tpu.memory_space<vmem>>, vector<1x128xf32>
    %343 = vector.broadcast %342 : vector<1x128xf32> to vector<8x128xf32>
    %344 = arith.addf %341, %343 : vector<8x128xf32>
    %c0_84 = arith.constant 0 : index
    %c0_85 = arith.constant 0 : index
    %345 = vector.load %arg17[%c0_84, %c0_85] : memref<8x128xf32, #tpu.memory_space<vmem>>, vector<8x128xf32>
    tpu.vector_store %arg17[%c0_84, %c0_85], %344 {strides = array<i32>} : memref<8x128xf32, #tpu.memory_space<vmem>>, vector<8x128xf32>,
    return
  }
}

</mosaic_0001>

<llo_original>
// kernel: tpu_custom_call.1
$region0: #{tpu_custom_call.1}
  #allocation0 [shape = 'u32[]', space=smem, size = 0x4, offset = 0x4, fixed_abs, tag = 'smem constant byte address 0x4 - core index']
  #allocation1 [shape = 'u32[144,128]{1,0:T(1,128)}', space=vmem, size = 0x12000, scoped, tag = 'internal scratch']
  #allocation2 [shape = 'f32[56,512]{1,0:T(8,128)}', space=vmem, size = 0x1c000, scoped, tag = 'scratch operand']
  %s0 = inlined_call_operand.vmem [shape: f32[8,128], index: 0, kind: input, shape index: {}]
  %s1 = inlined_call_operand.vmem [shape: f32[56,32], index: 1, kind: input, shape index: {}]
  %s2 = inlined_call_operand.vmem [shape: f32[56,32], index: 2, kind: input, shape index: {}]
  %s3 = inlined_call_operand.vmem [shape: f32[8,56], index: 3, kind: input, shape index: {}]
  %s4 = inlined_call_operand.vmem [shape: f32[32,512], index: 4, kind: input, shape index: {}]
  %s5 = inlined_call_operand.hbm [shape: f32[32,512], index: 5, kind: input, shape index: {}]
  %s6 = inlined_call_operand.hbm [shape: f32[128,512], index: 6, kind: input, shape index: {}]
  %s7 = inlined_call_operand.vmem [shape: f32[1,512], index: 7, kind: input, shape index: {}]
  %s8 = inlined_call_operand.hbm [shape: f32[128,512], index: 8, kind: input, shape index: {}]
  %s9 = inlined_call_operand.hbm [shape: f32[128,512], index: 9, kind: input, shape index: {}]
  %s10 = inlined_call_operand.hbm [shape: f32[128,512], index: 10, kind: input, shape index: {}]
  %s11 = inlined_call_operand.vmem [shape: f32[1,512], index: 11, kind: input, shape index: {}]
  %s12 = inlined_call_operand.hbm [shape: f32[128,128], index: 12, kind: input, shape index: {}]
  %s13 = inlined_call_operand.hbm [shape: f32[128,128], index: 13, kind: input, shape index: {}]
  %s14 = inlined_call_operand.vmem [shape: f32[1,128], index: 14, kind: input, shape index: {}]
  %s15 = inlined_call_operand.hbm [shape: f32[128,128], index: 15, kind: input, shape index: {}]
  %s16 = inlined_call_operand.vmem [shape: f32[1,128], index: 16, kind: input, shape index: {}]
  %s17 = inlined_call_operand.hbm [shape: f32[8,128], index: 17, kind: output, shape index: {}]
  %s18 = sld [smem:[#allocation0]]
  $region110: #{tpu_custom_call.1} parent=0
    _
  %s20 = ssub.s32 1, %s18
  %s21 = scalar_select 0, %s20, %s18
  $region1: #{tpu_custom_call.1} parent=0
    #allocation3 [shape = 'u8[65536]{0}', space=vmem, size = 0x10000, scoped, tag = 'input window, operand 5, single buffered']
    #allocation4 [shape = 's32[1]{0}', space=sflag, size = 0x4, scoped, tag = 'scoped memory for tpu_custom_call.1']
    #allocation5 [shape = 's32[1]{0}', space=sflag, size = 0x4, scoped, tag = 'scoped memory for tpu_custom_call.1']
    #allocation6 [shape = 'u8[262144]{0}', space=vmem, size = 0x40000, scoped, tag = 'input window, operand 6, single buffered']
    #allocation7 [shape = 's32[1]{0}', space=sflag, size = 0x4, scoped, tag = 'scoped memory for tpu_custom_call.1']
    #allocation8 [shape = 'u8[262144]{0}', space=vmem, size = 0x40000, scoped, tag = 'input window, operand 8, single buffered']
    #allocation9 [shape = 'u8[262144]{0}', space=vmem, size = 0x40000, scoped, tag = 'input window, operand 9, single buffered']
    #allocation10 [shape = 's32[1]{0}', space=sflag, size = 0x4, scoped, tag = 'scoped memory for tpu_custom_call.1']
    #allocation11 [shape = 'u8[262144]{0}', space=vmem, size = 0x40000, scoped, tag = 'input window, operand 10, single buffered']
    #allocation12 [shape = 'u8[65536]{0}', space=vmem, size = 0x10000, scoped, tag = 'input window, operand 12, single buffered']
    #allocation13 [shape = 's32[1]{0}', space=sflag, size = 0x4, scoped, tag = 'scoped memory for tpu_custom_call.1']
    #allocation14 [shape = 'u8[65536]{0}', space=vmem, size = 0x10000, scoped, tag = 'input window, operand 13, single buffered']
    #allocation15 [shape = 'u8[65536]{0}', space=vmem, size = 0x10000, scoped, tag = 'input window, operand 15, single buffered']
    #allocation16 [shape = 's32[1]{0}', space=sflag, size = 0x4, scoped, tag = 'scoped memory for tpu_custom_call.1']
    #allocation17 [shape = 'u8[4096]{0}', space=vmem, size = 0x1000, scoped, tag = 'output window, operand 0, single buffered']
    %22 = vsyncpa [#allocation4], 0
    %23 = vsyncpa [#allocation7], 0
    %24 = vsyncpa [#allocation10], 0
    %25 = vsyncpa [#allocation13], 0
    %26 = vsyncpa [#allocation16], 0
    %27 = vsyncpa [#allocation5], 0
    // Predicated region
    $region2: #{tpu_custom_call.1} parent=1 // pred_check
      _
    $region3: #{tpu_custom_call.1} parent=1 // pred_check_branch
      %29 = sbr.rel (0) target = $region5
    $region4: #{tpu_custom_call.1} parent=1 // pred_region
      _
    $region5: #{tpu_custom_call.1} parent=1 // pred_fallthru
      _
    // Predicated region
    $region6: #{tpu_custom_call.1} parent=1 // pred_check
      _
    $region7: #{tpu_custom_call.1} parent=1 // pred_check_branch
      %31 = sbr.rel (0) target = $region9
    $region8: #{tpu_custom_call.1} parent=1 // pred_region
      _
    $region9: #{tpu_custom_call.1} parent=1 // pred_fallthru
      _
    // Predicated region
    $region10: #{tpu_custom_call.1} parent=1 // pred_check
      _
    $region11: #{tpu_custom_call.1} parent=1 // pred_check_branch
      %33 = sbr.rel (0) target = $region13
    $region12: #{tpu_custom_call.1} parent=1 // pred_region
      _
    $region13: #{tpu_custom_call.1} parent=1 // pred_fallthru
      _
    // Predicated region
    $region14: #{tpu_custom_call.1} parent=1 // pred_check
      _
    $region15: #{tpu_custom_call.1} parent=1 // pred_check_branch
      %35 = sbr.rel (0) target = $region17
    $region16: #{tpu_custom_call.1} parent=1 // pred_region
      _
    $region17: #{tpu_custom_call.1} parent=1 // pred_fallthru
      _
    // Predicated region
    $region18: #{tpu_custom_call.1} parent=1 // pred_check
      _
    $region19: #{tpu_custom_call.1} parent=1 // pred_check_branch
      %37 = sbr.rel (0) target = $region21
    $region20: #{tpu_custom_call.1} parent=1 // pred_region
      _
    $region21: #{tpu_custom_call.1} parent=1 // pred_fallthru
      _
    // Predicated region
    $region22: #{tpu_custom_call.1} parent=1 // pred_check
      _
    $region23: #{tpu_custom_call.1} parent=1 // pred_check_branch
      %39 = sbr.rel (0) target = $region25
    $region24: #{tpu_custom_call.1} parent=1 // pred_region
      %s41 = ssub.s32 2048, 2048
      %42 = vsyncadd [#allocation4], %s41
      %s43 = sshll.u32 [#allocation3], 4
      %s44 = int_to_ptr.vmem [resolvable:$true] %s43
      %49 = dma.hbm_to_vmem [thread:$0]  %s5, 2048, %s44, [#allocation4], 512, 512, 32
    $region25: #{tpu_custom_call.1} parent=1 // pred_fallthru
      _
    // Predicated region
    $region26: #{tpu_custom_call.1} parent=1 // pred_check
      _
    $region27: #{tpu_custom_call.1} parent=1 // pred_check_branch
      %51 = sbr.rel (0) target = $region29
    $region28: #{tpu_custom_call.1} parent=1 // pred_region
      %s53 = ssub.s32 8192, 8192
      %54 = vsyncadd [#allocation7], %s53
      %s55 = sshll.u32 [#allocation6], 4
      %s56 = int_to_ptr.vmem [resolvable:$true] %s55
      %61 = dma.hbm_to_vmem [thread:$0]  %s6, 8192, %s56, [#allocation7], 512, 512, 32
    $region29: #{tpu_custom_call.1} parent=1 // pred_fallthru
      _
    // Predicated region
    $region30: #{tpu_custom_call.1} parent=1 // pred_check
      _
    $region31: #{tpu_custom_call.1} parent=1 // pred_check_branch
      %63 = sbr.rel (0) target = $region33
    $region32: #{tpu_custom_call.1} parent=1 // pred_region
      _
    $region33: #{tpu_custom_call.1} parent=1 // pred_fallthru
      _
    // Predicated region
    $region34: #{tpu_custom_call.1} parent=1 // pred_check
      _
    $region35: #{tpu_custom_call.1} parent=1 // pred_check_branch
      %65 = sbr.rel (0) target = $region37
    $region36: #{tpu_custom_call.1} parent=1 // pred_region
      %s67 = ssub.s32 8192, 8192
      %68 = vsyncadd [#allocation7], %s67
      %s69 = sshll.u32 [#allocation8], 4
      %s70 = int_to_ptr.vmem [resolvable:$true] %s69
      %75 = dma.hbm_to_vmem [thread:$0]  %s8, 8192, %s70, [#allocation7], 512, 512, 32
    $region37: #{tpu_custom_call.1} parent=1 // pred_fallthru
      _
    // Predicated region
    $region38: #{tpu_custom_call.1} parent=1 // pred_check
      _
    $region39: #{tpu_custom_call.1} parent=1 // pred_check_branch
      %77 = sbr.rel (0) target = $region41
    $region40: #{tpu_custom_call.1} parent=1 // pred_region
      %s79 = ssub.s32 8192, 8192
      %80 = vsyncadd [#allocation10], %s79
      %s81 = sshll.u32 [#allocation9], 4
      %s82 = int_to_ptr.vmem [resolvable:$true] %s81
      %87 = dma.hbm_to_vmem [thread:$0]  %s9, 8192, %s82, [#allocation10], 512, 512, 32
    $region41: #{tpu_custom_call.1} parent=1 // pred_fallthru
      _
    // Predicated region
    $region42: #{tpu_custom_call.1} parent=1 // pred_check
      _
    $region43: #{tpu_custom_call.1} parent=1 // pred_check_branch
      %89 = sbr.rel (0) target = $region45
    $region44: #{tpu_custom_call.1} parent=1 // pred_region
      %s91 = ssub.s32 8192, 8192
      %92 = vsyncadd [#allocation10], %s91
      %s93 = sshll.u32 [#allocation11], 4
      %s94 = int_to_ptr.vmem [resolvable:$true] %s93
      %99 = dma.hbm_to_vmem [thread:$0]  %s10, 8192, %s94, [#allocation10], 512, 512, 32
    $region45: #{tpu_custom_call.1} parent=1 // pred_fallthru
      _
    // Predicated region
    $region46: #{tpu_custom_call.1} parent=1 // pred_check
      _
    $region47: #{tpu_custom_call.1} parent=1 // pred_check_branch
      %101 = sbr.rel (0) target = $region49
    $region48: #{tpu_custom_call.1} parent=1 // pred_region
      _
    $region49: #{tpu_custom_call.1} parent=1 // pred_fallthru
      _
    // Predicated region
    $region50: #{tpu_custom_call.1} parent=1 // pred_check
      _
    $region51: #{tpu_custom_call.1} parent=1 // pred_check_branch
      %103 = sbr.rel (0) target = $region53
    $region52: #{tpu_custom_call.1} parent=1 // pred_region
      %s105 = ssub.s32 2048, 2048
      %106 = vsyncadd [#allocation13], %s105
      %s107 = sshll.u32 [#allocation12], 4
      %s108 = int_to_ptr.vmem [resolvable:$true] %s107
      %113 = dma.hbm_to_vmem [thread:$0]  %s12, 2048, %s108, [#allocation13], 128, 128, 8
    $region53: #{tpu_custom_call.1} parent=1 // pred_fallthru
      _
    // Predicated region
    $region54: #{tpu_custom_call.1} parent=1 // pred_check
      _
    $region55: #{tpu_custom_call.1} parent=1 // pred_check_branch
      %115 = sbr.rel (0) target = $region57
    $region56: #{tpu_custom_call.1} parent=1 // pred_region
      %s117 = ssub.s32 2048, 2048
      %118 = vsyncadd [#allocation13], %s117
      %s119 = sshll.u32 [#allocation14], 4
      %s120 = int_to_ptr.vmem [resolvable:$true] %s119
      %125 = dma.hbm_to_vmem [thread:$0]  %s13, 2048, %s120, [#allocation13], 128, 128, 8
    $region57: #{tpu_custom_call.1} parent=1 // pred_fallthru
      _
    // Predicated region
    $region58: #{tpu_custom_call.1} parent=1 // pred_check
      _
    $region59: #{tpu_custom_call.1} parent=1 // pred_check_branch
      %127 = sbr.rel (0) target = $region61
    $region60: #{tpu_custom_call.1} parent=1 // pred_region
      _
    $region61: #{tpu_custom_call.1} parent=1 // pred_fallthru
      _
    // Predicated region
    $region62: #{tpu_custom_call.1} parent=1 // pred_check
      _
    $region63: #{tpu_custom_call.1} parent=1 // pred_check_branch
      %129 = sbr.rel (0) target = $region65
    $region64: #{tpu_custom_call.1} parent=1 // pred_region
      %s131 = ssub.s32 2048, 2048
      %132 = vsyncadd [#allocation16], %s131
      %s133 = sshll.u32 [#allocation15], 4
      %s134 = int_to_ptr.vmem [resolvable:$true] %s133
      %139 = dma.hbm_to_vmem [thread:$0]  %s15, 2048, %s134, [#allocation16], 128, 128, 8
    $region65: #{tpu_custom_call.1} parent=1 // pred_fallthru
      _
    // Predicated region
    $region66: #{tpu_custom_call.1} parent=1 // pred_check
      _
    $region67: #{tpu_custom_call.1} parent=1 // pred_check_branch
      %141 = sbr.rel (0) target = $region69
    $region68: #{tpu_custom_call.1} parent=1 // pred_region
      _
    $region69: #{tpu_custom_call.1} parent=1 // pred_fallthru
      _
    // Predicated region
    $region70: #{tpu_custom_call.1} parent=1 // pred_check
      _
    $region71: #{tpu_custom_call.1} parent=1 // pred_check_branch
      %143 = sbr.rel (0) target = $region73
    $region72: #{tpu_custom_call.1} parent=1 // pred_region
      %144 = dma.done [#allocation4], 2048
    $region73: #{tpu_custom_call.1} parent=1 // pred_fallthru
      _
    // Predicated region
    $region74: #{tpu_custom_call.1} parent=1 // pred_check
      _
    $region75: #{tpu_custom_call.1} parent=1 // pred_check_branch
      %146 = sbr.rel (0) target = $region77
    $region76: #{tpu_custom_call.1} parent=1 // pred_region
      %147 = dma.done [#allocation7], 8192
    $region77: #{tpu_custom_call.1} parent=1 // pred_fallthru
      _
    // Predicated region
    $region78: #{tpu_custom_call.1} parent=1 // pred_check
      _
    $region79: #{tpu_custom_call.1} parent=1 // pred_check_branch
      %149 = sbr.rel (0) target = $region81
    $region80: #{tpu_custom_call.1} parent=1 // pred_region
      %150 = dma.done [#allocation7], 8192
    $region81: #{tpu_custom_call.1} parent=1 // pred_fallthru
      _
    // Predicated region
    $region82: #{tpu_custom_call.1} parent=1 // pred_check
      _
    $region83: #{tpu_custom_call.1} parent=1 // pred_check_branch
      %152 = sbr.rel (0) target = $region85
    $region84: #{tpu_custom_call.1} parent=1 // pred_region
      %153 = dma.done [#allocation10], 8192
    $region85: #{tpu_custom_call.1} parent=1 // pred_fallthru
      _
    // Predicated region
    $region86: #{tpu_custom_call.1} parent=1 // pred_check
      _
    $region87: #{tpu_custom_call.1} parent=1 // pred_check_branch
      %155 = sbr.rel (0) target = $region89
    $region88: #{tpu_custom_call.1} parent=1 // pred_region
      %156 = dma.done [#allocation10], 8192
    $region89: #{tpu_custom_call.1} parent=1 // pred_fallthru
      _
    // Predicated region
    $region90: #{tpu_custom_call.1} parent=1 // pred_check
      _
    $region91: #{tpu_custom_call.1} parent=1 // pred_check_branch
      %158 = sbr.rel (0) target = $region93
    $region92: #{tpu_custom_call.1} parent=1 // pred_region
      %159 = dma.done [#allocation13], 2048
    $region93: #{tpu_custom_call.1} parent=1 // pred_fallthru
      _
    // Predicated region
    $region94: #{tpu_custom_call.1} parent=1 // pred_check
      _
    $region95: #{tpu_custom_call.1} parent=1 // pred_check_branch
      %161 = sbr.rel (0) target = $region97
    $region96: #{tpu_custom_call.1} parent=1 // pred_region
      %162 = dma.done [#allocation13], 2048
    $region97: #{tpu_custom_call.1} parent=1 // pred_fallthru
      _
    // Predicated region
    $region98: #{tpu_custom_call.1} parent=1 // pred_check
      _
    $region99: #{tpu_custom_call.1} parent=1 // pred_check_branch
      %164 = sbr.rel (0) target = $region101
    $region100: #{tpu_custom_call.1} parent=1 // pred_region
      %165 = dma.done [#allocation16], 2048
    $region101: #{tpu_custom_call.1} parent=1 // pred_fallthru
      _
    %v166 = vld [vmem:[%s1] sm:$0xff]
    %v167 = vld [vmem:[%s1 + $0x8] sm:$0xff]
    %v168 = vld [vmem:[%s1 + $0x10] sm:$0xff]
    %v169 = vld [vmem:[%s1 + $0x18] sm:$0xff]
    %v170 = vld [vmem:[%s1 + $0x20] sm:$0xff]
    %v171 = vld [vmem:[%s1 + $0x28] sm:$0xff]
    %v172 = vld [vmem:[%s1 + $0x30] sm:$0xff]
    %v173 = vld [vmem:[%s4] sm:$0xff]
    %v174 = vld [vmem:[%s4 + $0x8] sm:$0xff]
    %v175 = vld [vmem:[%s4 + $0x10] sm:$0xff]
    %v176 = vld [vmem:[%s4 + $0x18] sm:$0xff]
    %v177 = vld [vmem:[%s4 + $0x20] sm:$0xff]
    %v178 = vld [vmem:[%s4 + $0x28] sm:$0xff]
    %v179 = vld [vmem:[%s4 + $0x30] sm:$0xff]
    %v180 = vld [vmem:[%s4 + $0x38] sm:$0xff]
    %v181 = vld [vmem:[%s4 + $0x40] sm:$0xff]
    %v182 = vld [vmem:[%s4 + $0x48] sm:$0xff]
    %v183 = vld [vmem:[%s4 + $0x50] sm:$0xff]
    %v184 = vld [vmem:[%s4 + $0x58] sm:$0xff]
    %v185 = vld [vmem:[%s4 + $0x60] sm:$0xff]
    %v186 = vld [vmem:[%s4 + $0x68] sm:$0xff]
    %v187 = vld [vmem:[%s4 + $0x70] sm:$0xff]
    %v188 = vld [vmem:[%s4 + $0x78] sm:$0xff]
    %v189 = vld [vmem:[%s2] sm:$0xff]
    %v190 = vld [vmem:[%s2 + $0x8] sm:$0xff]
    %v191 = vld [vmem:[%s2 + $0x10] sm:$0xff]
    %v192 = vld [vmem:[%s2 + $0x18] sm:$0xff]
    %v193 = vld [vmem:[%s2 + $0x20] sm:$0xff]
    %v194 = vld [vmem:[%s2 + $0x28] sm:$0xff]
    %v195 = vld [vmem:[%s2 + $0x30] sm:$0xff]
    %v196 = vld [vmem:[#allocation3] sm:$0xff]
    %v197 = vld [vmem:[#allocation3 + $0x8] sm:$0xff]
    %v198 = vld [vmem:[#allocation3 + $0x10] sm:$0xff]
    %v199 = vld [vmem:[#allocation3 + $0x18] sm:$0xff]
    %v200 = vld [vmem:[#allocation3 + $0x20] sm:$0xff]
    %v201 = vld [vmem:[#allocation3 + $0x28] sm:$0xff]
    %v202 = vld [vmem:[#allocation3 + $0x30] sm:$0xff]
    %v203 = vld [vmem:[#allocation3 + $0x38] sm:$0xff]
    %v204 = vld [vmem:[#allocation3 + $0x40] sm:$0xff]
    %v205 = vld [vmem:[#allocation3 + $0x48] sm:$0xff]
    %v206 = vld [vmem:[#allocation3 + $0x50] sm:$0xff]
    %v207 = vld [vmem:[#allocation3 + $0x58] sm:$0xff]
    %v208 = vld [vmem:[#allocation3 + $0x60] sm:$0xff]
    %v209 = vld [vmem:[#allocation3 + $0x68] sm:$0xff]
    %v210 = vld [vmem:[#allocation3 + $0x70] sm:$0xff]
    %v211 = vld [vmem:[#allocation3 + $0x78] sm:$0xff]
    %vm212 = vcmask 261120
    %v214 = vsel %vm212, %v189, 0
    %v217 = vsel %vm212, %v190, 0
    %v220 = vsel %vm212, %v191, 0
    %v223 = vsel %vm212, %v192, 0
    %v226 = vsel %vm212, %v193, 0
    %v229 = vsel %vm212, %v194, 0
    %v232 = vsel %vm212, %v195, 0
    %234 = vmatprep.subr.mxu0 %v197
    %235 = vmatpush1.msra.mxu0 %v196
    %236 = vmatprep.subr.mxu0 %v201
    %237 = vmatpush1.msra.mxu0 %v200
    %238 = vmatprep.subr.mxu0 %v205
    %239 = vmatpush1.msra.mxu0 %v204
    %240 = vmatprep.subr.mxu0 %v209
    %241 = vmatpush1.msra.mxu0 %v208
    %242 = vmatprep.subr.mxu0 0.0
    %243 = vmatpush1.msra.mxu0 0.0
    %244 = vmatprep.subr.mxu0 0.0
    %245 = vmatpush1.msra.mxu0 0.0
    %246 = vmatprep.subr.mxu0 0.0
    %247 = vmatpush1.msra.mxu0 0.0
    %248 = vmatprep.subr.mxu0 0.0
    %249 = vmatpush1.msra.mxu0 0.0
    %250 = vmatprep.subr.mxu0 0.0
    %251 = vmatpush1.msra.mxu0 0.0
    %252 = vmatprep.subr.mxu0 0.0
    %253 = vmatpush1.msra.mxu0 0.0
    %254 = vmatprep.subr.mxu0 0.0
    %255 = vmatpush1.msra.mxu0 0.0
    %256 = vmatprep.subr.mxu0 0.0
    %257 = vmatpush1.msra.mxu0 0.0
    %258 = vmatprep.subr.mxu0 0.0
    %259 = vmatpush1.msra.mxu0 0.0
    %260 = vmatprep.subr.mxu0 0.0
    %261 = vmatpush1.msra.mxu0 0.0
    %262 = vmatprep.subr.mxu0 0.0
    %263 = vmatpush1.msra.mxu0 0.0
    %264 = vmatprep.subr.mxu0 0.0
    %265 = vmatpush1.msra.mxu0 0.0
    %266 = vmatprep.subr.mxu0 0.0
    %267 = vmatpush1.msra.mxu0 0.0
    %268 = vmatprep.subr.mxu0 0.0
    %269 = vmatpush1.msra.mxu0 0.0
    %270 = vmatprep.subr.mxu0 0.0
    %271 = vmatpush1.msra.mxu0 0.0
    %272 = vmatprep.subr.mxu0 0.0
    %273 = vmatpush1.msra.mxu0 0.0
    %274 = vmatprep.subr.mxu0 0.0
    %275 = vmatpush1.msra.mxu0 0.0
    %276 = vmatprep.subr.mxu0 0.0
    %277 = vmatpush1.msra.mxu0 0.0
    %278 = vmatprep.subr.mxu0 0.0
    %279 = vmatpush1.msra.mxu0 0.0
    %280 = vmatprep.subr.mxu0 0.0
    %281 = vmatpush1.msra.mxu0 0.0
    %282 = vmatprep.subr.mxu0 0.0
    %283 = vmatpush1.msra.mxu0 0.0
    %284 = vmatprep.subr.mxu0 0.0
    %285 = vmatpush1.msra.mxu0 0.0
    %286 = vmatprep.subr.mxu0 0.0
    %287 = vmatpush1.msra.mxu0 0.0
    %288 = vmatprep.subr.mxu0 0.0
    %289 = vmatpush1.msra.mxu0 0.0
    %290 = vmatprep.subr.mxu0 0.0
    %291 = vmatpush1.msra.mxu0 0.0
    %292 = vmatprep.subr.mxu0 0.0
    %293 = vmatpush1.msra.mxu0 0.0
    %294 = vmatprep.subr.mxu0 0.0
    %295 = vmatpush1.msra.mxu0 0.0
    %296 = vmatprep.subr.mxu0 0.0
    %297 = vmatpush1.msra.mxu0 0.0
    %298 = vmatprep.mubr.f32.mxu0 0.0
    %299 = vmatmul.mubr.f32.gmra.mrb[0].mxu0 %v214
    %v300 = vpop.f32.mrb[0].mxu0
    %v301 = vadd.f32 0.0, %v300
    %v302 = vpop.f32.mrb[0].mxu0
    %v303 = vadd.f32 0.0, %v302
    %304 = vmatprep.mubr.f32.mxu0 0.0
    %305 = vmatmul.mubr.f32.gmra.mrb[0].mxu0 %v217
    %v306 = vpop.f32.mrb[0].mxu0
    %v307 = vadd.f32 0.0, %v306
    %v308 = vpop.f32.mrb[0].mxu0
    %v309 = vadd.f32 0.0, %v308
    %310 = vmatprep.mubr.f32.mxu0 0.0
    %311 = vmatmul.mubr.f32.gmra.mrb[0].mxu0 %v220
    %v312 = vpop.f32.mrb[0].mxu0
    %v313 = vadd.f32 0.0, %v312
    %v314 = vpop.f32.mrb[0].mxu0
    %v315 = vadd.f32 0.0, %v314
    %316 = vmatprep.mubr.f32.mxu0 0.0
    %317 = vmatmul.mubr.f32.gmra.mrb[0].mxu0 %v223
    %v318 = vpop.f32.mrb[0].mxu0
    %v319 = vadd.f32 0.0, %v318
    %v320 = vpop.f32.mrb[0].mxu0
    %v321 = vadd.f32 0.0, %v320
    %322 = vmatprep.mubr.f32.mxu0 0.0
    %323 = vmatmul.mubr.f32.gmra.mrb[0].mxu0 %v226
    %v324 = vpop.f32.mrb[0].mxu0
    %v325 = vadd.f32 0.0, %v324
    %v326 = vpop.f32.mrb[0].mxu0
    %v327 = vadd.f32 0.0, %v326
    %328 = vmatprep.mubr.f32.mxu0 0.0
    %329 = vmatmul.mubr.f32.gmra.mrb[0].mxu0 %v229
    %v330 = vpop.f32.mrb[0].mxu0
    %v331 = vadd.f32 0.0, %v330
    %v332 = vpop.f32.mrb[0].mxu0
    %v333 = vadd.f32 0.0, %v332
    %334 = vmatprep.mubr.f32.mxu0 0.0
    %335 = vmatmul.mubr.f32.gmra.mrb[0].mxu0 %v232
    %v336 = vpop.f32.mrb[0].mxu0
    %v337 = vadd.f32 0.0, %v336
    %v338 = vpop.f32.mrb[0].mxu0
    %v339 = vadd.f32 0.0, %v338
    %340 = vdwg.mxu0
    %341 = vmatprep.subr.mxu0 %v199
    %342 = vmatpush1.msra.mxu0 %v198
    %343 = vmatprep.subr.mxu0 %v203
    %344 = vmatpush1.msra.mxu0 %v202
    %345 = vmatprep.subr.mxu0 %v207
    %346 = vmatpush1.msra.mxu0 %v206
    %347 = vmatprep.subr.mxu0 %v211
    %348 = vmatpush1.msra.mxu0 %v210
    %349 = vmatprep.subr.mxu0 0.0
    %350 = vmatpush1.msra.mxu0 0.0
    %351 = vmatprep.subr.mxu0 0.0
    %352 = vmatpush1.msra.mxu0 0.0
    %353 = vmatprep.subr.mxu0 0.0
    %354 = vmatpush1.msra.mxu0 0.0
    %355 = vmatprep.subr.mxu0 0.0
    %356 = vmatpush1.msra.mxu0 0.0
    %357 = vmatprep.subr.mxu0 0.0
    %358 = vmatpush1.msra.mxu0 0.0
    %359 = vmatprep.subr.mxu0 0.0
    %360 = vmatpush1.msra.mxu0 0.0
    %361 = vmatprep.subr.mxu0 0.0
    %362 = vmatpush1.msra.mxu0 0.0
    %363 = vmatprep.subr.mxu0 0.0
    %364 = vmatpush1.msra.mxu0 0.0
    %365 = vmatprep.subr.mxu0 0.0
    %366 = vmatpush1.msra.mxu0 0.0
    %367 = vmatprep.subr.mxu0 0.0
    %368 = vmatpush1.msra.mxu0 0.0
    %369 = vmatprep.subr.mxu0 0.0
    %370 = vmatpush1.msra.mxu0 0.0
    %371 = vmatprep.subr.mxu0 0.0
    %372 = vmatpush1.msra.mxu0 0.0
    %373 = vmatprep.subr.mxu0 0.0
    %374 = vmatpush1.msra.mxu0 0.0
    %375 = vmatprep.subr.mxu0 0.0
    %376 = vmatpush1.msra.mxu0 0.0
    %377 = vmatprep.subr.mxu0 0.0
    %378 = vmatpush1.msra.mxu0 0.0
    %379 = vmatprep.subr.mxu0 0.0
    %380 = vmatpush1.msra.mxu0 0.0
    %381 = vmatprep.subr.mxu0 0.0
    %382 = vmatpush1.msra.mxu0 0.0
    %383 = vmatprep.subr.mxu0 0.0
    %384 = vmatpush1.msra.mxu0 0.0
    %385 = vmatprep.subr.mxu0 0.0
    %386 = vmatpush1.msra.mxu0 0.0
    %387 = vmatprep.subr.mxu0 0.0
    %388 = vmatpush1.msra.mxu0 0.0
    %389 = vmatprep.subr.mxu0 0.0
    %390 = vmatpush1.msra.mxu0 0.0
    %391 = vmatprep.subr.mxu0 0.0
    %392 = vmatpush1.msra.mxu0 0.0
    %393 = vmatprep.subr.mxu0 0.0
    %394 = vmatpush1.msra.mxu0 0.0
    %395 = vmatprep.subr.mxu0 0.0
    %396 = vmatpush1.msra.mxu0 0.0
    %397 = vmatprep.subr.mxu0 0.0
    %398 = vmatpush1.msra.mxu0 0.0
    %399 = vmatprep.subr.mxu0 0.0
    %400 = vmatpush1.msra.mxu0 0.0
    %401 = vmatprep.subr.mxu0 0.0
    %402 = vmatpush1.msra.mxu0 0.0
    %403 = vmatprep.subr.mxu0 0.0
    %404 = vmatpush1.msra.mxu0 0.0
    %405 = vmatprep.mubr.f32.mxu0 0.0
    %406 = vmatmul.mubr.f32.gmra.mrb[0].mxu0 %v214
    %v407 = vpop.f32.mrb[0].mxu0
    %v408 = vadd.f32 0.0, %v407
    %v409 = vpop.f32.mrb[0].mxu0
    %v410 = vadd.f32 0.0, %v409
    %411 = vmatprep.mubr.f32.mxu0 0.0
    %412 = vmatmul.mubr.f32.gmra.mrb[0].mxu0 %v217
    %v413 = vpop.f32.mrb[0].mxu0
    %v414 = vadd.f32 0.0, %v413
    %v415 = vpop.f32.mrb[0].mxu0
    %v416 = vadd.f32 0.0, %v415
    %417 = vmatprep.mubr.f32.mxu0 0.0
    %418 = vmatmul.mubr.f32.gmra.mrb[0].mxu0 %v220
    %v419 = vpop.f32.mrb[0].mxu0
    %v420 = vadd.f32 0.0, %v419
    %v421 = vpop.f32.mrb[0].mxu0
    %v422 = vadd.f32 0.0, %v421
    %423 = vmatprep.mubr.f32.mxu0 0.0
    %424 = vmatmul.mubr.f32.gmra.mrb[0].mxu0 %v223
    %v425 = vpop.f32.mrb[0].mxu0
    %v426 = vadd.f32 0.0, %v425
    %v427 = vpop.f32.mrb[0].mxu0
    %v428 = vadd.f32 0.0, %v427
    %429 = vmatprep.mubr.f32.mxu0 0.0
    %430 = vmatmul.mubr.f32.gmra.mrb[0].mxu0 %v226
    %v431 = vpop.f32.mrb[0].mxu0
    %v432 = vadd.f32 0.0, %v431
    %v433 = vpop.f32.mrb[0].mxu0
    %v434 = vadd.f32 0.0, %v433
    %435 = vmatprep.mubr.f32.mxu0 0.0
    %436 = vmatmul.mubr.f32.gmra.mrb[0].mxu0 %v229
    %v437 = vpop.f32.mrb[0].mxu0
    %v438 = vadd.f32 0.0, %v437
    %v439 = vpop.f32.mrb[0].mxu0
    %v440 = vadd.f32 0.0, %v439
    %441 = vmatprep.mubr.f32.mxu0 0.0
    %442 = vmatmul.mubr.f32.gmra.mrb[0].mxu0 %v232
    %v443 = vpop.f32.mrb[0].mxu0
    %v444 = vadd.f32 0.0, %v443
    %v445 = vpop.f32.mrb[0].mxu0
    %v446 = vadd.f32 0.0, %v445
    %447 = vdwg.mxu0
    %v449 = vsel %vm212, %v166, 0
    %v452 = vsel %vm212, %v167, 0
    %v455 = vsel %vm212, %v168, 0
    %v458 = vsel %vm212, %v169, 0
    %v461 = vsel %vm212, %v170, 0
    %v464 = vsel %vm212, %v171, 0
    %v467 = vsel %vm212, %v172, 0
    %469 = vmatprep.subr.mxu0 %v174
    %470 = vmatpush1.msra.mxu0 %v173
    %471 = vmatprep.subr.mxu0 %v178
    %472 = vmatpush1.msra.mxu0 %v177
    %473 = vmatprep.subr.mxu0 %v182
    %474 = vmatpush1.msra.mxu0 %v181
    %475 = vmatprep.subr.mxu0 %v186
    %476 = vmatpush1.msra.mxu0 %v185
    %477 = vmatprep.subr.mxu0 0.0
    %478 = vmatpush1.msra.mxu0 0.0
    %479 = vmatprep.subr.mxu0 0.0
    %480 = vmatpush1.msra.mxu0 0.0
    %481 = vmatprep.subr.mxu0 0.0
    %482 = vmatpush1.msra.mxu0 0.0
    %483 = vmatprep.subr.mxu0 0.0
    %484 = vmatpush1.msra.mxu0 0.0
    %485 = vmatprep.subr.mxu0 0.0
    %486 = vmatpush1.msra.mxu0 0.0
    %487 = vmatprep.subr.mxu0 0.0
    %488 = vmatpush1.msra.mxu0 0.0
    %489 = vmatprep.subr.mxu0 0.0
    %490 = vmatpush1.msra.mxu0 0.0
    %491 = vmatprep.subr.mxu0 0.0
    %492 = vmatpush1.msra.mxu0 0.0
    %493 = vmatprep.subr.mxu0 0.0
    %494 = vmatpush1.msra.mxu0 0.0
    %495 = vmatprep.subr.mxu0 0.0
    %496 = vmatpush1.msra.mxu0 0.0
    %497 = vmatprep.subr.mxu0 0.0
    %498 = vmatpush1.msra.mxu0 0.0
    %499 = vmatprep.subr.mxu0 0.0
    %500 = vmatpush1.msra.mxu0 0.0
    %501 = vmatprep.subr.mxu0 0.0
    %502 = vmatpush1.msra.mxu0 0.0
    %503 = vmatprep.subr.mxu0 0.0
    %504 = vmatpush1.msra.mxu0 0.0
    %505 = vmatprep.subr.mxu0 0.0
    %506 = vmatpush1.msra.mxu0 0.0
    %507 = vmatprep.subr.mxu0 0.0
    %508 = vmatpush1.msra.mxu0 0.0
    %509 = vmatprep.subr.mxu0 0.0
    %510 = vmatpush1.msra.mxu0 0.0
    %511 = vmatprep.subr.mxu0 0.0
    %512 = vmatpush1.msra.mxu0 0.0
    %513 = vmatprep.subr.mxu0 0.0
    %514 = vmatpush1.msra.mxu0 0.0
    %515 = vmatprep.subr.mxu0 0.0
    %516 = vmatpush1.msra.mxu0 0.0
    %517 = vmatprep.subr.mxu0 0.0
    %518 = vmatpush1.msra.mxu0 0.0
    %519 = vmatprep.subr.mxu0 0.0
    %520 = vmatpush1.msra.mxu0 0.0
    %521 = vmatprep.subr.mxu0 0.0
    %522 = vmatpush1.msra.mxu0 0.0
    %523 = vmatprep.subr.mxu0 0.0
    %524 = vmatpush1.msra.mxu0 0.0
    %525 = vmatprep.subr.mxu0 0.0
    %526 = vmatpush1.msra.mxu0 0.0
    %527 = vmatprep.subr.mxu0 0.0
    %528 = vmatpush1.msra.mxu0 0.0
    %529 = vmatprep.subr.mxu0 0.0
    %530 = vmatpush1.msra.mxu0 0.0
    %531 = vmatprep.subr.mxu0 0.0
    %532 = vmatpush1.msra.mxu0 0.0
    %533 = vmatprep.mubr.f32.mxu0 0.0
    %534 = vmatmul.mubr.f32.gmra.mrb[0].mxu0 %v449
    %v535 = vpop.f32.mrb[0].mxu0
    %v536 = vadd.f32 %v301, %v535
    %v537 = vpop.f32.mrb[0].mxu0
    %v538 = vadd.f32 %v303, %v537
    %539 = vmatprep.mubr.f32.mxu0 0.0
    %540 = vmatmul.mubr.f32.gmra.mrb[0].mxu0 %v452
    %v541 = vpop.f32.mrb[0].mxu0
    %v542 = vadd.f32 %v307, %v541
    %v543 = vpop.f32.mrb[0].mxu0
    %v544 = vadd.f32 %v309, %v543
    %545 = vmatprep.mubr.f32.mxu0 0.0
    %546 = vmatmul.mubr.f32.gmra.mrb[0].mxu0 %v455
    %v547 = vpop.f32.mrb[0].mxu0
    %v548 = vadd.f32 %v313, %v547
    %v549 = vpop.f32.mrb[0].mxu0
    %v550 = vadd.f32 %v315, %v549
    %551 = vmatprep.mubr.f32.mxu0 0.0
    %552 = vmatmul.mubr.f32.gmra.mrb[0].mxu0 %v458
    %v553 = vpop.f32.mrb[0].mxu0
    %v554 = vadd.f32 %v319, %v553
    %v555 = vpop.f32.mrb[0].mxu0
    %v556 = vadd.f32 %v321, %v555
    %557 = vmatprep.mubr.f32.mxu0 0.0
    %558 = vmatmul.mubr.f32.gmra.mrb[0].mxu0 %v461
    %v559 = vpop.f32.mrb[0].mxu0
    %v560 = vadd.f32 %v325, %v559
    %v561 = vpop.f32.mrb[0].mxu0
    %v562 = vadd.f32 %v327, %v561
    %563 = vmatprep.mubr.f32.mxu0 0.0
    %564 = vmatmul.mubr.f32.gmra.mrb[0].mxu0 %v464
    %v565 = vpop.f32.mrb[0].mxu0
    %v566 = vadd.f32 %v331, %v565
    %v567 = vpop.f32.mrb[0].mxu0
    %v568 = vadd.f32 %v333, %v567
    %569 = vmatprep.mubr.f32.mxu0 0.0
    %570 = vmatmul.mubr.f32.gmra.mrb[0].mxu0 %v467
    %v571 = vpop.f32.mrb[0].mxu0
    %v572 = vadd.f32 %v337, %v571
    %v573 = vpop.f32.mrb[0].mxu0
    %v574 = vadd.f32 %v339, %v573
    %575 = vdwg.mxu0
    %576 = vmatprep.subr.mxu0 %v176
    %577 = vmatpush1.msra.mxu0 %v175
    %578 = vmatprep.subr.mxu0 %v180
    %579 = vmatpush1.msra.mxu0 %v179
    %580 = vmatprep.subr.mxu0 %v184
    %581 = vmatpush1.msra.mxu0 %v183
    %582 = vmatprep.subr.mxu0 %v188
    %583 = vmatpush1.msra.mxu0 %v187
    %584 = vmatprep.subr.mxu0 0.0
    %585 = vmatpush1.msra.mxu0 0.0
    %586 = vmatprep.subr.mxu0 0.0
    %587 = vmatpush1.msra.mxu0 0.0
    %588 = vmatprep.subr.mxu0 0.0
    %589 = vmatpush1.msra.mxu0 0.0
    %590 = vmatprep.subr.mxu0 0.0
    %591 = vmatpush1.msra.mxu0 0.0
    %592 = vmatprep.subr.mxu0 0.0
    %593 = vmatpush1.msra.mxu0 0.0
    %594 = vmatprep.subr.mxu0 0.0
    %595 = vmatpush1.msra.mxu0 0.0
    %596 = vmatprep.subr.mxu0 0.0
    %597 = vmatpush1.msra.mxu0 0.0
    %598 = vmatprep.subr.mxu0 0.0
    %599 = vmatpush1.msra.mxu0 0.0
    %600 = vmatprep.subr.mxu0 0.0
    %601 = vmatpush1.msra.mxu0 0.0
    %602 = vmatprep.subr.mxu0 0.0
    %603 = vmatpush1.msra.mxu0 0.0
    %604 = vmatprep.subr.mxu0 0.0
    %605 = vmatpush1.msra.mxu0 0.0
    %606 = vmatprep.subr.mxu0 0.0
    %607 = vmatpush1.msra.mxu0 0.0
    %608 = vmatprep.subr.mxu0 0.0
    %609 = vmatpush1.msra.mxu0 0.0
    %610 = vmatprep.subr.mxu0 0.0
    %611 = vmatpush1.msra.mxu0 0.0
    %612 = vmatprep.subr.mxu0 0.0
    %613 = vmatpush1.msra.mxu0 0.0
    %614 = vmatprep.subr.mxu0 0.0
    %615 = vmatpush1.msra.mxu0 0.0
    %616 = vmatprep.subr.mxu0 0.0
    %617 = vmatpush1.msra.mxu0 0.0
    %618 = vmatprep.subr.mxu0 0.0
    %619 = vmatpush1.msra.mxu0 0.0
    %620 = vmatprep.subr.mxu0 0.0
    %621 = vmatpush1.msra.mxu0 0.0
    %622 = vmatprep.subr.mxu0 0.0
    %623 = vmatpush1.msra.mxu0 0.0
    %624 = vmatprep.subr.mxu0 0.0
    %625 = vmatpush1.msra.mxu0 0.0
    %626 = vmatprep.subr.mxu0 0.0
    %627 = vmatpush1.msra.mxu0 0.0
    %628 = vmatprep.subr.mxu0 0.0
    %629 = vmatpush1.msra.mxu0 0.0
    %630 = vmatprep.subr.mxu0 0.0
    %631 = vmatpush1.msra.mxu0 0.0
    %632 = vmatprep.subr.mxu0 0.0
    %633 = vmatpush1.msra.mxu0 0.0
    %634 = vmatprep.subr.mxu0 0.0
    %635 = vmatpush1.msra.mxu0 0.0
    %636 = vmatprep.subr.mxu0 0.0
    %637 = vmatpush1.msra.mxu0 0.0
    %638 = vmatprep.subr.mxu0 0.0
    %639 = vmatpush1.msra.mxu0 0.0
    %640 = vmatprep.mubr.f32.mxu0 0.0
    %641 = vmatmul.mubr.f32.gmra.mrb[0].mxu0 %v449
    %v642 = vpop.f32.mrb[0].mxu0
    %v643 = vadd.f32 %v408, %v642
    %v644 = vpop.f32.mrb[0].mxu0
    %v645 = vadd.f32 %v410, %v644
    %646 = vmatprep.mubr.f32.mxu0 0.0
    %647 = vmatmul.mubr.f32.gmra.mrb[0].mxu0 %v452
    %v648 = vpop.f32.mrb[0].mxu0
    %v649 = vadd.f32 %v414, %v648
    %v650 = vpop.f32.mrb[0].mxu0
    %v651 = vadd.f32 %v416, %v650
    %652 = vmatprep.mubr.f32.mxu0 0.0
    %653 = vmatmul.mubr.f32.gmra.mrb[0].mxu0 %v455
    %v654 = vpop.f32.mrb[0].mxu0
    %v655 = vadd.f32 %v420, %v654
    %v656 = vpop.f32.mrb[0].mxu0
    %v657 = vadd.f32 %v422, %v656
    %658 = vmatprep.mubr.f32.mxu0 0.0
    %659 = vmatmul.mubr.f32.gmra.mrb[0].mxu0 %v458
    %v660 = vpop.f32.mrb[0].mxu0
    %v661 = vadd.f32 %v426, %v660
    %v662 = vpop.f32.mrb[0].mxu0
    %v663 = vadd.f32 %v428, %v662
    %664 = vmatprep.mubr.f32.mxu0 0.0
    %665 = vmatmul.mubr.f32.gmra.mrb[0].mxu0 %v461
    %v666 = vpop.f32.mrb[0].mxu0
    %v667 = vadd.f32 %v432, %v666
    %v668 = vpop.f32.mrb[0].mxu0
    %v669 = vadd.f32 %v434, %v668
    %670 = vmatprep.mubr.f32.mxu0 0.0
    %671 = vmatmul.mubr.f32.gmra.mrb[0].mxu0 %v464
    %v672 = vpop.f32.mrb[0].mxu0
    %v673 = vadd.f32 %v438, %v672
    %v674 = vpop.f32.mrb[0].mxu0
    %v675 = vadd.f32 %v440, %v674
    %676 = vmatprep.mubr.f32.mxu0 0.0
    %677 = vmatmul.mubr.f32.gmra.mrb[0].mxu0 %v467
    %v678 = vpop.f32.mrb[0].mxu0
    %v679 = vadd.f32 %v444, %v678
    %v680 = vpop.f32.mrb[0].mxu0
    %v681 = vadd.f32 %v446, %v680
    %682 = vdwg.mxu0
    %v683 = vld [vmem:[%s7] sm:$0xf]
    %v685 = vlaneseq
    %v686 = vshrl.u32 %v685, 7
    %v687 = vsub.s32 0, %v686
    %v688 = vrot.slane %v683, %v687
    %v689 = vlaneseq
    %v690 = vshrl.u32 %v689, 7
    %v691 = vsub.s32 1, %v690
    %v692 = vrot.slane %v683, %v691
    %v693 = vlaneseq
    %v694 = vshrl.u32 %v693, 7
    %v695 = vsub.s32 2, %v694
    %v696 = vrot.slane %v683, %v695
    %v697 = vlaneseq
    %v698 = vshrl.u32 %v697, 7
    %v699 = vsub.s32 3, %v698
    %v700 = vrot.slane %v683, %v699
    %v705 = vadd.f32 %v536, %v688
    %v706 = vadd.f32 %v538, %v692
    %v707 = vadd.f32 %v643, %v696
    %v708 = vadd.f32 %v645, %v700
    %v709 = vadd.f32 %v542, %v688
    %v710 = vadd.f32 %v544, %v692
    %v711 = vadd.f32 %v649, %v696
    %v712 = vadd.f32 %v651, %v700
    %v713 = vadd.f32 %v548, %v688
    %v714 = vadd.f32 %v550, %v692
    %v715 = vadd.f32 %v655, %v696
    %v716 = vadd.f32 %v657, %v700
    %v717 = vadd.f32 %v554, %v688
    %v718 = vadd.f32 %v556, %v692
    %v719 = vadd.f32 %v661, %v696
    %v720 = vadd.f32 %v663, %v700
    %v721 = vadd.f32 %v560, %v688
    %v722 = vadd.f32 %v562, %v692
    %v723 = vadd.f32 %v667, %v696
    %v724 = vadd.f32 %v669, %v700
    %v725 = vadd.f32 %v566, %v688
    %v726 = vadd.f32 %v568, %v692
    %v727 = vadd.f32 %v673, %v696
    %v728 = vadd.f32 %v675, %v700
    %v729 = vadd.f32 %v572, %v688
    %v730 = vadd.f32 %v574, %v692
    %v731 = vadd.f32 %v679, %v696
    %v732 = vadd.f32 %v681, %v700
    %733 = vst [vmem:[#allocation2] sm:$0xff] %v705
    %734 = vst [vmem:[#allocation2 + $0x8] sm:$0xff] %v706
    %735 = vst [vmem:[#allocation2 + $0x10] sm:$0xff] %v707
    %736 = vst [vmem:[#allocation2 + $0x18] sm:$0xff] %v708
    %737 = vst [vmem:[#allocation2 + $0x20] sm:$0xff] %v709
    %738 = vst [vmem:[#allocation2 + $0x28] sm:$0xff] %v710
    %739 = vst [vmem:[#allocation2 + $0x30] sm:$0xff] %v711
    %740 = vst [vmem:[#allocation2 + $0x38] sm:$0xff] %v712
    %741 = vst [vmem:[#allocation2 + $0x40] sm:$0xff] %v713
    %742 = vst [vmem:[#allocation2 + $0x48] sm:$0xff] %v714
    %743 = vst [vmem:[#allocation2 + $0x50] sm:$0xff] %v715
    %744 = vst [vmem:[#allocation2 + $0x58] sm:$0xff] %v716
    %745 = vst [vmem:[#allocation2 + $0x60] sm:$0xff] %v717
    %746 = vst [vmem:[#allocation2 + $0x68] sm:$0xff] %v718
    %747 = vst [vmem:[#allocation2 + $0x70] sm:$0xff] %v719
    %748 = vst [vmem:[#allocation2 + $0x78] sm:$0xff] %v720
    %749 = vst [vmem:[#allocation2 + $0x80] sm:$0xff] %v721
    %750 = vst [vmem:[#allocation2 + $0x88] sm:$0xff] %v722
    %751 = vst [vmem:[#allocation2 + $0x90] sm:$0xff] %v723
    %752 = vst [vmem:[#allocation2 + $0x98] sm:$0xff] %v724
    %753 = vst [vmem:[#allocation2 + $0xa0] sm:$0xff] %v725
    %754 = vst [vmem:[#allocation2 + $0xa8] sm:$0xff] %v726
    %755 = vst [vmem:[#allocation2 + $0xb0] sm:$0xff] %v727
    %756 = vst [vmem:[#allocation2 + $0xb8] sm:$0xff] %v728
    %757 = vst [vmem:[#allocation2 + $0xc0] sm:$0xff] %v729
    %758 = vst [vmem:[#allocation2 + $0xc8] sm:$0xff] %v730
    %759 = vst [vmem:[#allocation2 + $0xd0] sm:$0xff] %v731
    %760 = vst [vmem:[#allocation2 + $0xd8] sm:$0xff] %v732
    %v761 = vld [vmem:[#allocation6] sm:$0xff]
    %v762 = vld [vmem:[#allocation6 + $0x8] sm:$0xff]
    %v763 = vld [vmem:[#allocation6 + $0x10] sm:$0xff]
    %v764 = vld [vmem:[#allocation6 + $0x18] sm:$0xff]
    %v765 = vld [vmem:[#allocation6 + $0x20] sm:$0xff]
    %v766 = vld [vmem:[#allocation6 + $0x28] sm:$0xff]
    %v767 = vld [vmem:[#allocation6 + $0x30] sm:$0xff]
    %v768 = vld [vmem:[#allocation6 + $0x38] sm:$0xff]
    %v769 = vld [vmem:[#allocation6 + $0x40] sm:$0xff]
    %v770 = vld [vmem:[#allocation6 + $0x48] sm:$0xff]
    %v771 = vld [vmem:[#allocation6 + $0x50] sm:$0xff]
    %v772 = vld [vmem:[#allocation6 + $0x58] sm:$0xff]
    %v773 = vld [vmem:[#allocation6 + $0x60] sm:$0xff]
    %v774 = vld [vmem:[#allocation6 + $0x68] sm:$0xff]
    %v775 = vld [vmem:[#allocation6 + $0x70] sm:$0xff]
    %v776 = vld [vmem:[#allocation6 + $0x78] sm:$0xff]
    %v777 = vld [vmem:[#allocation6 + $0x80] sm:$0xff]
    %v778 = vld [vmem:[#allocation6 + $0x88] sm:$0xff]
    %v779 = vld [vmem:[#allocation6 + $0x90] sm:$0xff]
    %v780 = vld [vmem:[#allocation6 + $0x98] sm:$0xff]
    %v781 = vld [vmem:[#allocation6 + $0xa0] sm:$0xff]
    %v782 = vld [vmem:[#allocation6 + $0xa8] sm:$0xff]
    %v783 = vld [vmem:[#allocation6 + $0xb0] sm:$0xff]
    %v784 = vld [vmem:[#allocation6 + $0xb8] sm:$0xff]
    %v785 = vld [vmem:[#allocation6 + $0xc0] sm:$0xff]
    %v786 = vld [vmem:[#allocation6 + $0xc8] sm:$0xff]
    %v787 = vld [vmem:[#allocation6 + $0xd0] sm:$0xff]
    %v788 = vld [vmem:[#allocation6 + $0xd8] sm:$0xff]
    %v789 = vld [vmem:[#allocation6 + $0xe0] sm:$0xff]
    %v790 = vld [vmem:[#allocation6 + $0xe8] sm:$0xff]
    %v791 = vld [vmem:[#allocation6 + $0xf0] sm:$0xff]
    %v792 = vld [vmem:[#allocation6 + $0xf8] sm:$0xff]
    %v793 = vld [vmem:[#allocation6 + $0x100] sm:$0xff]
    %v794 = vld [vmem:[#allocation6 + $0x108] sm:$0xff]
    %v795 = vld [vmem:[#allocation6 + $0x110] sm:$0xff]
    %v796 = vld [vmem:[#allocation6 + $0x118] sm:$0xff]
    %v797 = vld [vmem:[#allocation6 + $0x120] sm:$0xff]
    %v798 = vld [vmem:[#allocation6 + $0x128] sm:$0xff]
    %v799 = vld [vmem:[#allocation6 + $0x130] sm:$0xff]
    %v800 = vld [vmem:[#allocation6 + $0x138] sm:$0xff]
    %v801 = vld [vmem:[#allocation6 + $0x140] sm:$0xff]
    %v802 = vld [vmem:[#allocation6 + $0x148] sm:$0xff]
    %v803 = vld [vmem:[#allocation6 + $0x150] sm:$0xff]
    %v804 = vld [vmem:[#allocation6 + $0x158] sm:$0xff]
    %v805 = vld [vmem:[#allocation6 + $0x160] sm:$0xff]
    %v806 = vld [vmem:[#allocation6 + $0x168] sm:$0xff]
    %v807 = vld [vmem:[#allocation6 + $0x170] sm:$0xff]
    %v808 = vld [vmem:[#allocation6 + $0x178] sm:$0xff]
    %v809 = vld [vmem:[#allocation6 + $0x180] sm:$0xff]
    %v810 = vld [vmem:[#allocation6 + $0x188] sm:$0xff]
    %v811 = vld [vmem:[#allocation6 + $0x190] sm:$0xff]
    %v812 = vld [vmem:[#allocation6 + $0x198] sm:$0xff]
    %v813 = vld [vmem:[#allocation6 + $0x1a0] sm:$0xff]
    %v814 = vld [vmem:[#allocation6 + $0x1a8] sm:$0xff]
    %v815 = vld [vmem:[#allocation6 + $0x1b0] sm:$0xff]
    %v816 = vld [vmem:[#allocation6 + $0x1b8] sm:$0xff]
    %v817 = vld [vmem:[#allocation6 + $0x1c0] sm:$0xff]
    %v818 = vld [vmem:[#allocation6 + $0x1c8] sm:$0xff]
    %v819 = vld [vmem:[#allocation6 + $0x1d0] sm:$0xff]
    %v820 = vld [vmem:[#allocation6 + $0x1d8] sm:$0xff]
    %v821 = vld [vmem:[#allocation6 + $0x1e0] sm:$0xff]
    %v822 = vld [vmem:[#allocation6 + $0x1e8] sm:$0xff]
    %v823 = vld [vmem:[#allocation6 + $0x1f0] sm:$0xff]
    %v824 = vld [vmem:[#allocation6 + $0x1f8] sm:$0xff]
    %v825 = vld [vmem:[#allocation2] sm:$0xff]
    %v826 = vld [vmem:[#allocation2 + $0x8] sm:$0xff]
    %v827 = vld [vmem:[#allocation2 + $0x10] sm:$0xff]
    %v828 = vld [vmem:[#allocation2 + $0x18] sm:$0xff]
    %829 = vmatprep.subr.mxu0 %v762
    %830 = vmatpush1.msra.mxu0 %v761
    %831 = vmatprep.subr.mxu0 %v766
    %832 = vmatpush1.msra.mxu0 %v765
    %833 = vmatprep.subr.mxu0 %v770
    %834 = vmatpush1.msra.mxu0 %v769
    %835 = vmatprep.subr.mxu0 %v774
    %836 = vmatpush1.msra.mxu0 %v773
    %837 = vmatprep.subr.mxu0 %v778
    %838 = vmatpush1.msra.mxu0 %v777
    %839 = vmatprep.subr.mxu0 %v782
    %840 = vmatpush1.msra.mxu0 %v781
    %841 = vmatprep.subr.mxu0 %v786
    %842 = vmatpush1.msra.mxu0 %v785
    %843 = vmatprep.subr.mxu0 %v790
    %844 = vmatpush1.msra.mxu0 %v789
    %845 = vmatprep.subr.mxu0 %v794
    %846 = vmatpush1.msra.mxu0 %v793
    %847 = vmatprep.subr.mxu0 %v798
    %848 = vmatpush1.msra.mxu0 %v797
    %849 = vmatprep.subr.mxu0 %v802
    %850 = vmatpush1.msra.mxu0 %v801
    %851 = vmatprep.subr.mxu0 %v806
    %852 = vmatpush1.msra.mxu0 %v805
    %853 = vmatprep.subr.mxu0 %v810
    %854 = vmatpush1.msra.mxu0 %v809
    %855 = vmatprep.subr.mxu0 %v814
    %856 = vmatpush1.msra.mxu0 %v813
    %857 = vmatprep.subr.mxu0 %v818
    %858 = vmatpush1.msra.mxu0 %v817
    %859 = vmatprep.subr.mxu0 %v822
    %860 = vmatpush1.msra.mxu0 %v821
    %861 = vmatprep.subr.mxu0 0.0
    %862 = vmatpush1.msra.mxu0 0.0
    %863 = vmatprep.subr.mxu0 0.0
    %864 = vmatpush1.msra.mxu0 0.0
    %865 = vmatprep.subr.mxu0 0.0
    %866 = vmatpush1.msra.mxu0 0.0
    %867 = vmatprep.subr.mxu0 0.0
    %868 = vmatpush1.msra.mxu0 0.0
    %869 = vmatprep.subr.mxu0 0.0
    %870 = vmatpush1.msra.mxu0 0.0
    %871 = vmatprep.subr.mxu0 0.0
    %872 = vmatpush1.msra.mxu0 0.0
    %873 = vmatprep.subr.mxu0 0.0
    %874 = vmatpush1.msra.mxu0 0.0
    %875 = vmatprep.subr.mxu0 0.0
    %876 = vmatpush1.msra.mxu0 0.0
    %877 = vmatprep.subr.mxu0 0.0
    %878 = vmatpush1.msra.mxu0 0.0
    %879 = vmatprep.subr.mxu0 0.0
    %880 = vmatpush1.msra.mxu0 0.0
    %881 = vmatprep.subr.mxu0 0.0
    %882 = vmatpush1.msra.mxu0 0.0
    %883 = vmatprep.subr.mxu0 0.0
    %884 = vmatpush1.msra.mxu0 0.0
    %885 = vmatprep.subr.mxu0 0.0
    %886 = vmatpush1.msra.mxu0 0.0
    %887 = vmatprep.subr.mxu0 0.0
    %888 = vmatpush1.msra.mxu0 0.0
    %889 = vmatprep.subr.mxu0 0.0
    %890 = vmatpush1.msra.mxu0 0.0
    %891 = vmatprep.subr.mxu0 0.0
    %892 = vmatpush1.msra.mxu0 0.0
    %893 = vmatprep.mubr.f32.mxu0 0.0
    %894 = vmatmul.mubr.f32.gmra.mrb[0].mxu0 0.0
    %v895 = vpop.f32.mrb[0].mxu0
    %v896 = vadd.f32 0.0, %v895
    %v897 = vpop.f32.mrb[0].mxu0
    %v898 = vadd.f32 0.0, %v897
    %899 = vdwg.mxu0
    %900 = vmatprep.subr.mxu0 %v764
    %901 = vmatpush1.msra.mxu0 %v763
    %902 = vmatprep.subr.mxu0 %v768
    %903 = vmatpush1.msra.mxu0 %v767
    %904 = vmatprep.subr.mxu0 %v772
    %905 = vmatpush1.msra.mxu0 %v771
    %906 = vmatprep.subr.mxu0 %v776
    %907 = vmatpush1.msra.mxu0 %v775
    %908 = vmatprep.subr.mxu0 %v780
    %909 = vmatpush1.msra.mxu0 %v779
    %910 = vmatprep.subr.mxu0 %v784
    %911 = vmatpush1.msra.mxu0 %v783
    %912 = vmatprep.subr.mxu0 %v788
    %913 = vmatpush1.msra.mxu0 %v787
    %914 = vmatprep.subr.mxu0 %v792
    %915 = vmatpush1.msra.mxu0 %v791
    %916 = vmatprep.subr.mxu0 %v796
    %917 = vmatpush1.msra.mxu0 %v795
    %918 = vmatprep.subr.mxu0 %v800
    %919 = vmatpush1.msra.mxu0 %v799
    %920 = vmatprep.subr.mxu0 %v804
    %921 = vmatpush1.msra.mxu0 %v803
    %922 = vmatprep.subr.mxu0 %v808
    %923 = vmatpush1.msra.mxu0 %v807
    %924 = vmatprep.subr.mxu0 %v812
    %925 = vmatpush1.msra.mxu0 %v811
    %926 = vmatprep.subr.mxu0 %v816
    %927 = vmatpush1.msra.mxu0 %v815
    %928 = vmatprep.subr.mxu0 %v820
    %929 = vmatpush1.msra.mxu0 %v819
    %930 = vmatprep.subr.mxu0 %v824
    %931 = vmatpush1.msra.mxu0 %v823
    %932 = vmatprep.subr.mxu0 0.0
    %933 = vmatpush1.msra.mxu0 0.0
    %934 = vmatprep.subr.mxu0 0.0
    %935 = vmatpush1.msra.mxu0 0.0
    %936 = vmatprep.subr.mxu0 0.0
    %937 = vmatpush1.msra.mxu0 0.0
    %938 = vmatprep.subr.mxu0 0.0
    %939 = vmatpush1.msra.mxu0 0.0
    %940 = vmatprep.subr.mxu0 0.0
    %941 = vmatpush1.msra.mxu0 0.0
    %942 = vmatprep.subr.mxu0 0.0
    %943 = vmatpush1.msra.mxu0 0.0
    %944 = vmatprep.subr.mxu0 0.0
    %945 = vmatpush1.msra.mxu0 0.0
    %946 = vmatprep.subr.mxu0 0.0
    %947 = vmatpush1.msra.mxu0 0.0
    %948 = vmatprep.subr.mxu0 0.0
    %949 = vmatpush1.msra.mxu0 0.0
    %950 = vmatprep.subr.mxu0 0.0
    %951 = vmatpush1.msra.mxu0 0.0
    %952 = vmatprep.subr.mxu0 0.0
    %953 = vmatpush1.msra.mxu0 0.0
    %954 = vmatprep.subr.mxu0 0.0
    %955 = vmatpush1.msra.mxu0 0.0
    %956 = vmatprep.subr.mxu0 0.0
    %957 = vmatpush1.msra.mxu0 0.0
    %958 = vmatprep.subr.mxu0 0.0
    %959 = vmatpush1.msra.mxu0 0.0
    %960 = vmatprep.subr.mxu0 0.0
    %961 = vmatpush1.msra.mxu0 0.0
    %962 = vmatprep.subr.mxu0 0.0
    %963 = vmatpush1.msra.mxu0 0.0
    %964 = vmatprep.mubr.f32.mxu0 0.0
    %965 = vmatmul.mubr.f32.gmra.mrb[0].mxu0 0.0
    %v966 = vpop.f32.mrb[0].mxu0
    %v967 = vadd.f32 0.0, %v966
    %v968 = vpop.f32.mrb[0].mxu0
    %v969 = vadd.f32 0.0, %v968
    %970 = vdwg.mxu0
    %v971 = vadd.f32 %v825, %v896
    %v972 = vadd.f32 %v826, %v898
    %v973 = vadd.f32 %v827, %v967
    %v974 = vadd.f32 %v828, %v969
    %v975 = vxor.u32 %v971, 2147483648
    %v976 = vxor.u32 %v972, 2147483648
    %v977 = vxor.u32 %v973, 2147483648
    %v978 = vmul.f32 %v975, 1.442695
    %v979 = vpow.pop %v978
    %v980 = vmul.f32 %v976, 1.442695
    %v981 = vpow.pop %v980
    %v982 = vmul.f32 %v977, 1.442695
    %v983 = vpow.pop %v982
    %v984 = vadd.f32 %v979, 1.0
    %v985 = vadd.f32 %v981, 1.0
    %v986 = vadd.f32 %v983, 1.0
    %v987 = vrcp.pop %v984
    %v988 = vmul.f32 1.0, %v987
    %v989 = vrcp.pop %v985
    %v990 = vmul.f32 1.0, %v989
    %v991 = vrcp.pop %v986
    %v992 = vmul.f32 1.0, %v991
    %v993 = vtanh.pop %v974
    %v994 = vmul.f32 %v990, 0.0
    %v995 = vmul.f32 %v988, %v993
    %v996 = vadd.f32 %v994, %v995
    %v997 = vtanh.pop %v996
    %v998 = vmul.f32 %v992, %v997
    %v999 = vld [vmem:[#allocation2 + $0x20] sm:$0xff]
    %v1000 = vld [vmem:[#allocation2 + $0x28] sm:$0xff]
    %v1001 = vld [vmem:[#allocation2 + $0x30] sm:$0xff]
    %v1002 = vld [vmem:[#allocation2 + $0x38] sm:$0xff]
    %1003 = vmatprep.subr.mxu0 %v762
    %1004 = vmatpush1.msra.mxu0 %v761
    %1005 = vmatprep.subr.mxu0 %v766
    %1006 = vmatpush1.msra.mxu0 %v765
    %1007 = vmatprep.subr.mxu0 %v770
    %1008 = vmatpush1.msra.mxu0 %v769
    %1009 = vmatprep.subr.mxu0 %v774
    %1010 = vmatpush1.msra.mxu0 %v773
    %1011 = vmatprep.subr.mxu0 %v778
    %1012 = vmatpush1.msra.mxu0 %v777
    %1013 = vmatprep.subr.mxu0 %v782
    %1014 = vmatpush1.msra.mxu0 %v781
    %1015 = vmatprep.subr.mxu0 %v786
    %1016 = vmatpush1.msra.mxu0 %v785
    %1017 = vmatprep.subr.mxu0 %v790
    %1018 = vmatpush1.msra.mxu0 %v789
    %1019 = vmatprep.subr.mxu0 %v794
    %1020 = vmatpush1.msra.mxu0 %v793
    %1021 = vmatprep.subr.mxu0 %v798
    %1022 = vmatpush1.msra.mxu0 %v797
    %1023 = vmatprep.subr.mxu0 %v802
    %1024 = vmatpush1.msra.mxu0 %v801
    %1025 = vmatprep.subr.mxu0 %v806
    %1026 = vmatpush1.msra.mxu0 %v805
    %1027 = vmatprep.subr.mxu0 %v810
    %1028 = vmatpush1.msra.mxu0 %v809
    %1029 = vmatprep.subr.mxu0 %v814
    %1030 = vmatpush1.msra.mxu0 %v813
    %1031 = vmatprep.subr.mxu0 %v818
    %1032 = vmatpush1.msra.mxu0 %v817
    %1033 = vmatprep.subr.mxu0 %v822
    %1034 = vmatpush1.msra.mxu0 %v821
    %1035 = vmatprep.subr.mxu0 0.0
    %1036 = vmatpush1.msra.mxu0 0.0
    %1037 = vmatprep.subr.mxu0 0.0
    %1038 = vmatpush1.msra.mxu0 0.0
    %1039 = vmatprep.subr.mxu0 0.0
    %1040 = vmatpush1.msra.mxu0 0.0
    %1041 = vmatprep.subr.mxu0 0.0
    %1042 = vmatpush1.msra.mxu0 0.0
    %1043 = vmatprep.subr.mxu0 0.0
    %1044 = vmatpush1.msra.mxu0 0.0
    %1045 = vmatprep.subr.mxu0 0.0
    %1046 = vmatpush1.msra.mxu0 0.0
    %1047 = vmatprep.subr.mxu0 0.0
    %1048 = vmatpush1.msra.mxu0 0.0
    %1049 = vmatprep.subr.mxu0 0.0
    %1050 = vmatpush1.msra.mxu0 0.0
    %1051 = vmatprep.subr.mxu0 0.0
    %1052 = vmatpush1.msra.mxu0 0.0
    %1053 = vmatprep.subr.mxu0 0.0
    %1054 = vmatpush1.msra.mxu0 0.0
    %1055 = vmatprep.subr.mxu0 0.0
    %1056 = vmatpush1.msra.mxu0 0.0
    %1057 = vmatprep.subr.mxu0 0.0
    %1058 = vmatpush1.msra.mxu0 0.0
    %1059 = vmatprep.subr.mxu0 0.0
    %1060 = vmatpush1.msra.mxu0 0.0
    %1061 = vmatprep.subr.mxu0 0.0
    %1062 = vmatpush1.msra.mxu0 0.0
    %1063 = vmatprep.subr.mxu0 0.0
    %1064 = vmatpush1.msra.mxu0 0.0
    %1065 = vmatprep.subr.mxu0 0.0
    %1066 = vmatpush1.msra.mxu0 0.0
    %1067 = vmatprep.mubr.f32.mxu0 0.0
    %1068 = vmatmul.mubr.f32.gmra.mrb[0].mxu0 %v998
    %v1069 = vpop.f32.mrb[0].mxu0
    %v1070 = vadd.f32 0.0, %v1069
    %v1071 = vpop.f32.mrb[0].mxu0
    %v1072 = vadd.f32 0.0, %v1071
    %1073 = vdwg.mxu0
    %1074 = vmatprep.subr.mxu0 %v764
    %1075 = vmatpush1.msra.mxu0 %v763
    %1076 = vmatprep.subr.mxu0 %v768
    %1077 = vmatpush1.msra.mxu0 %v767
    %1078 = vmatprep.subr.mxu0 %v772
    %1079 = vmatpush1.msra.mxu0 %v771
    %1080 = vmatprep.subr.mxu0 %v776
    %1081 = vmatpush1.msra.mxu0 %v775
    %1082 = vmatprep.subr.mxu0 %v780
    %1083 = vmatpush1.msra.mxu0 %v779
    %1084 = vmatprep.subr.mxu0 %v784
    %1085 = vmatpush1.msra.mxu0 %v783
    %1086 = vmatprep.subr.mxu0 %v788
    %1087 = vmatpush1.msra.mxu0 %v787
    %1088 = vmatprep.subr.mxu0 %v792
    %1089 = vmatpush1.msra.mxu0 %v791
    %1090 = vmatprep.subr.mxu0 %v796
    %1091 = vmatpush1.msra.mxu0 %v795
    %1092 = vmatprep.subr.mxu0 %v800
    %1093 = vmatpush1.msra.mxu0 %v799
    %1094 = vmatprep.subr.mxu0 %v804
    %1095 = vmatpush1.msra.mxu0 %v803
    %1096 = vmatprep.subr.mxu0 %v808
    %1097 = vmatpush1.msra.mxu0 %v807
    %1098 = vmatprep.subr.mxu0 %v812
    %1099 = vmatpush1.msra.mxu0 %v811
    %1100 = vmatprep.subr.mxu0 %v816
    %1101 = vmatpush1.msra.mxu0 %v815
    %1102 = vmatprep.subr.mxu0 %v820
    %1103 = vmatpush1.msra.mxu0 %v819
    %1104 = vmatprep.subr.mxu0 %v824
    %1105 = vmatpush1.msra.mxu0 %v823
    %1106 = vmatprep.subr.mxu0 0.0
    %1107 = vmatpush1.msra.mxu0 0.0
    %1108 = vmatprep.subr.mxu0 0.0
    %1109 = vmatpush1.msra.mxu0 0.0
    %1110 = vmatprep.subr.mxu0 0.0
    %1111 = vmatpush1.msra.mxu0 0.0
    %1112 = vmatprep.subr.mxu0 0.0
    %1113 = vmatpush1.msra.mxu0 0.0
    %1114 = vmatprep.subr.mxu0 0.0
    %1115 = vmatpush1.msra.mxu0 0.0
    %1116 = vmatprep.subr.mxu0 0.0
    %1117 = vmatpush1.msra.mxu0 0.0
    %1118 = vmatprep.subr.mxu0 0.0
    %1119 = vmatpush1.msra.mxu0 0.0
    %1120 = vmatprep.subr.mxu0 0.0
    %1121 = vmatpush1.msra.mxu0 0.0
    %1122 = vmatprep.subr.mxu0 0.0
    %1123 = vmatpush1.msra.mxu0 0.0
    %1124 = vmatprep.subr.mxu0 0.0
    %1125 = vmatpush1.msra.mxu0 0.0
    %1126 = vmatprep.subr.mxu0 0.0
    %1127 = vmatpush1.msra.mxu0 0.0
    %1128 = vmatprep.subr.mxu0 0.0
    %1129 = vmatpush1.msra.mxu0 0.0
    %1130 = vmatprep.subr.mxu0 0.0
    %1131 = vmatpush1.msra.mxu0 0.0
    %1132 = vmatprep.subr.mxu0 0.0
    %1133 = vmatpush1.msra.mxu0 0.0
    %1134 = vmatprep.subr.mxu0 0.0
    %1135 = vmatpush1.msra.mxu0 0.0
    %1136 = vmatprep.subr.mxu0 0.0
    %1137 = vmatpush1.msra.mxu0 0.0
    %1138 = vmatprep.mubr.f32.mxu0 0.0
    %1139 = vmatmul.mubr.f32.gmra.mrb[0].mxu0 %v998
    %v1140 = vpop.f32.mrb[0].mxu0
    %v1141 = vadd.f32 0.0, %v1140
    %v1142 = vpop.f32.mrb[0].mxu0
    %v1143 = vadd.f32 0.0, %v1142
    %1144 = vdwg.mxu0
    %v1145 = vadd.f32 %v999, %v1070
    %v1146 = vadd.f32 %v1000, %v1072
    %v1147 = vadd.f32 %v1001, %v1141
    %v1148 = vadd.f32 %v1002, %v1143
    %v1149 = vxor.u32 %v1145, 2147483648
    %v1150 = vxor.u32 %v1146, 2147483648
    %v1151 = vxor.u32 %v1147, 2147483648
    %v1152 = vmul.f32 %v1149, 1.442695
    %v1153 = vpow.pop %v1152
    %v1154 = vmul.f32 %v1150, 1.442695
    %v1155 = vpow.pop %v1154
    %v1156 = vmul.f32 %v1151, 1.442695
    %v1157 = vpow.pop %v1156
    %v1158 = vadd.f32 %v1153, 1.0
    %v1159 = vadd.f32 %v1155, 1.0
    %v1160 = vadd.f32 %v1157, 1.0
    %v1161 = vrcp.pop %v1158
    %v1162 = vmul.f32 1.0, %v1161
    %v1163 = vrcp.pop %v1159
    %v1164 = vmul.f32 1.0, %v1163
    %v1165 = vrcp.pop %v1160
    %v1166 = vmul.f32 1.0, %v1165
    %v1167 = vtanh.pop %v1148
    %v1168 = vmul.f32 %v1164, %v996
    %v1169 = vmul.f32 %v1162, %v1167
    %v1170 = vadd.f32 %v1168, %v1169
    %v1171 = vtanh.pop %v1170
    %v1172 = vmul.f32 %v1166, %v1171
    %v1173 = vld [vmem:[#allocation2 + $0x40] sm:$0xff]
    %v1174 = vld [vmem:[#allocation2 + $0x48] sm:$0xff]
    %v1175 = vld [vmem:[#allocation2 + $0x50] sm:$0xff]
    %v1176 = vld [vmem:[#allocation2 + $0x58] sm:$0xff]
    %1177 = vmatprep.subr.mxu0 %v762
    %1178 = vmatpush1.msra.mxu0 %v761
    %1179 = vmatprep.subr.mxu0 %v766
    %1180 = vmatpush1.msra.mxu0 %v765
    %1181 = vmatprep.subr.mxu0 %v770
    %1182 = vmatpush1.msra.mxu0 %v769
    %1183 = vmatprep.subr.mxu0 %v774
    %1184 = vmatpush1.msra.mxu0 %v773
    %1185 = vmatprep.subr.mxu0 %v778
    %1186 = vmatpush1.msra.mxu0 %v777
    %1187 = vmatprep.subr.mxu0 %v782
    %1188 = vmatpush1.msra.mxu0 %v781
    %1189 = vmatprep.subr.mxu0 %v786
    %1190 = vmatpush1.msra.mxu0 %v785
    %1191 = vmatprep.subr.mxu0 %v790
    %1192 = vmatpush1.msra.mxu0 %v789
    %1193 = vmatprep.subr.mxu0 %v794
    %1194 = vmatpush1.msra.mxu0 %v793
    %1195 = vmatprep.subr.mxu0 %v798
    %1196 = vmatpush1.msra.mxu0 %v797
    %1197 = vmatprep.subr.mxu0 %v802
    %1198 = vmatpush1.msra.mxu0 %v801
    %1199 = vmatprep.subr.mxu0 %v806
    %1200 = vmatpush1.msra.mxu0 %v805
    %1201 = vmatprep.subr.mxu0 %v810
    %1202 = vmatpush1.msra.mxu0 %v809
    %1203 = vmatprep.subr.mxu0 %v814
    %1204 = vmatpush1.msra.mxu0 %v813
    %1205 = vmatprep.subr.mxu0 %v818
    %1206 = vmatpush1.msra.mxu0 %v817
    %1207 = vmatprep.subr.mxu0 %v822
    %1208 = vmatpush1.msra.mxu0 %v821
    %1209 = vmatprep.subr.mxu0 0.0
    %1210 = vmatpush1.msra.mxu0 0.0
    %1211 = vmatprep.subr.mxu0 0.0
    %1212 = vmatpush1.msra.mxu0 0.0
    %1213 = vmatprep.subr.mxu0 0.0
    %1214 = vmatpush1.msra.mxu0 0.0
    %1215 = vmatprep.subr.mxu0 0.0
    %1216 = vmatpush1.msra.mxu0 0.0
    %1217 = vmatprep.subr.mxu0 0.0
    %1218 = vmatpush1.msra.mxu0 0.0
    %1219 = vmatprep.subr.mxu0 0.0
    %1220 = vmatpush1.msra.mxu0 0.0
    %1221 = vmatprep.subr.mxu0 0.0
    %1222 = vmatpush1.msra.mxu0 0.0
    %1223 = vmatprep.subr.mxu0 0.0
    %1224 = vmatpush1.msra.mxu0 0.0
    %1225 = vmatprep.subr.mxu0 0.0
    %1226 = vmatpush1.msra.mxu0 0.0
    %1227 = vmatprep.subr.mxu0 0.0
    %1228 = vmatpush1.msra.mxu0 0.0
    %1229 = vmatprep.subr.mxu0 0.0
    %1230 = vmatpush1.msra.mxu0 0.0
    %1231 = vmatprep.subr.mxu0 0.0
    %1232 = vmatpush1.msra.mxu0 0.0
    %1233 = vmatprep.subr.mxu0 0.0
    %1234 = vmatpush1.msra.mxu0 0.0
    %1235 = vmatprep.subr.mxu0 0.0
    %1236 = vmatpush1.msra.mxu0 0.0
    %1237 = vmatprep.subr.mxu0 0.0
    %1238 = vmatpush1.msra.mxu0 0.0
    %1239 = vmatprep.subr.mxu0 0.0
    %1240 = vmatpush1.msra.mxu0 0.0
    %1241 = vmatprep.mubr.f32.mxu0 0.0
    %1242 = vmatmul.mubr.f32.gmra.mrb[0].mxu0 %v1172
    %v1243 = vpop.f32.mrb[0].mxu0
    %v1244 = vadd.f32 0.0, %v1243
    %v1245 = vpop.f32.mrb[0].mxu0
    %v1246 = vadd.f32 0.0, %v1245
    %1247 = vdwg.mxu0
    %1248 = vmatprep.subr.mxu0 %v764
    %1249 = vmatpush1.msra.mxu0 %v763
    %1250 = vmatprep.subr.mxu0 %v768
    %1251 = vmatpush1.msra.mxu0 %v767
    %1252 = vmatprep.subr.mxu0 %v772
    %1253 = vmatpush1.msra.mxu0 %v771
    %1254 = vmatprep.subr.mxu0 %v776
    %1255 = vmatpush1.msra.mxu0 %v775
    %1256 = vmatprep.subr.mxu0 %v780
    %1257 = vmatpush1.msra.mxu0 %v779
    %1258 = vmatprep.subr.mxu0 %v784
    %1259 = vmatpush1.msra.mxu0 %v783
    %1260 = vmatprep.subr.mxu0 %v788
    %1261 = vmatpush1.msra.mxu0 %v787
    %1262 = vmatprep.subr.mxu0 %v792
    %1263 = vmatpush1.msra.mxu0 %v791
    %1264 = vmatprep.subr.mxu0 %v796
    %1265 = vmatpush1.msra.mxu0 %v795
    %1266 = vmatprep.subr.mxu0 %v800
    %1267 = vmatpush1.msra.mxu0 %v799
    %1268 = vmatprep.subr.mxu0 %v804
    %1269 = vmatpush1.msra.mxu0 %v803
    %1270 = vmatprep.subr.mxu0 %v808
    %1271 = vmatpush1.msra.mxu0 %v807
    %1272 = vmatprep.subr.mxu0 %v812
    %1273 = vmatpush1.msra.mxu0 %v811
    %1274 = vmatprep.subr.mxu0 %v816
    %1275 = vmatpush1.msra.mxu0 %v815
    %1276 = vmatprep.subr.mxu0 %v820
    %1277 = vmatpush1.msra.mxu0 %v819
    %1278 = vmatprep.subr.mxu0 %v824
    %1279 = vmatpush1.msra.mxu0 %v823
    %1280 = vmatprep.subr.mxu0 0.0
    %1281 = vmatpush1.msra.mxu0 0.0
    %1282 = vmatprep.subr.mxu0 0.0
    %1283 = vmatpush1.msra.mxu0 0.0
    %1284 = vmatprep.subr.mxu0 0.0
    %1285 = vmatpush1.msra.mxu0 0.0
    %1286 = vmatprep.subr.mxu0 0.0
    %1287 = vmatpush1.msra.mxu0 0.0
    %1288 = vmatprep.subr.mxu0 0.0
    %1289 = vmatpush1.msra.mxu0 0.0
    %1290 = vmatprep.subr.mxu0 0.0
    %1291 = vmatpush1.msra.mxu0 0.0
    %1292 = vmatprep.subr.mxu0 0.0
    %1293 = vmatpush1.msra.mxu0 0.0
    %1294 = vmatprep.subr.mxu0 0.0
    %1295 = vmatpush1.msra.mxu0 0.0
    %1296 = vmatprep.subr.mxu0 0.0
    %1297 = vmatpush1.msra.mxu0 0.0
    %1298 = vmatprep.subr.mxu0 0.0
    %1299 = vmatpush1.msra.mxu0 0.0
    %1300 = vmatprep.subr.mxu0 0.0
    %1301 = vmatpush1.msra.mxu0 0.0
    %1302 = vmatprep.subr.mxu0 0.0
    %1303 = vmatpush1.msra.mxu0 0.0
    %1304 = vmatprep.subr.mxu0 0.0
    %1305 = vmatpush1.msra.mxu0 0.0
    %1306 = vmatprep.subr.mxu0 0.0
    %1307 = vmatpush1.msra.mxu0 0.0
    %1308 = vmatprep.subr.mxu0 0.0
    %1309 = vmatpush1.msra.mxu0 0.0
    %1310 = vmatprep.subr.mxu0 0.0
    %1311 = vmatpush1.msra.mxu0 0.0
    %1312 = vmatprep.mubr.f32.mxu0 0.0
    %1313 = vmatmul.mubr.f32.gmra.mrb[0].mxu0 %v1172
    %v1314 = vpop.f32.mrb[0].mxu0
    %v1315 = vadd.f32 0.0, %v1314
    %v1316 = vpop.f32.mrb[0].mxu0
    %v1317 = vadd.f32 0.0, %v1316
    %1318 = vdwg.mxu0
    %v1319 = vadd.f32 %v1173, %v1244
    %v1320 = vadd.f32 %v1174, %v1246
    %v1321 = vadd.f32 %v1175, %v1315
    %v1322 = vadd.f32 %v1176, %v1317
    %v1323 = vxor.u32 %v1319, 2147483648
    %v1324 = vxor.u32 %v1320, 2147483648
    %v1325 = vxor.u32 %v1321, 2147483648
    %v1326 = vmul.f32 %v1323, 1.442695
    %v1327 = vpow.pop %v1326
    %v1328 = vmul.f32 %v1324, 1.442695
    %v1329 = vpow.pop %v1328
    %v1330 = vmul.f32 %v1325, 1.442695
    %v1331 = vpow.pop %v1330
    %v1332 = vadd.f32 %v1327, 1.0
    %v1333 = vadd.f32 %v1329, 1.0
    %v1334 = vadd.f32 %v1331, 1.0
    %v1335 = vrcp.pop %v1332
    %v1336 = vmul.f32 1.0, %v1335
    %v1337 = vrcp.pop %v1333
    %v1338 = vmul.f32 1.0, %v1337
    %v1339 = vrcp.pop %v1334
    %v1340 = vmul.f32 1.0, %v1339
    %v1341 = vtanh.pop %v1322
    %v1342 = vmul.f32 %v1338, %v1170
    %v1343 = vmul.f32 %v1336, %v1341
    %v1344 = vadd.f32 %v1342, %v1343
    %v1345 = vtanh.pop %v1344
    %v1346 = vmul.f32 %v1340, %v1345
    %v1347 = vld [vmem:[#allocation2 + $0x60] sm:$0xff]
    %v1348 = vld [vmem:[#allocation2 + $0x68] sm:$0xff]
    %v1349 = vld [vmem:[#allocation2 + $0x70] sm:$0xff]
    %v1350 = vld [vmem:[#allocation2 + $0x78] sm:$0xff]
    %1351 = vmatprep.subr.mxu0 %v762
    %1352 = vmatpush1.msra.mxu0 %v761
    %1353 = vmatprep.subr.mxu0 %v766
    %1354 = vmatpush1.msra.mxu0 %v765
    %1355 = vmatprep.subr.mxu0 %v770
    %1356 = vmatpush1.msra.mxu0 %v769
    %1357 = vmatprep.subr.mxu0 %v774
    %1358 = vmatpush1.msra.mxu0 %v773
    %1359 = vmatprep.subr.mxu0 %v778
    %1360 = vmatpush1.msra.mxu0 %v777
    %1361 = vmatprep.subr.mxu0 %v782
    %1362 = vmatpush1.msra.mxu0 %v781
    %1363 = vmatprep.subr.mxu0 %v786
    %1364 = vmatpush1.msra.mxu0 %v785
    %1365 = vmatprep.subr.mxu0 %v790
    %1366 = vmatpush1.msra.mxu0 %v789
    %1367 = vmatprep.subr.mxu0 %v794
    %1368 = vmatpush1.msra.mxu0 %v793
    %1369 = vmatprep.subr.mxu0 %v798
    %1370 = vmatpush1.msra.mxu0 %v797
    %1371 = vmatprep.subr.mxu0 %v802
    %1372 = vmatpush1.msra.mxu0 %v801
    %1373 = vmatprep.subr.mxu0 %v806
    %1374 = vmatpush1.msra.mxu0 %v805
    %1375 = vmatprep.subr.mxu0 %v810
    %1376 = vmatpush1.msra.mxu0 %v809
    %1377 = vmatprep.subr.mxu0 %v814
    %1378 = vmatpush1.msra.mxu0 %v813
    %1379 = vmatprep.subr.mxu0 %v818
    %1380 = vmatpush1.msra.mxu0 %v817
    %1381 = vmatprep.subr.mxu0 %v822
    %1382 = vmatpush1.msra.mxu0 %v821
    %1383 = vmatprep.subr.mxu0 0.0
    %1384 = vmatpush1.msra.mxu0 0.0
    %1385 = vmatprep.subr.mxu0 0.0
    %1386 = vmatpush1.msra.mxu0 0.0
    %1387 = vmatprep.subr.mxu0 0.0
    %1388 = vmatpush1.msra.mxu0 0.0
    %1389 = vmatprep.subr.mxu0 0.0
    %1390 = vmatpush1.msra.mxu0 0.0
    %1391 = vmatprep.subr.mxu0 0.0
    %1392 = vmatpush1.msra.mxu0 0.0
    %1393 = vmatprep.subr.mxu0 0.0
    %1394 = vmatpush1.msra.mxu0 0.0
    %1395 = vmatprep.subr.mxu0 0.0
    %1396 = vmatpush1.msra.mxu0 0.0
    %1397 = vmatprep.subr.mxu0 0.0
    %1398 = vmatpush1.msra.mxu0 0.0
    %1399 = vmatprep.subr.mxu0 0.0
    %1400 = vmatpush1.msra.mxu0 0.0
    %1401 = vmatprep.subr.mxu0 0.0
    %1402 = vmatpush1.msra.mxu0 0.0
    %1403 = vmatprep.subr.mxu0 0.0
    %1404 = vmatpush1.msra.mxu0 0.0
    %1405 = vmatprep.subr.mxu0 0.0
    %1406 = vmatpush1.msra.mxu0 0.0
    %1407 = vmatprep.subr.mxu0 0.0
    %1408 = vmatpush1.msra.mxu0 0.0
    %1409 = vmatprep.subr.mxu0 0.0
    %1410 = vmatpush1.msra.mxu0 0.0
    %1411 = vmatprep.subr.mxu0 0.0
    %1412 = vmatpush1.msra.mxu0 0.0
    %1413 = vmatprep.subr.mxu0 0.0
    %1414 = vmatpush1.msra.mxu0 0.0
    %1415 = vmatprep.mubr.f32.mxu0 0.0
    %1416 = vmatmul.mubr.f32.gmra.mrb[0].mxu0 %v1346
    %v1417 = vpop.f32.mrb[0].mxu0
    %v1418 = vadd.f32 0.0, %v1417
    %v1419 = vpop.f32.mrb[0].mxu0
    %v1420 = vadd.f32 0.0, %v1419
    %1421 = vdwg.mxu0
    %1422 = vmatprep.subr.mxu0 %v764
    %1423 = vmatpush1.msra.mxu0 %v763
    %1424 = vmatprep.subr.mxu0 %v768
    %1425 = vmatpush1.msra.mxu0 %v767
    %1426 = vmatprep.subr.mxu0 %v772
    %1427 = vmatpush1.msra.mxu0 %v771
    %1428 = vmatprep.subr.mxu0 %v776
    %1429 = vmatpush1.msra.mxu0 %v775
    %1430 = vmatprep.subr.mxu0 %v780
    %1431 = vmatpush1.msra.mxu0 %v779
    %1432 = vmatprep.subr.mxu0 %v784
    %1433 = vmatpush1.msra.mxu0 %v783
    %1434 = vmatprep.subr.mxu0 %v788
    %1435 = vmatpush1.msra.mxu0 %v787
    %1436 = vmatprep.subr.mxu0 %v792
    %1437 = vmatpush1.msra.mxu0 %v791
    %1438 = vmatprep.subr.mxu0 %v796
    %1439 = vmatpush1.msra.mxu0 %v795
    %1440 = vmatprep.subr.mxu0 %v800
    %1441 = vmatpush1.msra.mxu0 %v799
    %1442 = vmatprep.subr.mxu0 %v804
    %1443 = vmatpush1.msra.mxu0 %v803
    %1444 = vmatprep.subr.mxu0 %v808
    %1445 = vmatpush1.msra.mxu0 %v807
    %1446 = vmatprep.subr.mxu0 %v812
    %1447 = vmatpush1.msra.mxu0 %v811
    %1448 = vmatprep.subr.mxu0 %v816
    %1449 = vmatpush1.msra.mxu0 %v815
    %1450 = vmatprep.subr.mxu0 %v820
    %1451 = vmatpush1.msra.mxu0 %v819
    %1452 = vmatprep.subr.mxu0 %v824
    %1453 = vmatpush1.msra.mxu0 %v823
    %1454 = vmatprep.subr.mxu0 0.0
    %1455 = vmatpush1.msra.mxu0 0.0
    %1456 = vmatprep.subr.mxu0 0.0
    %1457 = vmatpush1.msra.mxu0 0.0
    %1458 = vmatprep.subr.mxu0 0.0
    %1459 = vmatpush1.msra.mxu0 0.0
    %1460 = vmatprep.subr.mxu0 0.0
    %1461 = vmatpush1.msra.mxu0 0.0
    %1462 = vmatprep.subr.mxu0 0.0
    %1463 = vmatpush1.msra.mxu0 0.0
    %1464 = vmatprep.subr.mxu0 0.0
    %1465 = vmatpush1.msra.mxu0 0.0
    %1466 = vmatprep.subr.mxu0 0.0
    %1467 = vmatpush1.msra.mxu0 0.0
    %1468 = vmatprep.subr.mxu0 0.0
    %1469 = vmatpush1.msra.mxu0 0.0
    %1470 = vmatprep.subr.mxu0 0.0
    %1471 = vmatpush1.msra.mxu0 0.0
    %1472 = vmatprep.subr.mxu0 0.0
    %1473 = vmatpush1.msra.mxu0 0.0
    %1474 = vmatprep.subr.mxu0 0.0
    %1475 = vmatpush1.msra.mxu0 0.0
    %1476 = vmatprep.subr.mxu0 0.0
    %1477 = vmatpush1.msra.mxu0 0.0
    %1478 = vmatprep.subr.mxu0 0.0
    %1479 = vmatpush1.msra.mxu0 0.0
    %1480 = vmatprep.subr.mxu0 0.0
    %1481 = vmatpush1.msra.mxu0 0.0
    %1482 = vmatprep.subr.mxu0 0.0
    %1483 = vmatpush1.msra.mxu0 0.0
    %1484 = vmatprep.subr.mxu0 0.0
    %1485 = vmatpush1.msra.mxu0 0.0
    %1486 = vmatprep.mubr.f32.mxu0 0.0
    %1487 = vmatmul.mubr.f32.gmra.mrb[0].mxu0 %v1346
    %v1488 = vpop.f32.mrb[0].mxu0
    %v1489 = vadd.f32 0.0, %v1488
    %v1490 = vpop.f32.mrb[0].mxu0
    %v1491 = vadd.f32 0.0, %v1490
    %1492 = vdwg.mxu0
    %v1493 = vadd.f32 %v1347, %v1418
    %v1494 = vadd.f32 %v1348, %v1420
    %v1495 = vadd.f32 %v1349, %v1489
    %v1496 = vadd.f32 %v1350, %v1491
    %v1497 = vxor.u32 %v1493, 2147483648
    %v1498 = vxor.u32 %v1494, 2147483648
    %v1499 = vxor.u32 %v1495, 2147483648
    %v1500 = vmul.f32 %v1497, 1.442695
    %v1501 = vpow.pop %v1500
    %v1502 = vmul.f32 %v1498, 1.442695
    %v1503 = vpow.pop %v1502
    %v1504 = vmul.f32 %v1499, 1.442695
    %v1505 = vpow.pop %v1504
    %v1506 = vadd.f32 %v1501, 1.0
    %v1507 = vadd.f32 %v1503, 1.0
    %v1508 = vadd.f32 %v1505, 1.0
    %v1509 = vrcp.pop %v1506
    %v1510 = vmul.f32 1.0, %v1509
    %v1511 = vrcp.pop %v1507
    %v1512 = vmul.f32 1.0, %v1511
    %v1513 = vrcp.pop %v1508
    %v1514 = vmul.f32 1.0, %v1513
    %v1515 = vtanh.pop %v1496
    %v1516 = vmul.f32 %v1512, %v1344
    %v1517 = vmul.f32 %v1510, %v1515
    %v1518 = vadd.f32 %v1516, %v1517
    %v1519 = vtanh.pop %v1518
    %v1520 = vmul.f32 %v1514, %v1519
    %v1521 = vld [vmem:[#allocation2 + $0x80] sm:$0xff]
    %v1522 = vld [vmem:[#allocation2 + $0x88] sm:$0xff]
    %v1523 = vld [vmem:[#allocation2 + $0x90] sm:$0xff]
    %v1524 = vld [vmem:[#allocation2 + $0x98] sm:$0xff]
    %1525 = vmatprep.subr.mxu0 %v762
    %1526 = vmatpush1.msra.mxu0 %v761
    %1527 = vmatprep.subr.mxu0 %v766
    %1528 = vmatpush1.msra.mxu0 %v765
    %1529 = vmatprep.subr.mxu0 %v770
    %1530 = vmatpush1.msra.mxu0 %v769
    %1531 = vmatprep.subr.mxu0 %v774
    %1532 = vmatpush1.msra.mxu0 %v773
    %1533 = vmatprep.subr.mxu0 %v778
    %1534 = vmatpush1.msra.mxu0 %v777
    %1535 = vmatprep.subr.mxu0 %v782
    %1536 = vmatpush1.msra.mxu0 %v781
    %1537 = vmatprep.subr.mxu0 %v786
    %1538 = vmatpush1.msra.mxu0 %v785
    %1539 = vmatprep.subr.mxu0 %v790
    %1540 = vmatpush1.msra.mxu0 %v789
    %1541 = vmatprep.subr.mxu0 %v794
    %1542 = vmatpush1.msra.mxu0 %v793
    %1543 = vmatprep.subr.mxu0 %v798
    %1544 = vmatpush1.msra.mxu0 %v797
    %1545 = vmatprep.subr.mxu0 %v802
    %1546 = vmatpush1.msra.mxu0 %v801
    %1547 = vmatprep.subr.mxu0 %v806
    %1548 = vmatpush1.msra.mxu0 %v805
    %1549 = vmatprep.subr.mxu0 %v810
    %1550 = vmatpush1.msra.mxu0 %v809
    %1551 = vmatprep.subr.mxu0 %v814
    %1552 = vmatpush1.msra.mxu0 %v813
    %1553 = vmatprep.subr.mxu0 %v818
    %1554 = vmatpush1.msra.mxu0 %v817
    %1555 = vmatprep.subr.mxu0 %v822
    %1556 = vmatpush1.msra.mxu0 %v821
    %1557 = vmatprep.subr.mxu0 0.0
    %1558 = vmatpush1.msra.mxu0 0.0
    %1559 = vmatprep.subr.mxu0 0.0
    %1560 = vmatpush1.msra.mxu0 0.0
    %1561 = vmatprep.subr.mxu0 0.0
    %1562 = vmatpush1.msra.mxu0 0.0
    %1563 = vmatprep.subr.mxu0 0.0
    %1564 = vmatpush1.msra.mxu0 0.0
    %1565 = vmatprep.subr.mxu0 0.0
    %1566 = vmatpush1.msra.mxu0 0.0
    %1567 = vmatprep.subr.mxu0 0.0
    %1568 = vmatpush1.msra.mxu0 0.0
    %1569 = vmatprep.subr.mxu0 0.0
    %1570 = vmatpush1.msra.mxu0 0.0
    %1571 = vmatprep.subr.mxu0 0.0
    %1572 = vmatpush1.msra.mxu0 0.0
    %1573 = vmatprep.subr.mxu0 0.0
    %1574 = vmatpush1.msra.mxu0 0.0
    %1575 = vmatprep.subr.mxu0 0.0
    %1576 = vmatpush1.msra.mxu0 0.0
    %1577 = vmatprep.subr.mxu0 0.0
    %1578 = vmatpush1.msra.mxu0 0.0
    %1579 = vmatprep.subr.mxu0 0.0
    %1580 = vmatpush1.msra.mxu0 0.0
    %1581 = vmatprep.subr.mxu0 0.0
    %1582 = vmatpush1.msra.mxu0 0.0
    %1583 = vmatprep.subr.mxu0 0.0
    %1584 = vmatpush1.msra.mxu0 0.0
    %1585 = vmatprep.subr.mxu0 0.0
    %1586 = vmatpush1.msra.mxu0 0.0
    %1587 = vmatprep.subr.mxu0 0.0
    %1588 = vmatpush1.msra.mxu0 0.0
    %1589 = vmatprep.mubr.f32.mxu0 0.0
    %1590 = vmatmul.mubr.f32.gmra.mrb[0].mxu0 %v1520
    %v1591 = vpop.f32.mrb[0].mxu0
    %v1592 = vadd.f32 0.0, %v1591
    %v1593 = vpop.f32.mrb[0].mxu0
    %v1594 = vadd.f32 0.0, %v1593
    %1595 = vdwg.mxu0
    %1596 = vmatprep.subr.mxu0 %v764
    %1597 = vmatpush1.msra.mxu0 %v763
    %1598 = vmatprep.subr.mxu0 %v768
    %1599 = vmatpush1.msra.mxu0 %v767
    %1600 = vmatprep.subr.mxu0 %v772
    %1601 = vmatpush1.msra.mxu0 %v771
    %1602 = vmatprep.subr.mxu0 %v776
    %1603 = vmatpush1.msra.mxu0 %v775
    %1604 = vmatprep.subr.mxu0 %v780
    %1605 = vmatpush1.msra.mxu0 %v779
    %1606 = vmatprep.subr.mxu0 %v784
    %1607 = vmatpush1.msra.mxu0 %v783
    %1608 = vmatprep.subr.mxu0 %v788
    %1609 = vmatpush1.msra.mxu0 %v787
    %1610 = vmatprep.subr.mxu0 %v792
    %1611 = vmatpush1.msra.mxu0 %v791
    %1612 = vmatprep.subr.mxu0 %v796
    %1613 = vmatpush1.msra.mxu0 %v795
    %1614 = vmatprep.subr.mxu0 %v800
    %1615 = vmatpush1.msra.mxu0 %v799
    %1616 = vmatprep.subr.mxu0 %v804
    %1617 = vmatpush1.msra.mxu0 %v803
    %1618 = vmatprep.subr.mxu0 %v808
    %1619 = vmatpush1.msra.mxu0 %v807
    %1620 = vmatprep.subr.mxu0 %v812
    %1621 = vmatpush1.msra.mxu0 %v811
    %1622 = vmatprep.subr.mxu0 %v816
    %1623 = vmatpush1.msra.mxu0 %v815
    %1624 = vmatprep.subr.mxu0 %v820
    %1625 = vmatpush1.msra.mxu0 %v819
    %1626 = vmatprep.subr.mxu0 %v824
    %1627 = vmatpush1.msra.mxu0 %v823
    %1628 = vmatprep.subr.mxu0 0.0
    %1629 = vmatpush1.msra.mxu0 0.0
    %1630 = vmatprep.subr.mxu0 0.0
    %1631 = vmatpush1.msra.mxu0 0.0
    %1632 = vmatprep.subr.mxu0 0.0
    %1633 = vmatpush1.msra.mxu0 0.0
    %1634 = vmatprep.subr.mxu0 0.0
    %1635 = vmatpush1.msra.mxu0 0.0
    %1636 = vmatprep.subr.mxu0 0.0
    %1637 = vmatpush1.msra.mxu0 0.0
    %1638 = vmatprep.subr.mxu0 0.0
    %1639 = vmatpush1.msra.mxu0 0.0
    %1640 = vmatprep.subr.mxu0 0.0
    %1641 = vmatpush1.msra.mxu0 0.0
    %1642 = vmatprep.subr.mxu0 0.0
    %1643 = vmatpush1.msra.mxu0 0.0
    %1644 = vmatprep.subr.mxu0 0.0
    %1645 = vmatpush1.msra.mxu0 0.0
    %1646 = vmatprep.subr.mxu0 0.0
    %1647 = vmatpush1.msra.mxu0 0.0
    %1648 = vmatprep.subr.mxu0 0.0
    %1649 = vmatpush1.msra.mxu0 0.0
    %1650 = vmatprep.subr.mxu0 0.0
    %1651 = vmatpush1.msra.mxu0 0.0
    %1652 = vmatprep.subr.mxu0 0.0
    %1653 = vmatpush1.msra.mxu0 0.0
    %1654 = vmatprep.subr.mxu0 0.0
    %1655 = vmatpush1.msra.mxu0 0.0
    %1656 = vmatprep.subr.mxu0 0.0
    %1657 = vmatpush1.msra.mxu0 0.0
    %1658 = vmatprep.subr.mxu0 0.0
    %1659 = vmatpush1.msra.mxu0 0.0
    %1660 = vmatprep.mubr.f32.mxu0 0.0
    %1661 = vmatmul.mubr.f32.gmra.mrb[0].mxu0 %v1520
    %v1662 = vpop.f32.mrb[0].mxu0
    %v1663 = vadd.f32 0.0, %v1662
    %v1664 = vpop.f32.mrb[0].mxu0
    %v1665 = vadd.f32 0.0, %v1664
    %1666 = vdwg.mxu0
    %v1667 = vadd.f32 %v1521, %v1592
    %v1668 = vadd.f32 %v1522, %v1594
    %v1669 = vadd.f32 %v1523, %v1663
    %v1670 = vadd.f32 %v1524, %v1665
    %v1671 = vxor.u32 %v1667, 2147483648
    %v1672 = vxor.u32 %v1668, 2147483648
    %v1673 = vxor.u32 %v1669, 2147483648
    %v1674 = vmul.f32 %v1671, 1.442695
    %v1675 = vpow.pop %v1674
    %v1676 = vmul.f32 %v1672, 1.442695
    %v1677 = vpow.pop %v1676
    %v1678 = vmul.f32 %v1673, 1.442695
    %v1679 = vpow.pop %v1678
    %v1680 = vadd.f32 %v1675, 1.0
    %v1681 = vadd.f32 %v1677, 1.0
    %v1682 = vadd.f32 %v1679, 1.0
    %v1683 = vrcp.pop %v1680
    %v1684 = vmul.f32 1.0, %v1683
    %v1685 = vrcp.pop %v1681
    %v1686 = vmul.f32 1.0, %v1685
    %v1687 = vrcp.pop %v1682
    %v1688 = vmul.f32 1.0, %v1687
    %v1689 = vtanh.pop %v1670
    %v1690 = vmul.f32 %v1686, %v1518
    %v1691 = vmul.f32 %v1684, %v1689
    %v1692 = vadd.f32 %v1690, %v1691
    %v1693 = vtanh.pop %v1692
    %v1694 = vmul.f32 %v1688, %v1693
    %v1695 = vld [vmem:[#allocation2 + $0xa0] sm:$0xff]
    %v1696 = vld [vmem:[#allocation2 + $0xa8] sm:$0xff]
    %v1697 = vld [vmem:[#allocation2 + $0xb0] sm:$0xff]
    %v1698 = vld [vmem:[#allocation2 + $0xb8] sm:$0xff]
    %1699 = vmatprep.subr.mxu0 %v762
    %1700 = vmatpush1.msra.mxu0 %v761
    %1701 = vmatprep.subr.mxu0 %v766
    %1702 = vmatpush1.msra.mxu0 %v765
    %1703 = vmatprep.subr.mxu0 %v770
    %1704 = vmatpush1.msra.mxu0 %v769
    %1705 = vmatprep.subr.mxu0 %v774
    %1706 = vmatpush1.msra.mxu0 %v773
    %1707 = vmatprep.subr.mxu0 %v778
    %1708 = vmatpush1.msra.mxu0 %v777
    %1709 = vmatprep.subr.mxu0 %v782
    %1710 = vmatpush1.msra.mxu0 %v781
    %1711 = vmatprep.subr.mxu0 %v786
    %1712 = vmatpush1.msra.mxu0 %v785
    %1713 = vmatprep.subr.mxu0 %v790
    %1714 = vmatpush1.msra.mxu0 %v789
    %1715 = vmatprep.subr.mxu0 %v794
    %1716 = vmatpush1.msra.mxu0 %v793
    %1717 = vmatprep.subr.mxu0 %v798
    %1718 = vmatpush1.msra.mxu0 %v797
    %1719 = vmatprep.subr.mxu0 %v802
    %1720 = vmatpush1.msra.mxu0 %v801
    %1721 = vmatprep.subr.mxu0 %v806
    %1722 = vmatpush1.msra.mxu0 %v805
    %1723 = vmatprep.subr.mxu0 %v810
    %1724 = vmatpush1.msra.mxu0 %v809
    %1725 = vmatprep.subr.mxu0 %v814
    %1726 = vmatpush1.msra.mxu0 %v813
    %1727 = vmatprep.subr.mxu0 %v818
    %1728 = vmatpush1.msra.mxu0 %v817
    %1729 = vmatprep.subr.mxu0 %v822
    %1730 = vmatpush1.msra.mxu0 %v821
    %1731 = vmatprep.subr.mxu0 0.0
    %1732 = vmatpush1.msra.mxu0 0.0
    %1733 = vmatprep.subr.mxu0 0.0
    %1734 = vmatpush1.msra.mxu0 0.0
    %1735 = vmatprep.subr.mxu0 0.0
    %1736 = vmatpush1.msra.mxu0 0.0
    %1737 = vmatprep.subr.mxu0 0.0
    %1738 = vmatpush1.msra.mxu0 0.0
    %1739 = vmatprep.subr.mxu0 0.0
    %1740 = vmatpush1.msra.mxu0 0.0
    %1741 = vmatprep.subr.mxu0 0.0
    %1742 = vmatpush1.msra.mxu0 0.0
    %1743 = vmatprep.subr.mxu0 0.0
    %1744 = vmatpush1.msra.mxu0 0.0
    %1745 = vmatprep.subr.mxu0 0.0
    %1746 = vmatpush1.msra.mxu0 0.0
    %1747 = vmatprep.subr.mxu0 0.0
    %1748 = vmatpush1.msra.mxu0 0.0
    %1749 = vmatprep.subr.mxu0 0.0
    %1750 = vmatpush1.msra.mxu0 0.0
    %1751 = vmatprep.subr.mxu0 0.0
    %1752 = vmatpush1.msra.mxu0 0.0
    %1753 = vmatprep.subr.mxu0 0.0
    %1754 = vmatpush1.msra.mxu0 0.0
    %1755 = vmatprep.subr.mxu0 0.0
    %1756 = vmatpush1.msra.mxu0 0.0
    %1757 = vmatprep.subr.mxu0 0.0
    %1758 = vmatpush1.msra.mxu0 0.0
    %1759 = vmatprep.subr.mxu0 0.0
    %1760 = vmatpush1.msra.mxu0 0.0
    %1761 = vmatprep.subr.mxu0 0.0
    %1762 = vmatpush1.msra.mxu0 0.0
    %1763 = vmatprep.mubr.f32.mxu0 0.0
    %1764 = vmatmul.mubr.f32.gmra.mrb[0].mxu0 %v1694
    %v1765 = vpop.f32.mrb[0].mxu0
    %v1766 = vadd.f32 0.0, %v1765
    %v1767 = vpop.f32.mrb[0].mxu0
    %v1768 = vadd.f32 0.0, %v1767
    %1769 = vdwg.mxu0
    %1770 = vmatprep.subr.mxu0 %v764
    %1771 = vmatpush1.msra.mxu0 %v763
    %1772 = vmatprep.subr.mxu0 %v768
    %1773 = vmatpush1.msra.mxu0 %v767
    %1774 = vmatprep.subr.mxu0 %v772
    %1775 = vmatpush1.msra.mxu0 %v771
    %1776 = vmatprep.subr.mxu0 %v776
    %1777 = vmatpush1.msra.mxu0 %v775
    %1778 = vmatprep.subr.mxu0 %v780
    %1779 = vmatpush1.msra.mxu0 %v779
    %1780 = vmatprep.subr.mxu0 %v784
    %1781 = vmatpush1.msra.mxu0 %v783
    %1782 = vmatprep.subr.mxu0 %v788
    %1783 = vmatpush1.msra.mxu0 %v787
    %1784 = vmatprep.subr.mxu0 %v792
    %1785 = vmatpush1.msra.mxu0 %v791
    %1786 = vmatprep.subr.mxu0 %v796
    %1787 = vmatpush1.msra.mxu0 %v795
    %1788 = vmatprep.subr.mxu0 %v800
    %1789 = vmatpush1.msra.mxu0 %v799
    %1790 = vmatprep.subr.mxu0 %v804
    %1791 = vmatpush1.msra.mxu0 %v803
    %1792 = vmatprep.subr.mxu0 %v808
    %1793 = vmatpush1.msra.mxu0 %v807
    %1794 = vmatprep.subr.mxu0 %v812
    %1795 = vmatpush1.msra.mxu0 %v811
    %1796 = vmatprep.subr.mxu0 %v816
    %1797 = vmatpush1.msra.mxu0 %v815
    %1798 = vmatprep.subr.mxu0 %v820
    %1799 = vmatpush1.msra.mxu0 %v819
    %1800 = vmatprep.subr.mxu0 %v824
    %1801 = vmatpush1.msra.mxu0 %v823
    %1802 = vmatprep.subr.mxu0 0.0
    %1803 = vmatpush1.msra.mxu0 0.0
    %1804 = vmatprep.subr.mxu0 0.0
    %1805 = vmatpush1.msra.mxu0 0.0
    %1806 = vmatprep.subr.mxu0 0.0
    %1807 = vmatpush1.msra.mxu0 0.0
    %1808 = vmatprep.subr.mxu0 0.0
    %1809 = vmatpush1.msra.mxu0 0.0
    %1810 = vmatprep.subr.mxu0 0.0
    %1811 = vmatpush1.msra.mxu0 0.0
    %1812 = vmatprep.subr.mxu0 0.0
    %1813 = vmatpush1.msra.mxu0 0.0
    %1814 = vmatprep.subr.mxu0 0.0
    %1815 = vmatpush1.msra.mxu0 0.0
    %1816 = vmatprep.subr.mxu0 0.0
    %1817 = vmatpush1.msra.mxu0 0.0
    %1818 = vmatprep.subr.mxu0 0.0
    %1819 = vmatpush1.msra.mxu0 0.0
    %1820 = vmatprep.subr.mxu0 0.0
    %1821 = vmatpush1.msra.mxu0 0.0
    %1822 = vmatprep.subr.mxu0 0.0
    %1823 = vmatpush1.msra.mxu0 0.0
    %1824 = vmatprep.subr.mxu0 0.0
    %1825 = vmatpush1.msra.mxu0 0.0
    %1826 = vmatprep.subr.mxu0 0.0
    %1827 = vmatpush1.msra.mxu0 0.0
    %1828 = vmatprep.subr.mxu0 0.0
    %1829 = vmatpush1.msra.mxu0 0.0
    %1830 = vmatprep.subr.mxu0 0.0
    %1831 = vmatpush1.msra.mxu0 0.0
    %1832 = vmatprep.subr.mxu0 0.0
    %1833 = vmatpush1.msra.mxu0 0.0
    %1834 = vmatprep.mubr.f32.mxu0 0.0
    %1835 = vmatmul.mubr.f32.gmra.mrb[0].mxu0 %v1694
    %v1836 = vpop.f32.mrb[0].mxu0
    %v1837 = vadd.f32 0.0, %v1836
    %v1838 = vpop.f32.mrb[0].mxu0
    %v1839 = vadd.f32 0.0, %v1838
    %1840 = vdwg.mxu0
    %v1841 = vadd.f32 %v1695, %v1766
    %v1842 = vadd.f32 %v1696, %v1768
    %v1843 = vadd.f32 %v1697, %v1837
    %v1844 = vadd.f32 %v1698, %v1839
    %v1845 = vxor.u32 %v1841, 2147483648
    %v1846 = vxor.u32 %v1842, 2147483648
    %v1847 = vxor.u32 %v1843, 2147483648
    %v1848 = vmul.f32 %v1845, 1.442695
    %v1849 = vpow.pop %v1848
    %v1850 = vmul.f32 %v1846, 1.442695
    %v1851 = vpow.pop %v1850
    %v1852 = vmul.f32 %v1847, 1.442695
    %v1853 = vpow.pop %v1852
    %v1854 = vadd.f32 %v1849, 1.0
    %v1855 = vadd.f32 %v1851, 1.0
    %v1856 = vadd.f32 %v1853, 1.0
    %v1857 = vrcp.pop %v1854
    %v1858 = vmul.f32 1.0, %v1857
    %v1859 = vrcp.pop %v1855
    %v1860 = vmul.f32 1.0, %v1859
    %v1861 = vrcp.pop %v1856
    %v1862 = vmul.f32 1.0, %v1861
    %v1863 = vtanh.pop %v1844
    %v1864 = vmul.f32 %v1860, %v1692
    %v1865 = vmul.f32 %v1858, %v1863
    %v1866 = vadd.f32 %v1864, %v1865
    %v1867 = vtanh.pop %v1866
    %v1868 = vmul.f32 %v1862, %v1867
    %v1869 = vld [vmem:[#allocation2 + $0xc0] sm:$0xff]
    %v1870 = vld [vmem:[#allocation2 + $0xc8] sm:$0xff]
    %v1871 = vld [vmem:[#allocation2 + $0xd0] sm:$0xff]
    %v1872 = vld [vmem:[#allocation2 + $0xd8] sm:$0xff]
    %1873 = vmatprep.subr.mxu0 %v762
    %1874 = vmatpush1.msra.mxu0 %v761
    %1875 = vmatprep.subr.mxu0 %v766
    %1876 = vmatpush1.msra.mxu0 %v765
    %1877 = vmatprep.subr.mxu0 %v770
    %1878 = vmatpush1.msra.mxu0 %v769
    %1879 = vmatprep.subr.mxu0 %v774
    %1880 = vmatpush1.msra.mxu0 %v773
    %1881 = vmatprep.subr.mxu0 %v778
    %1882 = vmatpush1.msra.mxu0 %v777
    %1883 = vmatprep.subr.mxu0 %v782
    %1884 = vmatpush1.msra.mxu0 %v781
    %1885 = vmatprep.subr.mxu0 %v786
    %1886 = vmatpush1.msra.mxu0 %v785
    %1887 = vmatprep.subr.mxu0 %v790
    %1888 = vmatpush1.msra.mxu0 %v789
    %1889 = vmatprep.subr.mxu0 %v794
    %1890 = vmatpush1.msra.mxu0 %v793
    %1891 = vmatprep.subr.mxu0 %v798
    %1892 = vmatpush1.msra.mxu0 %v797
    %1893 = vmatprep.subr.mxu0 %v802
    %1894 = vmatpush1.msra.mxu0 %v801
    %1895 = vmatprep.subr.mxu0 %v806
    %1896 = vmatpush1.msra.mxu0 %v805
    %1897 = vmatprep.subr.mxu0 %v810
    %1898 = vmatpush1.msra.mxu0 %v809
    %1899 = vmatprep.subr.mxu0 %v814
    %1900 = vmatpush1.msra.mxu0 %v813
    %1901 = vmatprep.subr.mxu0 %v818
    %1902 = vmatpush1.msra.mxu0 %v817
    %1903 = vmatprep.subr.mxu0 %v822
    %1904 = vmatpush1.msra.mxu0 %v821
    %1905 = vmatprep.subr.mxu0 0.0
    %1906 = vmatpush1.msra.mxu0 0.0
    %1907 = vmatprep.subr.mxu0 0.0
    %1908 = vmatpush1.msra.mxu0 0.0
    %1909 = vmatprep.subr.mxu0 0.0
    %1910 = vmatpush1.msra.mxu0 0.0
    %1911 = vmatprep.subr.mxu0 0.0
    %1912 = vmatpush1.msra.mxu0 0.0
    %1913 = vmatprep.subr.mxu0 0.0
    %1914 = vmatpush1.msra.mxu0 0.0
    %1915 = vmatprep.subr.mxu0 0.0
    %1916 = vmatpush1.msra.mxu0 0.0
    %1917 = vmatprep.subr.mxu0 0.0
    %1918 = vmatpush1.msra.mxu0 0.0
    %1919 = vmatprep.subr.mxu0 0.0
    %1920 = vmatpush1.msra.mxu0 0.0
    %1921 = vmatprep.subr.mxu0 0.0
    %1922 = vmatpush1.msra.mxu0 0.0
    %1923 = vmatprep.subr.mxu0 0.0
    %1924 = vmatpush1.msra.mxu0 0.0
    %1925 = vmatprep.subr.mxu0 0.0
    %1926 = vmatpush1.msra.mxu0 0.0
    %1927 = vmatprep.subr.mxu0 0.0
    %1928 = vmatpush1.msra.mxu0 0.0
    %1929 = vmatprep.subr.mxu0 0.0
    %1930 = vmatpush1.msra.mxu0 0.0
    %1931 = vmatprep.subr.mxu0 0.0
    %1932 = vmatpush1.msra.mxu0 0.0
    %1933 = vmatprep.subr.mxu0 0.0
    %1934 = vmatpush1.msra.mxu0 0.0
    %1935 = vmatprep.subr.mxu0 0.0
    %1936 = vmatpush1.msra.mxu0 0.0
    %1937 = vmatprep.mubr.f32.mxu0 0.0
    %1938 = vmatmul.mubr.f32.gmra.mrb[0].mxu0 %v1868
    %v1939 = vpop.f32.mrb[0].mxu0
    %v1940 = vadd.f32 0.0, %v1939
    %v1941 = vpop.f32.mrb[0].mxu0
    %v1942 = vadd.f32 0.0, %v1941
    %1943 = vdwg.mxu0
    %1944 = vmatprep.subr.mxu0 %v764
    %1945 = vmatpush1.msra.mxu0 %v763
    %1946 = vmatprep.subr.mxu0 %v768
    %1947 = vmatpush1.msra.mxu0 %v767
    %1948 = vmatprep.subr.mxu0 %v772
    %1949 = vmatpush1.msra.mxu0 %v771
    %1950 = vmatprep.subr.mxu0 %v776
    %1951 = vmatpush1.msra.mxu0 %v775
    %1952 = vmatprep.subr.mxu0 %v780
    %1953 = vmatpush1.msra.mxu0 %v779
    %1954 = vmatprep.subr.mxu0 %v784
    %1955 = vmatpush1.msra.mxu0 %v783
    %1956 = vmatprep.subr.mxu0 %v788
    %1957 = vmatpush1.msra.mxu0 %v787
    %1958 = vmatprep.subr.mxu0 %v792
    %1959 = vmatpush1.msra.mxu0 %v791
    %1960 = vmatprep.subr.mxu0 %v796
    %1961 = vmatpush1.msra.mxu0 %v795
    %1962 = vmatprep.subr.mxu0 %v800
    %1963 = vmatpush1.msra.mxu0 %v799
    %1964 = vmatprep.subr.mxu0 %v804
    %1965 = vmatpush1.msra.mxu0 %v803
    %1966 = vmatprep.subr.mxu0 %v808
    %1967 = vmatpush1.msra.mxu0 %v807
    %1968 = vmatprep.subr.mxu0 %v812
    %1969 = vmatpush1.msra.mxu0 %v811
    %1970 = vmatprep.subr.mxu0 %v816
    %1971 = vmatpush1.msra.mxu0 %v815
    %1972 = vmatprep.subr.mxu0 %v820
    %1973 = vmatpush1.msra.mxu0 %v819
    %1974 = vmatprep.subr.mxu0 %v824
    %1975 = vmatpush1.msra.mxu0 %v823
    %1976 = vmatprep.subr.mxu0 0.0
    %1977 = vmatpush1.msra.mxu0 0.0
    %1978 = vmatprep.subr.mxu0 0.0
    %1979 = vmatpush1.msra.mxu0 0.0
    %1980 = vmatprep.subr.mxu0 0.0
    %1981 = vmatpush1.msra.mxu0 0.0
    %1982 = vmatprep.subr.mxu0 0.0
    %1983 = vmatpush1.msra.mxu0 0.0
    %1984 = vmatprep.subr.mxu0 0.0
    %1985 = vmatpush1.msra.mxu0 0.0
    %1986 = vmatprep.subr.mxu0 0.0
    %1987 = vmatpush1.msra.mxu0 0.0
    %1988 = vmatprep.subr.mxu0 0.0
    %1989 = vmatpush1.msra.mxu0 0.0
    %1990 = vmatprep.subr.mxu0 0.0
    %1991 = vmatpush1.msra.mxu0 0.0
    %1992 = vmatprep.subr.mxu0 0.0
    %1993 = vmatpush1.msra.mxu0 0.0
    %1994 = vmatprep.subr.mxu0 0.0
    %1995 = vmatpush1.msra.mxu0 0.0
    %1996 = vmatprep.subr.mxu0 0.0
    %1997 = vmatpush1.msra.mxu0 0.0
    %1998 = vmatprep.subr.mxu0 0.0
    %1999 = vmatpush1.msra.mxu0 0.0
    %2000 = vmatprep.subr.mxu0 0.0
    %2001 = vmatpush1.msra.mxu0 0.0
    %2002 = vmatprep.subr.mxu0 0.0
    %2003 = vmatpush1.msra.mxu0 0.0
    %2004 = vmatprep.subr.mxu0 0.0
    %2005 = vmatpush1.msra.mxu0 0.0
    %2006 = vmatprep.subr.mxu0 0.0
    %2007 = vmatpush1.msra.mxu0 0.0
    %2008 = vmatprep.mubr.f32.mxu0 0.0
    %2009 = vmatmul.mubr.f32.gmra.mrb[0].mxu0 %v1868
    %v2010 = vpop.f32.mrb[0].mxu0
    %v2011 = vadd.f32 0.0, %v2010
    %v2012 = vpop.f32.mrb[0].mxu0
    %v2013 = vadd.f32 0.0, %v2012
    %2014 = vdwg.mxu0
    %v2015 = vadd.f32 %v1869, %v1940
    %v2016 = vadd.f32 %v1870, %v1942
    %v2017 = vadd.f32 %v1871, %v2011
    %v2018 = vadd.f32 %v1872, %v2013
    %v2019 = vxor.u32 %v2015, 2147483648
    %v2020 = vxor.u32 %v2016, 2147483648
    %v2021 = vxor.u32 %v2017, 2147483648
    %v2022 = vmul.f32 %v2019, 1.442695
    %v2023 = vpow.pop %v2022
    %v2024 = vmul.f32 %v2020, 1.442695
    %v2025 = vpow.pop %v2024
    %v2026 = vmul.f32 %v2021, 1.442695
    %v2027 = vpow.pop %v2026
    %v2028 = vadd.f32 %v2023, 1.0
    %v2029 = vadd.f32 %v2025, 1.0
    %v2030 = vadd.f32 %v2027, 1.0
    %v2031 = vrcp.pop %v2028
    %v2032 = vmul.f32 1.0, %v2031
    %v2033 = vrcp.pop %v2029
    %v2034 = vmul.f32 1.0, %v2033
    %v2035 = vrcp.pop %v2030
    %v2036 = vmul.f32 1.0, %v2035
    %v2037 = vtanh.pop %v2018
    %v2038 = vmul.f32 %v2034, %v1866
    %v2039 = vmul.f32 %v2032, %v2037
    %v2040 = vadd.f32 %v2038, %v2039
    %v2041 = vtanh.pop %v2040
    %v2042 = vmul.f32 %v2036, %v2041
    %v2043 = vld [vmem:[%s0] sm:$0xff]
    %v2044 = vld [vmem:[%s3] sm:$0xff]
    %vm2045 = vcmask 457728
    %v2047 = vsel %vm2045, %v2044, 0
    %2049 = vmatprep.subr.mxu0 0.0
    %2050 = vmatpush1.msra.mxu0 %v998
    %2051 = vmatprep.subr.mxu0 0.0
    %2052 = vmatpush1.msra.mxu0 %v1172
    %2053 = vmatprep.subr.mxu0 0.0
    %2054 = vmatpush1.msra.mxu0 %v1346
    %2055 = vmatprep.subr.mxu0 0.0
    %2056 = vmatpush1.msra.mxu0 %v1520
    %2057 = vmatprep.subr.mxu0 0.0
    %2058 = vmatpush1.msra.mxu0 %v1694
    %2059 = vmatprep.subr.mxu0 0.0
    %2060 = vmatpush1.msra.mxu0 %v1868
    %2061 = vmatprep.subr.mxu0 0.0
    %2062 = vmatpush1.msra.mxu0 %v2042
    %2063 = vmatprep.subr.mxu0 0.0
    %2064 = vmatpush1.msra.mxu0 0.0
    %2065 = vmatprep.subr.mxu0 0.0
    %2066 = vmatpush1.msra.mxu0 0.0
    %2067 = vmatprep.subr.mxu0 0.0
    %2068 = vmatpush1.msra.mxu0 0.0
    %2069 = vmatprep.subr.mxu0 0.0
    %2070 = vmatpush1.msra.mxu0 0.0
    %2071 = vmatprep.subr.mxu0 0.0
    %2072 = vmatpush1.msra.mxu0 0.0
    %2073 = vmatprep.subr.mxu0 0.0
    %2074 = vmatpush1.msra.mxu0 0.0
    %2075 = vmatprep.subr.mxu0 0.0
    %2076 = vmatpush1.msra.mxu0 0.0
    %2077 = vmatprep.subr.mxu0 0.0
    %2078 = vmatpush1.msra.mxu0 0.0
    %2079 = vmatprep.subr.mxu0 0.0
    %2080 = vmatpush1.msra.mxu0 0.0
    %2081 = vmatprep.subr.mxu0 0.0
    %2082 = vmatpush1.msra.mxu0 0.0
    %2083 = vmatprep.subr.mxu0 0.0
    %2084 = vmatpush1.msra.mxu0 0.0
    %2085 = vmatprep.subr.mxu0 0.0
    %2086 = vmatpush1.msra.mxu0 0.0
    %2087 = vmatprep.subr.mxu0 0.0
    %2088 = vmatpush1.msra.mxu0 0.0
    %2089 = vmatprep.subr.mxu0 0.0
    %2090 = vmatpush1.msra.mxu0 0.0
    %2091 = vmatprep.subr.mxu0 0.0
    %2092 = vmatpush1.msra.mxu0 0.0
    %2093 = vmatprep.subr.mxu0 0.0
    %2094 = vmatpush1.msra.mxu0 0.0
    %2095 = vmatprep.subr.mxu0 0.0
    %2096 = vmatpush1.msra.mxu0 0.0
    %2097 = vmatprep.subr.mxu0 0.0
    %2098 = vmatpush1.msra.mxu0 0.0
    %2099 = vmatprep.subr.mxu0 0.0
    %2100 = vmatpush1.msra.mxu0 0.0
    %2101 = vmatprep.subr.mxu0 0.0
    %2102 = vmatpush1.msra.mxu0 0.0
    %2103 = vmatprep.subr.mxu0 0.0
    %2104 = vmatpush1.msra.mxu0 0.0
    %2105 = vmatprep.subr.mxu0 0.0
    %2106 = vmatpush1.msra.mxu0 0.0
    %2107 = vmatprep.subr.mxu0 0.0
    %2108 = vmatpush1.msra.mxu0 0.0
    %2109 = vmatprep.subr.mxu0 0.0
    %2110 = vmatpush1.msra.mxu0 0.0
    %2111 = vmatprep.subr.mxu0 0.0
    %2112 = vmatpush1.msra.mxu0 0.0
    %2113 = vmatprep.mubr.f32.mxu0 0.0
    %2114 = vmatmul.mubr.f32.gmra.mrb[0].mxu0 %v2047
    %v2115 = vpop.f32.mrb[0].mxu0
    %v2116 = vadd.f32 0.0, %v2115
    %v2117 = vpop.f32.mrb[0].mxu0
    %2118 = vdwg.mxu0
    %v2119 = vadd.f32 %v2043, %v2116
    %v2120 = vld [vmem:[#allocation8] sm:$0xff]
    %v2121 = vld [vmem:[#allocation8 + $0x8] sm:$0xff]
    %v2122 = vld [vmem:[#allocation8 + $0x10] sm:$0xff]
    %v2123 = vld [vmem:[#allocation8 + $0x18] sm:$0xff]
    %v2124 = vld [vmem:[#allocation8 + $0x20] sm:$0xff]
    %v2125 = vld [vmem:[#allocation8 + $0x28] sm:$0xff]
    %v2126 = vld [vmem:[#allocation8 + $0x30] sm:$0xff]
    %v2127 = vld [vmem:[#allocation8 + $0x38] sm:$0xff]
    %v2128 = vld [vmem:[#allocation8 + $0x40] sm:$0xff]
    %v2129 = vld [vmem:[#allocation8 + $0x48] sm:$0xff]
    %v2130 = vld [vmem:[#allocation8 + $0x50] sm:$0xff]
    %v2131 = vld [vmem:[#allocation8 + $0x58] sm:$0xff]
    %v2132 = vld [vmem:[#allocation8 + $0x60] sm:$0xff]
    %v2133 = vld [vmem:[#allocation8 + $0x68] sm:$0xff]
    %v2134 = vld [vmem:[#allocation8 + $0x70] sm:$0xff]
    %v2135 = vld [vmem:[#allocation8 + $0x78] sm:$0xff]
    %v2136 = vld [vmem:[#allocation8 + $0x80] sm:$0xff]
    %v2137 = vld [vmem:[#allocation8 + $0x88] sm:$0xff]
    %v2138 = vld [vmem:[#allocation8 + $0x90] sm:$0xff]
    %v2139 = vld [vmem:[#allocation8 + $0x98] sm:$0xff]
    %v2140 = vld [vmem:[#allocation8 + $0xa0] sm:$0xff]
    %v2141 = vld [vmem:[#allocation8 + $0xa8] sm:$0xff]
    %v2142 = vld [vmem:[#allocation8 + $0xb0] sm:$0xff]
    %v2143 = vld [vmem:[#allocation8 + $0xb8] sm:$0xff]
    %v2144 = vld [vmem:[#allocation8 + $0xc0] sm:$0xff]
    %v2145 = vld [vmem:[#allocation8 + $0xc8] sm:$0xff]
    %v2146 = vld [vmem:[#allocation8 + $0xd0] sm:$0xff]
    %v2147 = vld [vmem:[#allocation8 + $0xd8] sm:$0xff]
    %v2148 = vld [vmem:[#allocation8 + $0xe0] sm:$0xff]
    %v2149 = vld [vmem:[#allocation8 + $0xe8] sm:$0xff]
    %v2150 = vld [vmem:[#allocation8 + $0xf0] sm:$0xff]
    %v2151 = vld [vmem:[#allocation8 + $0xf8] sm:$0xff]
    %v2152 = vld [vmem:[#allocation8 + $0x100] sm:$0xff]
    %v2153 = vld [vmem:[#allocation8 + $0x108] sm:$0xff]
    %v2154 = vld [vmem:[#allocation8 + $0x110] sm:$0xff]
    %v2155 = vld [vmem:[#allocation8 + $0x118] sm:$0xff]
    %v2156 = vld [vmem:[#allocation8 + $0x120] sm:$0xff]
    %v2157 = vld [vmem:[#allocation8 + $0x128] sm:$0xff]
    %v2158 = vld [vmem:[#allocation8 + $0x130] sm:$0xff]
    %v2159 = vld [vmem:[#allocation8 + $0x138] sm:$0xff]
    %v2160 = vld [vmem:[#allocation8 + $0x140] sm:$0xff]
    %v2161 = vld [vmem:[#allocation8 + $0x148] sm:$0xff]
    %v2162 = vld [vmem:[#allocation8 + $0x150] sm:$0xff]
    %v2163 = vld [vmem:[#allocation8 + $0x158] sm:$0xff]
    %v2164 = vld [vmem:[#allocation8 + $0x160] sm:$0xff]
    %v2165 = vld [vmem:[#allocation8 + $0x168] sm:$0xff]
    %v2166 = vld [vmem:[#allocation8 + $0x170] sm:$0xff]
    %v2167 = vld [vmem:[#allocation8 + $0x178] sm:$0xff]
    %v2168 = vld [vmem:[#allocation8 + $0x180] sm:$0xff]
    %v2169 = vld [vmem:[#allocation8 + $0x188] sm:$0xff]
    %v2170 = vld [vmem:[#allocation8 + $0x190] sm:$0xff]
    %v2171 = vld [vmem:[#allocation8 + $0x198] sm:$0xff]
    %v2172 = vld [vmem:[#allocation8 + $0x1a0] sm:$0xff]
    %v2173 = vld [vmem:[#allocation8 + $0x1a8] sm:$0xff]
    %v2174 = vld [vmem:[#allocation8 + $0x1b0] sm:$0xff]
    %v2175 = vld [vmem:[#allocation8 + $0x1b8] sm:$0xff]
    %v2176 = vld [vmem:[#allocation8 + $0x1c0] sm:$0xff]
    %v2177 = vld [vmem:[#allocation8 + $0x1c8] sm:$0xff]
    %v2178 = vld [vmem:[#allocation8 + $0x1d0] sm:$0xff]
    %v2179 = vld [vmem:[#allocation8 + $0x1d8] sm:$0xff]
    %v2180 = vld [vmem:[#allocation8 + $0x1e0] sm:$0xff]
    %v2181 = vld [vmem:[#allocation8 + $0x1e8] sm:$0xff]
    %v2182 = vld [vmem:[#allocation8 + $0x1f0] sm:$0xff]
    %v2183 = vld [vmem:[#allocation8 + $0x1f8] sm:$0xff]
    %v2184 = vld [vmem:[%s11] sm:$0xf]
    %v2186 = vlaneseq
    %v2187 = vshrl.u32 %v2186, 7
    %v2188 = vsub.s32 0, %v2187
    %v2189 = vrot.slane %v2184, %v2188
    %v2190 = vlaneseq
    %v2191 = vshrl.u32 %v2190, 7
    %v2192 = vsub.s32 1, %v2191
    %v2193 = vrot.slane %v2184, %v2192
    %v2194 = vlaneseq
    %v2195 = vshrl.u32 %v2194, 7
    %v2196 = vsub.s32 2, %v2195
    %v2197 = vrot.slane %v2184, %v2196
    %v2198 = vlaneseq
    %v2199 = vshrl.u32 %v2198, 7
    %v2200 = vsub.s32 3, %v2199
    %v2201 = vrot.slane %v2184, %v2200
    %2206 = vmatprep.subr.mxu0 %v2121
    %2207 = vmatpush1.msra.mxu0 %v2120
    %2208 = vmatprep.subr.mxu0 %v2125
    %2209 = vmatpush1.msra.mxu0 %v2124
    %2210 = vmatprep.subr.mxu0 %v2129
    %2211 = vmatpush1.msra.mxu0 %v2128
    %2212 = vmatprep.subr.mxu0 %v2133
    %2213 = vmatpush1.msra.mxu0 %v2132
    %2214 = vmatprep.subr.mxu0 %v2137
    %2215 = vmatpush1.msra.mxu0 %v2136
    %2216 = vmatprep.subr.mxu0 %v2141
    %2217 = vmatpush1.msra.mxu0 %v2140
    %2218 = vmatprep.subr.mxu0 %v2145
    %2219 = vmatpush1.msra.mxu0 %v2144
    %2220 = vmatprep.subr.mxu0 %v2149
    %2221 = vmatpush1.msra.mxu0 %v2148
    %2222 = vmatprep.subr.mxu0 %v2153
    %2223 = vmatpush1.msra.mxu0 %v2152
    %2224 = vmatprep.subr.mxu0 %v2157
    %2225 = vmatpush1.msra.mxu0 %v2156
    %2226 = vmatprep.subr.mxu0 %v2161
    %2227 = vmatpush1.msra.mxu0 %v2160
    %2228 = vmatprep.subr.mxu0 %v2165
    %2229 = vmatpush1.msra.mxu0 %v2164
    %2230 = vmatprep.subr.mxu0 %v2169
    %2231 = vmatpush1.msra.mxu0 %v2168
    %2232 = vmatprep.subr.mxu0 %v2173
    %2233 = vmatpush1.msra.mxu0 %v2172
    %2234 = vmatprep.subr.mxu0 %v2177
    %2235 = vmatpush1.msra.mxu0 %v2176
    %2236 = vmatprep.subr.mxu0 %v2181
    %2237 = vmatpush1.msra.mxu0 %v2180
    %2238 = vmatprep.subr.mxu0 0.0
    %2239 = vmatpush1.msra.mxu0 0.0
    %2240 = vmatprep.subr.mxu0 0.0
    %2241 = vmatpush1.msra.mxu0 0.0
    %2242 = vmatprep.subr.mxu0 0.0
    %2243 = vmatpush1.msra.mxu0 0.0
    %2244 = vmatprep.subr.mxu0 0.0
    %2245 = vmatpush1.msra.mxu0 0.0
    %2246 = vmatprep.subr.mxu0 0.0
    %2247 = vmatpush1.msra.mxu0 0.0
    %2248 = vmatprep.subr.mxu0 0.0
    %2249 = vmatpush1.msra.mxu0 0.0
    %2250 = vmatprep.subr.mxu0 0.0
    %2251 = vmatpush1.msra.mxu0 0.0
    %2252 = vmatprep.subr.mxu0 0.0
    %2253 = vmatpush1.msra.mxu0 0.0
    %2254 = vmatprep.subr.mxu0 0.0
    %2255 = vmatpush1.msra.mxu0 0.0
    %2256 = vmatprep.subr.mxu0 0.0
    %2257 = vmatpush1.msra.mxu0 0.0
    %2258 = vmatprep.subr.mxu0 0.0
    %2259 = vmatpush1.msra.mxu0 0.0
    %2260 = vmatprep.subr.mxu0 0.0
    %2261 = vmatpush1.msra.mxu0 0.0
    %2262 = vmatprep.subr.mxu0 0.0
    %2263 = vmatpush1.msra.mxu0 0.0
    %2264 = vmatprep.subr.mxu0 0.0
    %2265 = vmatpush1.msra.mxu0 0.0
    %2266 = vmatprep.subr.mxu0 0.0
    %2267 = vmatpush1.msra.mxu0 0.0
    %2268 = vmatprep.subr.mxu0 0.0
    %2269 = vmatpush1.msra.mxu0 0.0
    %2270 = vmatprep.mubr.f32.mxu0 0.0
    %2271 = vmatmul.mubr.f32.gmra.mrb[0].mxu0 %v2119
    %v2272 = vpop.f32.mrb[0].mxu0
    %v2273 = vadd.f32 %v2189, %v2272
    %v2274 = vpop.f32.mrb[0].mxu0
    %v2275 = vadd.f32 %v2193, %v2274
    %2276 = vdwg.mxu0
    %2277 = vmatprep.subr.mxu0 %v2123
    %2278 = vmatpush1.msra.mxu0 %v2122
    %2279 = vmatprep.subr.mxu0 %v2127
    %2280 = vmatpush1.msra.mxu0 %v2126
    %2281 = vmatprep.subr.mxu0 %v2131
    %2282 = vmatpush1.msra.mxu0 %v2130
    %2283 = vmatprep.subr.mxu0 %v2135
    %2284 = vmatpush1.msra.mxu0 %v2134
    %2285 = vmatprep.subr.mxu0 %v2139
    %2286 = vmatpush1.msra.mxu0 %v2138
    %2287 = vmatprep.subr.mxu0 %v2143
    %2288 = vmatpush1.msra.mxu0 %v2142
    %2289 = vmatprep.subr.mxu0 %v2147
    %2290 = vmatpush1.msra.mxu0 %v2146
    %2291 = vmatprep.subr.mxu0 %v2151
    %2292 = vmatpush1.msra.mxu0 %v2150
    %2293 = vmatprep.subr.mxu0 %v2155
    %2294 = vmatpush1.msra.mxu0 %v2154
    %2295 = vmatprep.subr.mxu0 %v2159
    %2296 = vmatpush1.msra.mxu0 %v2158
    %2297 = vmatprep.subr.mxu0 %v2163
    %2298 = vmatpush1.msra.mxu0 %v2162
    %2299 = vmatprep.subr.mxu0 %v2167
    %2300 = vmatpush1.msra.mxu0 %v2166
    %2301 = vmatprep.subr.mxu0 %v2171
    %2302 = vmatpush1.msra.mxu0 %v2170
    %2303 = vmatprep.subr.mxu0 %v2175
    %2304 = vmatpush1.msra.mxu0 %v2174
    %2305 = vmatprep.subr.mxu0 %v2179
    %2306 = vmatpush1.msra.mxu0 %v2178
    %2307 = vmatprep.subr.mxu0 %v2183
    %2308 = vmatpush1.msra.mxu0 %v2182
    %2309 = vmatprep.subr.mxu0 0.0
    %2310 = vmatpush1.msra.mxu0 0.0
    %2311 = vmatprep.subr.mxu0 0.0
    %2312 = vmatpush1.msra.mxu0 0.0
    %2313 = vmatprep.subr.mxu0 0.0
    %2314 = vmatpush1.msra.mxu0 0.0
    %2315 = vmatprep.subr.mxu0 0.0
    %2316 = vmatpush1.msra.mxu0 0.0
    %2317 = vmatprep.subr.mxu0 0.0
    %2318 = vmatpush1.msra.mxu0 0.0
    %2319 = vmatprep.subr.mxu0 0.0
    %2320 = vmatpush1.msra.mxu0 0.0
    %2321 = vmatprep.subr.mxu0 0.0
    %2322 = vmatpush1.msra.mxu0 0.0
    %2323 = vmatprep.subr.mxu0 0.0
    %2324 = vmatpush1.msra.mxu0 0.0
    %2325 = vmatprep.subr.mxu0 0.0
    %2326 = vmatpush1.msra.mxu0 0.0
    %2327 = vmatprep.subr.mxu0 0.0
    %2328 = vmatpush1.msra.mxu0 0.0
    %2329 = vmatprep.subr.mxu0 0.0
    %2330 = vmatpush1.msra.mxu0 0.0
    %2331 = vmatprep.subr.mxu0 0.0
    %2332 = vmatpush1.msra.mxu0 0.0
    %2333 = vmatprep.subr.mxu0 0.0
    %2334 = vmatpush1.msra.mxu0 0.0
    %2335 = vmatprep.subr.mxu0 0.0
    %2336 = vmatpush1.msra.mxu0 0.0
    %2337 = vmatprep.subr.mxu0 0.0
    %2338 = vmatpush1.msra.mxu0 0.0
    %2339 = vmatprep.subr.mxu0 0.0
    %2340 = vmatpush1.msra.mxu0 0.0
    %2341 = vmatprep.mubr.f32.mxu0 0.0
    %2342 = vmatmul.mubr.f32.gmra.mrb[0].mxu0 %v2119
    %v2343 = vpop.f32.mrb[0].mxu0
    %v2344 = vadd.f32 %v2197, %v2343
    %v2345 = vpop.f32.mrb[0].mxu0
    %v2346 = vadd.f32 %v2201, %v2345
    %2347 = vdwg.mxu0
    %v2348 = vld [vmem:[#allocation9] sm:$0xff]
    %v2349 = vld [vmem:[#allocation9 + $0x8] sm:$0xff]
    %v2350 = vld [vmem:[#allocation9 + $0x10] sm:$0xff]
    %v2351 = vld [vmem:[#allocation9 + $0x18] sm:$0xff]
    %v2352 = vld [vmem:[#allocation9 + $0x20] sm:$0xff]
    %v2353 = vld [vmem:[#allocation9 + $0x28] sm:$0xff]
    %v2354 = vld [vmem:[#allocation9 + $0x30] sm:$0xff]
    %v2355 = vld [vmem:[#allocation9 + $0x38] sm:$0xff]
    %v2356 = vld [vmem:[#allocation9 + $0x40] sm:$0xff]
    %v2357 = vld [vmem:[#allocation9 + $0x48] sm:$0xff]
    %v2358 = vld [vmem:[#allocation9 + $0x50] sm:$0xff]
    %v2359 = vld [vmem:[#allocation9 + $0x58] sm:$0xff]
    %v2360 = vld [vmem:[#allocation9 + $0x60] sm:$0xff]
    %v2361 = vld [vmem:[#allocation9 + $0x68] sm:$0xff]
    %v2362 = vld [vmem:[#allocation9 + $0x70] sm:$0xff]
    %v2363 = vld [vmem:[#allocation9 + $0x78] sm:$0xff]
    %v2364 = vld [vmem:[#allocation9 + $0x80] sm:$0xff]
    %v2365 = vld [vmem:[#allocation9 + $0x88] sm:$0xff]
    %v2366 = vld [vmem:[#allocation9 + $0x90] sm:$0xff]
    %v2367 = vld [vmem:[#allocation9 + $0x98] sm:$0xff]
    %v2368 = vld [vmem:[#allocation9 + $0xa0] sm:$0xff]
    %v2369 = vld [vmem:[#allocation9 + $0xa8] sm:$0xff]
    %v2370 = vld [vmem:[#allocation9 + $0xb0] sm:$0xff]
    %v2371 = vld [vmem:[#allocation9 + $0xb8] sm:$0xff]
    %v2372 = vld [vmem:[#allocation9 + $0xc0] sm:$0xff]
    %v2373 = vld [vmem:[#allocation9 + $0xc8] sm:$0xff]
    %v2374 = vld [vmem:[#allocation9 + $0xd0] sm:$0xff]
    %v2375 = vld [vmem:[#allocation9 + $0xd8] sm:$0xff]
    %v2376 = vld [vmem:[#allocation9 + $0xe0] sm:$0xff]
    %v2377 = vld [vmem:[#allocation9 + $0xe8] sm:$0xff]
    %v2378 = vld [vmem:[#allocation9 + $0xf0] sm:$0xff]
    %v2379 = vld [vmem:[#allocation9 + $0xf8] sm:$0xff]
    %v2380 = vld [vmem:[#allocation9 + $0x100] sm:$0xff]
    %v2381 = vld [vmem:[#allocation9 + $0x108] sm:$0xff]
    %v2382 = vld [vmem:[#allocation9 + $0x110] sm:$0xff]
    %v2383 = vld [vmem:[#allocation9 + $0x118] sm:$0xff]
    %v2384 = vld [vmem:[#allocation9 + $0x120] sm:$0xff]
    %v2385 = vld [vmem:[#allocation9 + $0x128] sm:$0xff]
    %v2386 = vld [vmem:[#allocation9 + $0x130] sm:$0xff]
    %v2387 = vld [vmem:[#allocation9 + $0x138] sm:$0xff]
    %v2388 = vld [vmem:[#allocation9 + $0x140] sm:$0xff]
    %v2389 = vld [vmem:[#allocation9 + $0x148] sm:$0xff]
    %v2390 = vld [vmem:[#allocation9 + $0x150] sm:$0xff]
    %v2391 = vld [vmem:[#allocation9 + $0x158] sm:$0xff]
    %v2392 = vld [vmem:[#allocation9 + $0x160] sm:$0xff]
    %v2393 = vld [vmem:[#allocation9 + $0x168] sm:$0xff]
    %v2394 = vld [vmem:[#allocation9 + $0x170] sm:$0xff]
    %v2395 = vld [vmem:[#allocation9 + $0x178] sm:$0xff]
    %v2396 = vld [vmem:[#allocation9 + $0x180] sm:$0xff]
    %v2397 = vld [vmem:[#allocation9 + $0x188] sm:$0xff]
    %v2398 = vld [vmem:[#allocation9 + $0x190] sm:$0xff]
    %v2399 = vld [vmem:[#allocation9 + $0x198] sm:$0xff]
    %v2400 = vld [vmem:[#allocation9 + $0x1a0] sm:$0xff]
    %v2401 = vld [vmem:[#allocation9 + $0x1a8] sm:$0xff]
    %v2402 = vld [vmem:[#allocation9 + $0x1b0] sm:$0xff]
    %v2403 = vld [vmem:[#allocation9 + $0x1b8] sm:$0xff]
    %v2404 = vld [vmem:[#allocation9 + $0x1c0] sm:$0xff]
    %v2405 = vld [vmem:[#allocation9 + $0x1c8] sm:$0xff]
    %v2406 = vld [vmem:[#allocation9 + $0x1d0] sm:$0xff]
    %v2407 = vld [vmem:[#allocation9 + $0x1d8] sm:$0xff]
    %v2408 = vld [vmem:[#allocation9 + $0x1e0] sm:$0xff]
    %v2409 = vld [vmem:[#allocation9 + $0x1e8] sm:$0xff]
    %v2410 = vld [vmem:[#allocation9 + $0x1f0] sm:$0xff]
    %v2411 = vld [vmem:[#allocation9 + $0x1f8] sm:$0xff]
    %2412 = vmatprep.subr.mxu0 %v2349
    %2413 = vmatpush1.msra.mxu0 %v2348
    %2414 = vmatprep.subr.mxu0 %v2353
    %2415 = vmatpush1.msra.mxu0 %v2352
    %2416 = vmatprep.subr.mxu0 %v2357
    %2417 = vmatpush1.msra.mxu0 %v2356
    %2418 = vmatprep.subr.mxu0 %v2361
    %2419 = vmatpush1.msra.mxu0 %v2360
    %2420 = vmatprep.subr.mxu0 %v2365
    %2421 = vmatpush1.msra.mxu0 %v2364
    %2422 = vmatprep.subr.mxu0 %v2369
    %2423 = vmatpush1.msra.mxu0 %v2368
    %2424 = vmatprep.subr.mxu0 %v2373
    %2425 = vmatpush1.msra.mxu0 %v2372
    %2426 = vmatprep.subr.mxu0 %v2377
    %2427 = vmatpush1.msra.mxu0 %v2376
    %2428 = vmatprep.subr.mxu0 %v2381
    %2429 = vmatpush1.msra.mxu0 %v2380
    %2430 = vmatprep.subr.mxu0 %v2385
    %2431 = vmatpush1.msra.mxu0 %v2384
    %2432 = vmatprep.subr.mxu0 %v2389
    %2433 = vmatpush1.msra.mxu0 %v2388
    %2434 = vmatprep.subr.mxu0 %v2393
    %2435 = vmatpush1.msra.mxu0 %v2392
    %2436 = vmatprep.subr.mxu0 %v2397
    %2437 = vmatpush1.msra.mxu0 %v2396
    %2438 = vmatprep.subr.mxu0 %v2401
    %2439 = vmatpush1.msra.mxu0 %v2400
    %2440 = vmatprep.subr.mxu0 %v2405
    %2441 = vmatpush1.msra.mxu0 %v2404
    %2442 = vmatprep.subr.mxu0 %v2409
    %2443 = vmatpush1.msra.mxu0 %v2408
    %2444 = vmatprep.subr.mxu0 0.0
    %2445 = vmatpush1.msra.mxu0 0.0
    %2446 = vmatprep.subr.mxu0 0.0
    %2447 = vmatpush1.msra.mxu0 0.0
    %2448 = vmatprep.subr.mxu0 0.0
    %2449 = vmatpush1.msra.mxu0 0.0
    %2450 = vmatprep.subr.mxu0 0.0
    %2451 = vmatpush1.msra.mxu0 0.0
    %2452 = vmatprep.subr.mxu0 0.0
    %2453 = vmatpush1.msra.mxu0 0.0
    %2454 = vmatprep.subr.mxu0 0.0
    %2455 = vmatpush1.msra.mxu0 0.0
    %2456 = vmatprep.subr.mxu0 0.0
    %2457 = vmatpush1.msra.mxu0 0.0
    %2458 = vmatprep.subr.mxu0 0.0
    %2459 = vmatpush1.msra.mxu0 0.0
    %2460 = vmatprep.subr.mxu0 0.0
    %2461 = vmatpush1.msra.mxu0 0.0
    %2462 = vmatprep.subr.mxu0 0.0
    %2463 = vmatpush1.msra.mxu0 0.0
    %2464 = vmatprep.subr.mxu0 0.0
    %2465 = vmatpush1.msra.mxu0 0.0
    %2466 = vmatprep.subr.mxu0 0.0
    %2467 = vmatpush1.msra.mxu0 0.0
    %2468 = vmatprep.subr.mxu0 0.0
    %2469 = vmatpush1.msra.mxu0 0.0
    %2470 = vmatprep.subr.mxu0 0.0
    %2471 = vmatpush1.msra.mxu0 0.0
    %2472 = vmatprep.subr.mxu0 0.0
    %2473 = vmatpush1.msra.mxu0 0.0
    %2474 = vmatprep.subr.mxu0 0.0
    %2475 = vmatpush1.msra.mxu0 0.0
    %2476 = vmatprep.mubr.f32.mxu0 0.0
    %2477 = vmatmul.mubr.f32.gmra.mrb[0].mxu0 %v2119
    %v2478 = vpop.f32.mrb[0].mxu0
    %v2479 = vadd.f32 0.0, %v2478
    %v2480 = vpop.f32.mrb[0].mxu0
    %v2481 = vadd.f32 0.0, %v2480
    %2482 = vdwg.mxu0
    %2483 = vmatprep.subr.mxu0 %v2351
    %2484 = vmatpush1.msra.mxu0 %v2350
    %2485 = vmatprep.subr.mxu0 %v2355
    %2486 = vmatpush1.msra.mxu0 %v2354
    %2487 = vmatprep.subr.mxu0 %v2359
    %2488 = vmatpush1.msra.mxu0 %v2358
    %2489 = vmatprep.subr.mxu0 %v2363
    %2490 = vmatpush1.msra.mxu0 %v2362
    %2491 = vmatprep.subr.mxu0 %v2367
    %2492 = vmatpush1.msra.mxu0 %v2366
    %2493 = vmatprep.subr.mxu0 %v2371
    %2494 = vmatpush1.msra.mxu0 %v2370
    %2495 = vmatprep.subr.mxu0 %v2375
    %2496 = vmatpush1.msra.mxu0 %v2374
    %2497 = vmatprep.subr.mxu0 %v2379
    %2498 = vmatpush1.msra.mxu0 %v2378
    %2499 = vmatprep.subr.mxu0 %v2383
    %2500 = vmatpush1.msra.mxu0 %v2382
    %2501 = vmatprep.subr.mxu0 %v2387
    %2502 = vmatpush1.msra.mxu0 %v2386
    %2503 = vmatprep.subr.mxu0 %v2391
    %2504 = vmatpush1.msra.mxu0 %v2390
    %2505 = vmatprep.subr.mxu0 %v2395
    %2506 = vmatpush1.msra.mxu0 %v2394
    %2507 = vmatprep.subr.mxu0 %v2399
    %2508 = vmatpush1.msra.mxu0 %v2398
    %2509 = vmatprep.subr.mxu0 %v2403
    %2510 = vmatpush1.msra.mxu0 %v2402
    %2511 = vmatprep.subr.mxu0 %v2407
    %2512 = vmatpush1.msra.mxu0 %v2406
    %2513 = vmatprep.subr.mxu0 %v2411
    %2514 = vmatpush1.msra.mxu0 %v2410
    %2515 = vmatprep.subr.mxu0 0.0
    %2516 = vmatpush1.msra.mxu0 0.0
    %2517 = vmatprep.subr.mxu0 0.0
    %2518 = vmatpush1.msra.mxu0 0.0
    %2519 = vmatprep.subr.mxu0 0.0
    %2520 = vmatpush1.msra.mxu0 0.0
    %2521 = vmatprep.subr.mxu0 0.0
    %2522 = vmatpush1.msra.mxu0 0.0
    %2523 = vmatprep.subr.mxu0 0.0
    %2524 = vmatpush1.msra.mxu0 0.0
    %2525 = vmatprep.subr.mxu0 0.0
    %2526 = vmatpush1.msra.mxu0 0.0
    %2527 = vmatprep.subr.mxu0 0.0
    %2528 = vmatpush1.msra.mxu0 0.0
    %2529 = vmatprep.subr.mxu0 0.0
    %2530 = vmatpush1.msra.mxu0 0.0
    %2531 = vmatprep.subr.mxu0 0.0
    %2532 = vmatpush1.msra.mxu0 0.0
    %2533 = vmatprep.subr.mxu0 0.0
    %2534 = vmatpush1.msra.mxu0 0.0
    %2535 = vmatprep.subr.mxu0 0.0
    %2536 = vmatpush1.msra.mxu0 0.0
    %2537 = vmatprep.subr.mxu0 0.0
    %2538 = vmatpush1.msra.mxu0 0.0
    %2539 = vmatprep.subr.mxu0 0.0
    %2540 = vmatpush1.msra.mxu0 0.0
    %2541 = vmatprep.subr.mxu0 0.0
    %2542 = vmatpush1.msra.mxu0 0.0
    %2543 = vmatprep.subr.mxu0 0.0
    %2544 = vmatpush1.msra.mxu0 0.0
    %2545 = vmatprep.subr.mxu0 0.0
    %2546 = vmatpush1.msra.mxu0 0.0
    %2547 = vmatprep.mubr.f32.mxu0 0.0
    %2548 = vmatmul.mubr.f32.gmra.mrb[0].mxu0 %v2119
    %v2549 = vpop.f32.mrb[0].mxu0
    %v2550 = vadd.f32 0.0, %v2549
    %v2551 = vpop.f32.mrb[0].mxu0
    %v2552 = vadd.f32 0.0, %v2551
    %2553 = vdwg.mxu0
    %v2554 = vld [vmem:[#allocation11] sm:$0xff]
    %v2555 = vld [vmem:[#allocation11 + $0x8] sm:$0xff]
    %v2556 = vld [vmem:[#allocation11 + $0x10] sm:$0xff]
    %v2557 = vld [vmem:[#allocation11 + $0x18] sm:$0xff]
    %v2558 = vld [vmem:[#allocation11 + $0x20] sm:$0xff]
    %v2559 = vld [vmem:[#allocation11 + $0x28] sm:$0xff]
    %v2560 = vld [vmem:[#allocation11 + $0x30] sm:$0xff]
    %v2561 = vld [vmem:[#allocation11 + $0x38] sm:$0xff]
    %v2562 = vld [vmem:[#allocation11 + $0x40] sm:$0xff]
    %v2563 = vld [vmem:[#allocation11 + $0x48] sm:$0xff]
    %v2564 = vld [vmem:[#allocation11 + $0x50] sm:$0xff]
    %v2565 = vld [vmem:[#allocation11 + $0x58] sm:$0xff]
    %v2566 = vld [vmem:[#allocation11 + $0x60] sm:$0xff]
    %v2567 = vld [vmem:[#allocation11 + $0x68] sm:$0xff]
    %v2568 = vld [vmem:[#allocation11 + $0x70] sm:$0xff]
    %v2569 = vld [vmem:[#allocation11 + $0x78] sm:$0xff]
    %v2570 = vld [vmem:[#allocation11 + $0x80] sm:$0xff]
    %v2571 = vld [vmem:[#allocation11 + $0x88] sm:$0xff]
    %v2572 = vld [vmem:[#allocation11 + $0x90] sm:$0xff]
    %v2573 = vld [vmem:[#allocation11 + $0x98] sm:$0xff]
    %v2574 = vld [vmem:[#allocation11 + $0xa0] sm:$0xff]
    %v2575 = vld [vmem:[#allocation11 + $0xa8] sm:$0xff]
    %v2576 = vld [vmem:[#allocation11 + $0xb0] sm:$0xff]
    %v2577 = vld [vmem:[#allocation11 + $0xb8] sm:$0xff]
    %v2578 = vld [vmem:[#allocation11 + $0xc0] sm:$0xff]
    %v2579 = vld [vmem:[#allocation11 + $0xc8] sm:$0xff]
    %v2580 = vld [vmem:[#allocation11 + $0xd0] sm:$0xff]
    %v2581 = vld [vmem:[#allocation11 + $0xd8] sm:$0xff]
    %v2582 = vld [vmem:[#allocation11 + $0xe0] sm:$0xff]
    %v2583 = vld [vmem:[#allocation11 + $0xe8] sm:$0xff]
    %v2584 = vld [vmem:[#allocation11 + $0xf0] sm:$0xff]
    %v2585 = vld [vmem:[#allocation11 + $0xf8] sm:$0xff]
    %v2586 = vld [vmem:[#allocation11 + $0x100] sm:$0xff]
    %v2587 = vld [vmem:[#allocation11 + $0x108] sm:$0xff]
    %v2588 = vld [vmem:[#allocation11 + $0x110] sm:$0xff]
    %v2589 = vld [vmem:[#allocation11 + $0x118] sm:$0xff]
    %v2590 = vld [vmem:[#allocation11 + $0x120] sm:$0xff]
    %v2591 = vld [vmem:[#allocation11 + $0x128] sm:$0xff]
    %v2592 = vld [vmem:[#allocation11 + $0x130] sm:$0xff]
    %v2593 = vld [vmem:[#allocation11 + $0x138] sm:$0xff]
    %v2594 = vld [vmem:[#allocation11 + $0x140] sm:$0xff]
    %v2595 = vld [vmem:[#allocation11 + $0x148] sm:$0xff]
    %v2596 = vld [vmem:[#allocation11 + $0x150] sm:$0xff]
    %v2597 = vld [vmem:[#allocation11 + $0x158] sm:$0xff]
    %v2598 = vld [vmem:[#allocation11 + $0x160] sm:$0xff]
    %v2599 = vld [vmem:[#allocation11 + $0x168] sm:$0xff]
    %v2600 = vld [vmem:[#allocation11 + $0x170] sm:$0xff]
    %v2601 = vld [vmem:[#allocation11 + $0x178] sm:$0xff]
    %v2602 = vld [vmem:[#allocation11 + $0x180] sm:$0xff]
    %v2603 = vld [vmem:[#allocation11 + $0x188] sm:$0xff]
    %v2604 = vld [vmem:[#allocation11 + $0x190] sm:$0xff]
    %v2605 = vld [vmem:[#allocation11 + $0x198] sm:$0xff]
    %v2606 = vld [vmem:[#allocation11 + $0x1a0] sm:$0xff]
    %v2607 = vld [vmem:[#allocation11 + $0x1a8] sm:$0xff]
    %v2608 = vld [vmem:[#allocation11 + $0x1b0] sm:$0xff]
    %v2609 = vld [vmem:[#allocation11 + $0x1b8] sm:$0xff]
    %v2610 = vld [vmem:[#allocation11 + $0x1c0] sm:$0xff]
    %v2611 = vld [vmem:[#allocation11 + $0x1c8] sm:$0xff]
    %v2612 = vld [vmem:[#allocation11 + $0x1d0] sm:$0xff]
    %v2613 = vld [vmem:[#allocation11 + $0x1d8] sm:$0xff]
    %v2614 = vld [vmem:[#allocation11 + $0x1e0] sm:$0xff]
    %v2615 = vld [vmem:[#allocation11 + $0x1e8] sm:$0xff]
    %v2616 = vld [vmem:[#allocation11 + $0x1f0] sm:$0xff]
    %v2617 = vld [vmem:[#allocation11 + $0x1f8] sm:$0xff]
    %v2622 = vrot.slane %v2479, 7
    %v2623 = vrot.slane %v2481, 7
    %v2624 = vrot.slane %v2550, 7
    %v2625 = vrot.slane %v2552, 7
    %v2630 = vadd.f32 %v2273, %v2622
    %v2631 = vadd.f32 %v2275, %v2623
    %v2632 = vadd.f32 %v2344, %v2624
    %v2633 = vadd.f32 %v2346, %v2625
    %2634 = vmatprep.subr.mxu0 %v2555
    %2635 = vmatpush1.msra.mxu0 %v2554
    %2636 = vmatprep.subr.mxu0 %v2559
    %2637 = vmatpush1.msra.mxu0 %v2558
    %2638 = vmatprep.subr.mxu0 %v2563
    %2639 = vmatpush1.msra.mxu0 %v2562
    %2640 = vmatprep.subr.mxu0 %v2567
    %2641 = vmatpush1.msra.mxu0 %v2566
    %2642 = vmatprep.subr.mxu0 %v2571
    %2643 = vmatpush1.msra.mxu0 %v2570
    %2644 = vmatprep.subr.mxu0 %v2575
    %2645 = vmatpush1.msra.mxu0 %v2574
    %2646 = vmatprep.subr.mxu0 %v2579
    %2647 = vmatpush1.msra.mxu0 %v2578
    %2648 = vmatprep.subr.mxu0 %v2583
    %2649 = vmatpush1.msra.mxu0 %v2582
    %2650 = vmatprep.subr.mxu0 %v2587
    %2651 = vmatpush1.msra.mxu0 %v2586
    %2652 = vmatprep.subr.mxu0 %v2591
    %2653 = vmatpush1.msra.mxu0 %v2590
    %2654 = vmatprep.subr.mxu0 %v2595
    %2655 = vmatpush1.msra.mxu0 %v2594
    %2656 = vmatprep.subr.mxu0 %v2599
    %2657 = vmatpush1.msra.mxu0 %v2598
    %2658 = vmatprep.subr.mxu0 %v2603
    %2659 = vmatpush1.msra.mxu0 %v2602
    %2660 = vmatprep.subr.mxu0 %v2607
    %2661 = vmatpush1.msra.mxu0 %v2606
    %2662 = vmatprep.subr.mxu0 %v2611
    %2663 = vmatpush1.msra.mxu0 %v2610
    %2664 = vmatprep.subr.mxu0 %v2615
    %2665 = vmatpush1.msra.mxu0 %v2614
    %2666 = vmatprep.subr.mxu0 0.0
    %2667 = vmatpush1.msra.mxu0 0.0
    %2668 = vmatprep.subr.mxu0 0.0
    %2669 = vmatpush1.msra.mxu0 0.0
    %2670 = vmatprep.subr.mxu0 0.0
    %2671 = vmatpush1.msra.mxu0 0.0
    %2672 = vmatprep.subr.mxu0 0.0
    %2673 = vmatpush1.msra.mxu0 0.0
    %2674 = vmatprep.subr.mxu0 0.0
    %2675 = vmatpush1.msra.mxu0 0.0
    %2676 = vmatprep.subr.mxu0 0.0
    %2677 = vmatpush1.msra.mxu0 0.0
    %2678 = vmatprep.subr.mxu0 0.0
    %2679 = vmatpush1.msra.mxu0 0.0
    %2680 = vmatprep.subr.mxu0 0.0
    %2681 = vmatpush1.msra.mxu0 0.0
    %2682 = vmatprep.subr.mxu0 0.0
    %2683 = vmatpush1.msra.mxu0 0.0
    %2684 = vmatprep.subr.mxu0 0.0
    %2685 = vmatpush1.msra.mxu0 0.0
    %2686 = vmatprep.subr.mxu0 0.0
    %2687 = vmatpush1.msra.mxu0 0.0
    %2688 = vmatprep.subr.mxu0 0.0
    %2689 = vmatpush1.msra.mxu0 0.0
    %2690 = vmatprep.subr.mxu0 0.0
    %2691 = vmatpush1.msra.mxu0 0.0
    %2692 = vmatprep.subr.mxu0 0.0
    %2693 = vmatpush1.msra.mxu0 0.0
    %2694 = vmatprep.subr.mxu0 0.0
    %2695 = vmatpush1.msra.mxu0 0.0
    %2696 = vmatprep.subr.mxu0 0.0
    %2697 = vmatpush1.msra.mxu0 0.0
    %2698 = vmatprep.mubr.f32.mxu0 0.0
    %2699 = vmatmul.mubr.f32.gmra.mrb[0].mxu0 0.0
    %v2700 = vpop.f32.mrb[0].mxu0
    %v2701 = vadd.f32 0.0, %v2700
    %v2702 = vpop.f32.mrb[0].mxu0
    %v2703 = vadd.f32 0.0, %v2702
    %2704 = vdwg.mxu0
    %2705 = vmatprep.subr.mxu0 %v2557
    %2706 = vmatpush1.msra.mxu0 %v2556
    %2707 = vmatprep.subr.mxu0 %v2561
    %2708 = vmatpush1.msra.mxu0 %v2560
    %2709 = vmatprep.subr.mxu0 %v2565
    %2710 = vmatpush1.msra.mxu0 %v2564
    %2711 = vmatprep.subr.mxu0 %v2569
    %2712 = vmatpush1.msra.mxu0 %v2568
    %2713 = vmatprep.subr.mxu0 %v2573
    %2714 = vmatpush1.msra.mxu0 %v2572
    %2715 = vmatprep.subr.mxu0 %v2577
    %2716 = vmatpush1.msra.mxu0 %v2576
    %2717 = vmatprep.subr.mxu0 %v2581
    %2718 = vmatpush1.msra.mxu0 %v2580
    %2719 = vmatprep.subr.mxu0 %v2585
    %2720 = vmatpush1.msra.mxu0 %v2584
    %2721 = vmatprep.subr.mxu0 %v2589
    %2722 = vmatpush1.msra.mxu0 %v2588
    %2723 = vmatprep.subr.mxu0 %v2593
    %2724 = vmatpush1.msra.mxu0 %v2592
    %2725 = vmatprep.subr.mxu0 %v2597
    %2726 = vmatpush1.msra.mxu0 %v2596
    %2727 = vmatprep.subr.mxu0 %v2601
    %2728 = vmatpush1.msra.mxu0 %v2600
    %2729 = vmatprep.subr.mxu0 %v2605
    %2730 = vmatpush1.msra.mxu0 %v2604
    %2731 = vmatprep.subr.mxu0 %v2609
    %2732 = vmatpush1.msra.mxu0 %v2608
    %2733 = vmatprep.subr.mxu0 %v2613
    %2734 = vmatpush1.msra.mxu0 %v2612
    %2735 = vmatprep.subr.mxu0 %v2617
    %2736 = vmatpush1.msra.mxu0 %v2616
    %2737 = vmatprep.subr.mxu0 0.0
    %2738 = vmatpush1.msra.mxu0 0.0
    %2739 = vmatprep.subr.mxu0 0.0
    %2740 = vmatpush1.msra.mxu0 0.0
    %2741 = vmatprep.subr.mxu0 0.0
    %2742 = vmatpush1.msra.mxu0 0.0
    %2743 = vmatprep.subr.mxu0 0.0
    %2744 = vmatpush1.msra.mxu0 0.0
    %2745 = vmatprep.subr.mxu0 0.0
    %2746 = vmatpush1.msra.mxu0 0.0
    %2747 = vmatprep.subr.mxu0 0.0
    %2748 = vmatpush1.msra.mxu0 0.0
    %2749 = vmatprep.subr.mxu0 0.0
    %2750 = vmatpush1.msra.mxu0 0.0
    %2751 = vmatprep.subr.mxu0 0.0
    %2752 = vmatpush1.msra.mxu0 0.0
    %2753 = vmatprep.subr.mxu0 0.0
    %2754 = vmatpush1.msra.mxu0 0.0
    %2755 = vmatprep.subr.mxu0 0.0
    %2756 = vmatpush1.msra.mxu0 0.0
    %2757 = vmatprep.subr.mxu0 0.0
    %2758 = vmatpush1.msra.mxu0 0.0
    %2759 = vmatprep.subr.mxu0 0.0
    %2760 = vmatpush1.msra.mxu0 0.0
    %2761 = vmatprep.subr.mxu0 0.0
    %2762 = vmatpush1.msra.mxu0 0.0
    %2763 = vmatprep.subr.mxu0 0.0
    %2764 = vmatpush1.msra.mxu0 0.0
    %2765 = vmatprep.subr.mxu0 0.0
    %2766 = vmatpush1.msra.mxu0 0.0
    %2767 = vmatprep.subr.mxu0 0.0
    %2768 = vmatpush1.msra.mxu0 0.0
    %2769 = vmatprep.mubr.f32.mxu0 0.0
    %2770 = vmatmul.mubr.f32.gmra.mrb[0].mxu0 0.0
    %v2771 = vpop.f32.mrb[0].mxu0
    %v2772 = vadd.f32 0.0, %v2771
    %v2773 = vpop.f32.mrb[0].mxu0
    %v2774 = vadd.f32 0.0, %v2773
    %2775 = vdwg.mxu0
    %v2776 = vadd.f32 %v2630, %v2701
    %v2777 = vadd.f32 %v2631, %v2703
    %v2778 = vadd.f32 %v2632, %v2772
    %v2779 = vadd.f32 %v2633, %v2774
    %v2780 = vxor.u32 %v2776, 2147483648
    %v2781 = vxor.u32 %v2777, 2147483648
    %v2782 = vxor.u32 %v2778, 2147483648
    %v2783 = vmul.f32 %v2780, 1.442695
    %v2784 = vpow.pop %v2783
    %v2785 = vmul.f32 %v2781, 1.442695
    %v2786 = vpow.pop %v2785
    %v2787 = vmul.f32 %v2782, 1.442695
    %v2788 = vpow.pop %v2787
    %v2789 = vadd.f32 %v2784, 1.0
    %v2790 = vadd.f32 %v2786, 1.0
    %v2791 = vadd.f32 %v2788, 1.0
    %v2792 = vrcp.pop %v2789
    %v2793 = vmul.f32 1.0, %v2792
    %v2794 = vrcp.pop %v2790
    %v2795 = vmul.f32 1.0, %v2794
    %v2796 = vrcp.pop %v2791
    %v2797 = vmul.f32 1.0, %v2796
    %v2798 = vtanh.pop %v2779
    %v2799 = vmul.f32 %v2795, 0.0
    %v2800 = vmul.f32 %v2793, %v2798
    %v2801 = vadd.f32 %v2799, %v2800
    %v2802 = vtanh.pop %v2801
    %v2803 = vmul.f32 %v2797, %v2802
    %v2804 = vrot.slane %v2479, 5
    %v2805 = vrot.slane %v2481, 5
    %v2806 = vrot.slane %v2550, 5
    %v2807 = vrot.slane %v2552, 5
    %v2812 = vadd.f32 %v2273, %v2804
    %v2813 = vadd.f32 %v2275, %v2805
    %v2814 = vadd.f32 %v2344, %v2806
    %v2815 = vadd.f32 %v2346, %v2807
    %2816 = vmatprep.subr.mxu0 %v2555
    %2817 = vmatpush1.msra.mxu0 %v2554
    %2818 = vmatprep.subr.mxu0 %v2559
    %2819 = vmatpush1.msra.mxu0 %v2558
    %2820 = vmatprep.subr.mxu0 %v2563
    %2821 = vmatpush1.msra.mxu0 %v2562
    %2822 = vmatprep.subr.mxu0 %v2567
    %2823 = vmatpush1.msra.mxu0 %v2566
    %2824 = vmatprep.subr.mxu0 %v2571
    %2825 = vmatpush1.msra.mxu0 %v2570
    %2826 = vmatprep.subr.mxu0 %v2575
    %2827 = vmatpush1.msra.mxu0 %v2574
    %2828 = vmatprep.subr.mxu0 %v2579
    %2829 = vmatpush1.msra.mxu0 %v2578
    %2830 = vmatprep.subr.mxu0 %v2583
    %2831 = vmatpush1.msra.mxu0 %v2582
    %2832 = vmatprep.subr.mxu0 %v2587
    %2833 = vmatpush1.msra.mxu0 %v2586
    %2834 = vmatprep.subr.mxu0 %v2591
    %2835 = vmatpush1.msra.mxu0 %v2590
    %2836 = vmatprep.subr.mxu0 %v2595
    %2837 = vmatpush1.msra.mxu0 %v2594
    %2838 = vmatprep.subr.mxu0 %v2599
    %2839 = vmatpush1.msra.mxu0 %v2598
    %2840 = vmatprep.subr.mxu0 %v2603
    %2841 = vmatpush1.msra.mxu0 %v2602
    %2842 = vmatprep.subr.mxu0 %v2607
    %2843 = vmatpush1.msra.mxu0 %v2606
    %2844 = vmatprep.subr.mxu0 %v2611
    %2845 = vmatpush1.msra.mxu0 %v2610
    %2846 = vmatprep.subr.mxu0 %v2615
    %2847 = vmatpush1.msra.mxu0 %v2614
    %2848 = vmatprep.subr.mxu0 0.0
    %2849 = vmatpush1.msra.mxu0 0.0
    %2850 = vmatprep.subr.mxu0 0.0
    %2851 = vmatpush1.msra.mxu0 0.0
    %2852 = vmatprep.subr.mxu0 0.0
    %2853 = vmatpush1.msra.mxu0 0.0
    %2854 = vmatprep.subr.mxu0 0.0
    %2855 = vmatpush1.msra.mxu0 0.0
    %2856 = vmatprep.subr.mxu0 0.0
    %2857 = vmatpush1.msra.mxu0 0.0
    %2858 = vmatprep.subr.mxu0 0.0
    %2859 = vmatpush1.msra.mxu0 0.0
    %2860 = vmatprep.subr.mxu0 0.0
    %2861 = vmatpush1.msra.mxu0 0.0
    %2862 = vmatprep.subr.mxu0 0.0
    %2863 = vmatpush1.msra.mxu0 0.0
    %2864 = vmatprep.subr.mxu0 0.0
    %2865 = vmatpush1.msra.mxu0 0.0
    %2866 = vmatprep.subr.mxu0 0.0
    %2867 = vmatpush1.msra.mxu0 0.0
    %2868 = vmatprep.subr.mxu0 0.0
    %2869 = vmatpush1.msra.mxu0 0.0
    %2870 = vmatprep.subr.mxu0 0.0
    %2871 = vmatpush1.msra.mxu0 0.0
    %2872 = vmatprep.subr.mxu0 0.0
    %2873 = vmatpush1.msra.mxu0 0.0
    %2874 = vmatprep.subr.mxu0 0.0
    %2875 = vmatpush1.msra.mxu0 0.0
    %2876 = vmatprep.subr.mxu0 0.0
    %2877 = vmatpush1.msra.mxu0 0.0
    %2878 = vmatprep.subr.mxu0 0.0
    %2879 = vmatpush1.msra.mxu0 0.0
    %2880 = vmatprep.mubr.f32.mxu0 0.0
    %2881 = vmatmul.mubr.f32.gmra.mrb[0].mxu0 %v2803
    %v2882 = vpop.f32.mrb[0].mxu0
    %v2883 = vadd.f32 0.0, %v2882
    %v2884 = vpop.f32.mrb[0].mxu0
    %v2885 = vadd.f32 0.0, %v2884
    %2886 = vdwg.mxu0
    %2887 = vmatprep.subr.mxu0 %v2557
    %2888 = vmatpush1.msra.mxu0 %v2556
    %2889 = vmatprep.subr.mxu0 %v2561
    %2890 = vmatpush1.msra.mxu0 %v2560
    %2891 = vmatprep.subr.mxu0 %v2565
    %2892 = vmatpush1.msra.mxu0 %v2564
    %2893 = vmatprep.subr.mxu0 %v2569
    %2894 = vmatpush1.msra.mxu0 %v2568
    %2895 = vmatprep.subr.mxu0 %v2573
    %2896 = vmatpush1.msra.mxu0 %v2572
    %2897 = vmatprep.subr.mxu0 %v2577
    %2898 = vmatpush1.msra.mxu0 %v2576
    %2899 = vmatprep.subr.mxu0 %v2581
    %2900 = vmatpush1.msra.mxu0 %v2580
    %2901 = vmatprep.subr.mxu0 %v2585
    %2902 = vmatpush1.msra.mxu0 %v2584
    %2903 = vmatprep.subr.mxu0 %v2589
    %2904 = vmatpush1.msra.mxu0 %v2588
    %2905 = vmatprep.subr.mxu0 %v2593
    %2906 = vmatpush1.msra.mxu0 %v2592
    %2907 = vmatprep.subr.mxu0 %v2597
    %2908 = vmatpush1.msra.mxu0 %v2596
    %2909 = vmatprep.subr.mxu0 %v2601
    %2910 = vmatpush1.msra.mxu0 %v2600
    %2911 = vmatprep.subr.mxu0 %v2605
    %2912 = vmatpush1.msra.mxu0 %v2604
    %2913 = vmatprep.subr.mxu0 %v2609
    %2914 = vmatpush1.msra.mxu0 %v2608
    %2915 = vmatprep.subr.mxu0 %v2613
    %2916 = vmatpush1.msra.mxu0 %v2612
    %2917 = vmatprep.subr.mxu0 %v2617
    %2918 = vmatpush1.msra.mxu0 %v2616
    %2919 = vmatprep.subr.mxu0 0.0
    %2920 = vmatpush1.msra.mxu0 0.0
    %2921 = vmatprep.subr.mxu0 0.0
    %2922 = vmatpush1.msra.mxu0 0.0
    %2923 = vmatprep.subr.mxu0 0.0
    %2924 = vmatpush1.msra.mxu0 0.0
    %2925 = vmatprep.subr.mxu0 0.0
    %2926 = vmatpush1.msra.mxu0 0.0
    %2927 = vmatprep.subr.mxu0 0.0
    %2928 = vmatpush1.msra.mxu0 0.0
    %2929 = vmatprep.subr.mxu0 0.0
    %2930 = vmatpush1.msra.mxu0 0.0
    %2931 = vmatprep.subr.mxu0 0.0
    %2932 = vmatpush1.msra.mxu0 0.0
    %2933 = vmatprep.subr.mxu0 0.0
    %2934 = vmatpush1.msra.mxu0 0.0
    %2935 = vmatprep.subr.mxu0 0.0
    %2936 = vmatpush1.msra.mxu0 0.0
    %2937 = vmatprep.subr.mxu0 0.0
    %2938 = vmatpush1.msra.mxu0 0.0
    %2939 = vmatprep.subr.mxu0 0.0
    %2940 = vmatpush1.msra.mxu0 0.0
    %2941 = vmatprep.subr.mxu0 0.0
    %2942 = vmatpush1.msra.mxu0 0.0
    %2943 = vmatprep.subr.mxu0 0.0
    %2944 = vmatpush1.msra.mxu0 0.0
    %2945 = vmatprep.subr.mxu0 0.0
    %2946 = vmatpush1.msra.mxu0 0.0
    %2947 = vmatprep.subr.mxu0 0.0
    %2948 = vmatpush1.msra.mxu0 0.0
    %2949 = vmatprep.subr.mxu0 0.0
    %2950 = vmatpush1.msra.mxu0 0.0
    %2951 = vmatprep.mubr.f32.mxu0 0.0
    %2952 = vmatmul.mubr.f32.gmra.mrb[0].mxu0 %v2803
    %v2953 = vpop.f32.mrb[0].mxu0
    %v2954 = vadd.f32 0.0, %v2953
    %v2955 = vpop.f32.mrb[0].mxu0
    %v2956 = vadd.f32 0.0, %v2955
    %2957 = vdwg.mxu0
    %v2962 = vrot.slane %v2883, 7
    %v2963 = vrot.slane %v2885, 7
    %v2964 = vrot.slane %v2954, 7
    %v2965 = vrot.slane %v2956, 7
    %v2970 = vadd.f32 %v2812, %v2962
    %v2971 = vadd.f32 %v2813, %v2963
    %v2972 = vadd.f32 %v2814, %v2964
    %v2973 = vadd.f32 %v2815, %v2965
    %v2974 = vxor.u32 %v2970, 2147483648
    %v2975 = vxor.u32 %v2971, 2147483648
    %v2976 = vxor.u32 %v2972, 2147483648
    %v2977 = vmul.f32 %v2974, 1.442695
    %v2978 = vpow.pop %v2977
    %v2979 = vmul.f32 %v2975, 1.442695
    %v2980 = vpow.pop %v2979
    %v2981 = vmul.f32 %v2976, 1.442695
    %v2982 = vpow.pop %v2981
    %v2983 = vadd.f32 %v2978, 1.0
    %v2984 = vadd.f32 %v2980, 1.0
    %v2985 = vadd.f32 %v2982, 1.0
    %v2986 = vrcp.pop %v2983
    %v2987 = vmul.f32 1.0, %v2986
    %v2988 = vrcp.pop %v2984
    %v2989 = vmul.f32 1.0, %v2988
    %v2990 = vrcp.pop %v2985
    %v2991 = vmul.f32 1.0, %v2990
    %v2992 = vtanh.pop %v2973
    %v2994 = vrot.slane %v2801, 7
    %v2996 = vmul.f32 %v2989, %v2994
    %v2997 = vmul.f32 %v2987, %v2992
    %v2998 = vadd.f32 %v2996, %v2997
    %v2999 = vtanh.pop %v2998
    %v3000 = vmul.f32 %v2991, %v2999
    %v3001 = vrot.slane %v2479, 3
    %v3002 = vrot.slane %v2481, 3
    %v3003 = vrot.slane %v2550, 3
    %v3004 = vrot.slane %v2552, 3
    %v3009 = vadd.f32 %v2273, %v3001
    %v3010 = vadd.f32 %v2275, %v3002
    %v3011 = vadd.f32 %v2344, %v3003
    %v3012 = vadd.f32 %v2346, %v3004
    %v3014 = vrot.slane %v3000, 1
    %3016 = vmatprep.subr.mxu0 %v2555
    %3017 = vmatpush1.msra.mxu0 %v2554
    %3018 = vmatprep.subr.mxu0 %v2559
    %3019 = vmatpush1.msra.mxu0 %v2558
    %3020 = vmatprep.subr.mxu0 %v2563
    %3021 = vmatpush1.msra.mxu0 %v2562
    %3022 = vmatprep.subr.mxu0 %v2567
    %3023 = vmatpush1.msra.mxu0 %v2566
    %3024 = vmatprep.subr.mxu0 %v2571
    %3025 = vmatpush1.msra.mxu0 %v2570
    %3026 = vmatprep.subr.mxu0 %v2575
    %3027 = vmatpush1.msra.mxu0 %v2574
    %3028 = vmatprep.subr.mxu0 %v2579
    %3029 = vmatpush1.msra.mxu0 %v2578
    %3030 = vmatprep.subr.mxu0 %v2583
    %3031 = vmatpush1.msra.mxu0 %v2582
    %3032 = vmatprep.subr.mxu0 %v2587
    %3033 = vmatpush1.msra.mxu0 %v2586
    %3034 = vmatprep.subr.mxu0 %v2591
    %3035 = vmatpush1.msra.mxu0 %v2590
    %3036 = vmatprep.subr.mxu0 %v2595
    %3037 = vmatpush1.msra.mxu0 %v2594
    %3038 = vmatprep.subr.mxu0 %v2599
    %3039 = vmatpush1.msra.mxu0 %v2598
    %3040 = vmatprep.subr.mxu0 %v2603
    %3041 = vmatpush1.msra.mxu0 %v2602
    %3042 = vmatprep.subr.mxu0 %v2607
    %3043 = vmatpush1.msra.mxu0 %v2606
    %3044 = vmatprep.subr.mxu0 %v2611
    %3045 = vmatpush1.msra.mxu0 %v2610
    %3046 = vmatprep.subr.mxu0 %v2615
    %3047 = vmatpush1.msra.mxu0 %v2614
    %3048 = vmatprep.subr.mxu0 0.0
    %3049 = vmatpush1.msra.mxu0 0.0
    %3050 = vmatprep.subr.mxu0 0.0
    %3051 = vmatpush1.msra.mxu0 0.0
    %3052 = vmatprep.subr.mxu0 0.0
    %3053 = vmatpush1.msra.mxu0 0.0
    %3054 = vmatprep.subr.mxu0 0.0
    %3055 = vmatpush1.msra.mxu0 0.0
    %3056 = vmatprep.subr.mxu0 0.0
    %3057 = vmatpush1.msra.mxu0 0.0
    %3058 = vmatprep.subr.mxu0 0.0
    %3059 = vmatpush1.msra.mxu0 0.0
    %3060 = vmatprep.subr.mxu0 0.0
    %3061 = vmatpush1.msra.mxu0 0.0
    %3062 = vmatprep.subr.mxu0 0.0
    %3063 = vmatpush1.msra.mxu0 0.0
    %3064 = vmatprep.subr.mxu0 0.0
    %3065 = vmatpush1.msra.mxu0 0.0
    %3066 = vmatprep.subr.mxu0 0.0
    %3067 = vmatpush1.msra.mxu0 0.0
    %3068 = vmatprep.subr.mxu0 0.0
    %3069 = vmatpush1.msra.mxu0 0.0
    %3070 = vmatprep.subr.mxu0 0.0
    %3071 = vmatpush1.msra.mxu0 0.0
    %3072 = vmatprep.subr.mxu0 0.0
    %3073 = vmatpush1.msra.mxu0 0.0
    %3074 = vmatprep.subr.mxu0 0.0
    %3075 = vmatpush1.msra.mxu0 0.0
    %3076 = vmatprep.subr.mxu0 0.0
    %3077 = vmatpush1.msra.mxu0 0.0
    %3078 = vmatprep.subr.mxu0 0.0
    %3079 = vmatpush1.msra.mxu0 0.0
    %3080 = vmatprep.mubr.f32.mxu0 0.0
    %3081 = vmatmul.mubr.f32.gmra.mrb[0].mxu0 %v3014
    %v3082 = vpop.f32.mrb[0].mxu0
    %v3083 = vadd.f32 0.0, %v3082
    %v3084 = vpop.f32.mrb[0].mxu0
    %v3085 = vadd.f32 0.0, %v3084
    %3086 = vdwg.mxu0
    %3087 = vmatprep.subr.mxu0 %v2557
    %3088 = vmatpush1.msra.mxu0 %v2556
    %3089 = vmatprep.subr.mxu0 %v2561
    %3090 = vmatpush1.msra.mxu0 %v2560
    %3091 = vmatprep.subr.mxu0 %v2565
    %3092 = vmatpush1.msra.mxu0 %v2564
    %3093 = vmatprep.subr.mxu0 %v2569
    %3094 = vmatpush1.msra.mxu0 %v2568
    %3095 = vmatprep.subr.mxu0 %v2573
    %3096 = vmatpush1.msra.mxu0 %v2572
    %3097 = vmatprep.subr.mxu0 %v2577
    %3098 = vmatpush1.msra.mxu0 %v2576
    %3099 = vmatprep.subr.mxu0 %v2581
    %3100 = vmatpush1.msra.mxu0 %v2580
    %3101 = vmatprep.subr.mxu0 %v2585
    %3102 = vmatpush1.msra.mxu0 %v2584
    %3103 = vmatprep.subr.mxu0 %v2589
    %3104 = vmatpush1.msra.mxu0 %v2588
    %3105 = vmatprep.subr.mxu0 %v2593
    %3106 = vmatpush1.msra.mxu0 %v2592
    %3107 = vmatprep.subr.mxu0 %v2597
    %3108 = vmatpush1.msra.mxu0 %v2596
    %3109 = vmatprep.subr.mxu0 %v2601
    %3110 = vmatpush1.msra.mxu0 %v2600
    %3111 = vmatprep.subr.mxu0 %v2605
    %3112 = vmatpush1.msra.mxu0 %v2604
    %3113 = vmatprep.subr.mxu0 %v2609
    %3114 = vmatpush1.msra.mxu0 %v2608
    %3115 = vmatprep.subr.mxu0 %v2613
    %3116 = vmatpush1.msra.mxu0 %v2612
    %3117 = vmatprep.subr.mxu0 %v2617
    %3118 = vmatpush1.msra.mxu0 %v2616
    %3119 = vmatprep.subr.mxu0 0.0
    %3120 = vmatpush1.msra.mxu0 0.0
    %3121 = vmatprep.subr.mxu0 0.0
    %3122 = vmatpush1.msra.mxu0 0.0
    %3123 = vmatprep.subr.mxu0 0.0
    %3124 = vmatpush1.msra.mxu0 0.0
    %3125 = vmatprep.subr.mxu0 0.0
    %3126 = vmatpush1.msra.mxu0 0.0
    %3127 = vmatprep.subr.mxu0 0.0
    %3128 = vmatpush1.msra.mxu0 0.0
    %3129 = vmatprep.subr.mxu0 0.0
    %3130 = vmatpush1.msra.mxu0 0.0
    %3131 = vmatprep.subr.mxu0 0.0
    %3132 = vmatpush1.msra.mxu0 0.0
    %3133 = vmatprep.subr.mxu0 0.0
    %3134 = vmatpush1.msra.mxu0 0.0
    %3135 = vmatprep.subr.mxu0 0.0
    %3136 = vmatpush1.msra.mxu0 0.0
    %3137 = vmatprep.subr.mxu0 0.0
    %3138 = vmatpush1.msra.mxu0 0.0
    %3139 = vmatprep.subr.mxu0 0.0
    %3140 = vmatpush1.msra.mxu0 0.0
    %3141 = vmatprep.subr.mxu0 0.0
    %3142 = vmatpush1.msra.mxu0 0.0
    %3143 = vmatprep.subr.mxu0 0.0
    %3144 = vmatpush1.msra.mxu0 0.0
    %3145 = vmatprep.subr.mxu0 0.0
    %3146 = vmatpush1.msra.mxu0 0.0
    %3147 = vmatprep.subr.mxu0 0.0
    %3148 = vmatpush1.msra.mxu0 0.0
    %3149 = vmatprep.subr.mxu0 0.0
    %3150 = vmatpush1.msra.mxu0 0.0
    %3151 = vmatprep.mubr.f32.mxu0 0.0
    %3152 = vmatmul.mubr.f32.gmra.mrb[0].mxu0 %v3014
    %v3153 = vpop.f32.mrb[0].mxu0
    %v3154 = vadd.f32 0.0, %v3153
    %v3155 = vpop.f32.mrb[0].mxu0
    %v3156 = vadd.f32 0.0, %v3155
    %3157 = vdwg.mxu0
    %v3162 = vrot.slane %v3083, 6
    %v3163 = vrot.slane %v3085, 6
    %v3164 = vrot.slane %v3154, 6
    %v3165 = vrot.slane %v3156, 6
    %v3170 = vadd.f32 %v3009, %v3162
    %v3171 = vadd.f32 %v3010, %v3163
    %v3172 = vadd.f32 %v3011, %v3164
    %v3173 = vadd.f32 %v3012, %v3165
    %v3174 = vxor.u32 %v3170, 2147483648
    %v3175 = vxor.u32 %v3171, 2147483648
    %v3176 = vxor.u32 %v3172, 2147483648
    %v3177 = vmul.f32 %v3174, 1.442695
    %v3178 = vpow.pop %v3177
    %v3179 = vmul.f32 %v3175, 1.442695
    %v3180 = vpow.pop %v3179
    %v3181 = vmul.f32 %v3176, 1.442695
    %v3182 = vpow.pop %v3181
    %v3183 = vadd.f32 %v3178, 1.0
    %v3184 = vadd.f32 %v3180, 1.0
    %v3185 = vadd.f32 %v3182, 1.0
    %v3186 = vrcp.pop %v3183
    %v3187 = vmul.f32 1.0, %v3186
    %v3188 = vrcp.pop %v3184
    %v3189 = vmul.f32 1.0, %v3188
    %v3190 = vrcp.pop %v3185
    %v3191 = vmul.f32 1.0, %v3190
    %v3192 = vtanh.pop %v3173
    %v3194 = vrot.slane %v2998, 7
    %v3196 = vmul.f32 %v3189, %v3194
    %v3197 = vmul.f32 %v3187, %v3192
    %v3198 = vadd.f32 %v3196, %v3197
    %v3199 = vtanh.pop %v3198
    %v3200 = vmul.f32 %v3191, %v3199
    %v3201 = vrot.slane %v2479, 1
    %v3202 = vrot.slane %v2481, 1
    %v3203 = vrot.slane %v2550, 1
    %v3204 = vrot.slane %v2552, 1
    %v3209 = vadd.f32 %v2273, %v3201
    %v3210 = vadd.f32 %v2275, %v3202
    %v3211 = vadd.f32 %v2344, %v3203
    %v3212 = vadd.f32 %v2346, %v3204
    %v3214 = vrot.slane %v3200, 2
    %3216 = vmatprep.subr.mxu0 %v2555
    %3217 = vmatpush1.msra.mxu0 %v2554
    %3218 = vmatprep.subr.mxu0 %v2559
    %3219 = vmatpush1.msra.mxu0 %v2558
    %3220 = vmatprep.subr.mxu0 %v2563
    %3221 = vmatpush1.msra.mxu0 %v2562
    %3222 = vmatprep.subr.mxu0 %v2567
    %3223 = vmatpush1.msra.mxu0 %v2566
    %3224 = vmatprep.subr.mxu0 %v2571
    %3225 = vmatpush1.msra.mxu0 %v2570
    %3226 = vmatprep.subr.mxu0 %v2575
    %3227 = vmatpush1.msra.mxu0 %v2574
    %3228 = vmatprep.subr.mxu0 %v2579
    %3229 = vmatpush1.msra.mxu0 %v2578
    %3230 = vmatprep.subr.mxu0 %v2583
    %3231 = vmatpush1.msra.mxu0 %v2582
    %3232 = vmatprep.subr.mxu0 %v2587
    %3233 = vmatpush1.msra.mxu0 %v2586
    %3234 = vmatprep.subr.mxu0 %v2591
    %3235 = vmatpush1.msra.mxu0 %v2590
    %3236 = vmatprep.subr.mxu0 %v2595
    %3237 = vmatpush1.msra.mxu0 %v2594
    %3238 = vmatprep.subr.mxu0 %v2599
    %3239 = vmatpush1.msra.mxu0 %v2598
    %3240 = vmatprep.subr.mxu0 %v2603
    %3241 = vmatpush1.msra.mxu0 %v2602
    %3242 = vmatprep.subr.mxu0 %v2607
    %3243 = vmatpush1.msra.mxu0 %v2606
    %3244 = vmatprep.subr.mxu0 %v2611
    %3245 = vmatpush1.msra.mxu0 %v2610
    %3246 = vmatprep.subr.mxu0 %v2615
    %3247 = vmatpush1.msra.mxu0 %v2614
    %3248 = vmatprep.subr.mxu0 0.0
    %3249 = vmatpush1.msra.mxu0 0.0
    %3250 = vmatprep.subr.mxu0 0.0
    %3251 = vmatpush1.msra.mxu0 0.0
    %3252 = vmatprep.subr.mxu0 0.0
    %3253 = vmatpush1.msra.mxu0 0.0
    %3254 = vmatprep.subr.mxu0 0.0
    %3255 = vmatpush1.msra.mxu0 0.0
    %3256 = vmatprep.subr.mxu0 0.0
    %3257 = vmatpush1.msra.mxu0 0.0
    %3258 = vmatprep.subr.mxu0 0.0
    %3259 = vmatpush1.msra.mxu0 0.0
    %3260 = vmatprep.subr.mxu0 0.0
    %3261 = vmatpush1.msra.mxu0 0.0
    %3262 = vmatprep.subr.mxu0 0.0
    %3263 = vmatpush1.msra.mxu0 0.0
    %3264 = vmatprep.subr.mxu0 0.0
    %3265 = vmatpush1.msra.mxu0 0.0
    %3266 = vmatprep.subr.mxu0 0.0
    %3267 = vmatpush1.msra.mxu0 0.0
    %3268 = vmatprep.subr.mxu0 0.0
    %3269 = vmatpush1.msra.mxu0 0.0
    %3270 = vmatprep.subr.mxu0 0.0
    %3271 = vmatpush1.msra.mxu0 0.0
    %3272 = vmatprep.subr.mxu0 0.0
    %3273 = vmatpush1.msra.mxu0 0.0
    %3274 = vmatprep.subr.mxu0 0.0
    %3275 = vmatpush1.msra.mxu0 0.0
    %3276 = vmatprep.subr.mxu0 0.0
    %3277 = vmatpush1.msra.mxu0 0.0
    %3278 = vmatprep.subr.mxu0 0.0
    %3279 = vmatpush1.msra.mxu0 0.0
    %3280 = vmatprep.mubr.f32.mxu0 0.0
    %3281 = vmatmul.mubr.f32.gmra.mrb[0].mxu0 %v3214
    %v3282 = vpop.f32.mrb[0].mxu0
    %v3283 = vadd.f32 0.0, %v3282
    %v3284 = vpop.f32.mrb[0].mxu0
    %v3285 = vadd.f32 0.0, %v3284
    %3286 = vdwg.mxu0
    %3287 = vmatprep.subr.mxu0 %v2557
    %3288 = vmatpush1.msra.mxu0 %v2556
    %3289 = vmatprep.subr.mxu0 %v2561
    %3290 = vmatpush1.msra.mxu0 %v2560
    %3291 = vmatprep.subr.mxu0 %v2565
    %3292 = vmatpush1.msra.mxu0 %v2564
    %3293 = vmatprep.subr.mxu0 %v2569
    %3294 = vmatpush1.msra.mxu0 %v2568
    %3295 = vmatprep.subr.mxu0 %v2573
    %3296 = vmatpush1.msra.mxu0 %v2572
    %3297 = vmatprep.subr.mxu0 %v2577
    %3298 = vmatpush1.msra.mxu0 %v2576
    %3299 = vmatprep.subr.mxu0 %v2581
    %3300 = vmatpush1.msra.mxu0 %v2580
    %3301 = vmatprep.subr.mxu0 %v2585
    %3302 = vmatpush1.msra.mxu0 %v2584
    %3303 = vmatprep.subr.mxu0 %v2589
    %3304 = vmatpush1.msra.mxu0 %v2588
    %3305 = vmatprep.subr.mxu0 %v2593
    %3306 = vmatpush1.msra.mxu0 %v2592
    %3307 = vmatprep.subr.mxu0 %v2597
    %3308 = vmatpush1.msra.mxu0 %v2596
    %3309 = vmatprep.subr.mxu0 %v2601
    %3310 = vmatpush1.msra.mxu0 %v2600
    %3311 = vmatprep.subr.mxu0 %v2605
    %3312 = vmatpush1.msra.mxu0 %v2604
    %3313 = vmatprep.subr.mxu0 %v2609
    %3314 = vmatpush1.msra.mxu0 %v2608
    %3315 = vmatprep.subr.mxu0 %v2613
    %3316 = vmatpush1.msra.mxu0 %v2612
    %3317 = vmatprep.subr.mxu0 %v2617
    %3318 = vmatpush1.msra.mxu0 %v2616
    %3319 = vmatprep.subr.mxu0 0.0
    %3320 = vmatpush1.msra.mxu0 0.0
    %3321 = vmatprep.subr.mxu0 0.0
    %3322 = vmatpush1.msra.mxu0 0.0
    %3323 = vmatprep.subr.mxu0 0.0
    %3324 = vmatpush1.msra.mxu0 0.0
    %3325 = vmatprep.subr.mxu0 0.0
    %3326 = vmatpush1.msra.mxu0 0.0
    %3327 = vmatprep.subr.mxu0 0.0
    %3328 = vmatpush1.msra.mxu0 0.0
    %3329 = vmatprep.subr.mxu0 0.0
    %3330 = vmatpush1.msra.mxu0 0.0
    %3331 = vmatprep.subr.mxu0 0.0
    %3332 = vmatpush1.msra.mxu0 0.0
    %3333 = vmatprep.subr.mxu0 0.0
    %3334 = vmatpush1.msra.mxu0 0.0
    %3335 = vmatprep.subr.mxu0 0.0
    %3336 = vmatpush1.msra.mxu0 0.0
    %3337 = vmatprep.subr.mxu0 0.0
    %3338 = vmatpush1.msra.mxu0 0.0
    %3339 = vmatprep.subr.mxu0 0.0
    %3340 = vmatpush1.msra.mxu0 0.0
    %3341 = vmatprep.subr.mxu0 0.0
    %3342 = vmatpush1.msra.mxu0 0.0
    %3343 = vmatprep.subr.mxu0 0.0
    %3344 = vmatpush1.msra.mxu0 0.0
    %3345 = vmatprep.subr.mxu0 0.0
    %3346 = vmatpush1.msra.mxu0 0.0
    %3347 = vmatprep.subr.mxu0 0.0
    %3348 = vmatpush1.msra.mxu0 0.0
    %3349 = vmatprep.subr.mxu0 0.0
    %3350 = vmatpush1.msra.mxu0 0.0
    %3351 = vmatprep.mubr.f32.mxu0 0.0
    %3352 = vmatmul.mubr.f32.gmra.mrb[0].mxu0 %v3214
    %v3353 = vpop.f32.mrb[0].mxu0
    %v3354 = vadd.f32 0.0, %v3353
    %v3355 = vpop.f32.mrb[0].mxu0
    %v3356 = vadd.f32 0.0, %v3355
    %3357 = vdwg.mxu0
    %v3362 = vrot.slane %v3283, 5
    %v3363 = vrot.slane %v3285, 5
    %v3364 = vrot.slane %v3354, 5
    %v3365 = vrot.slane %v3356, 5
    %v3370 = vadd.f32 %v3209, %v3362
    %v3371 = vadd.f32 %v3210, %v3363
    %v3372 = vadd.f32 %v3211, %v3364
    %v3373 = vadd.f32 %v3212, %v3365
    %v3374 = vxor.u32 %v3370, 2147483648
    %v3375 = vxor.u32 %v3371, 2147483648
    %v3376 = vxor.u32 %v3372, 2147483648
    %v3377 = vmul.f32 %v3374, 1.442695
    %v3378 = vpow.pop %v3377
    %v3379 = vmul.f32 %v3375, 1.442695
    %v3380 = vpow.pop %v3379
    %v3381 = vmul.f32 %v3376, 1.442695
    %v3382 = vpow.pop %v3381
    %v3383 = vadd.f32 %v3378, 1.0
    %v3384 = vadd.f32 %v3380, 1.0
    %v3385 = vadd.f32 %v3382, 1.0
    %v3386 = vrcp.pop %v3383
    %v3387 = vmul.f32 1.0, %v3386
    %v3388 = vrcp.pop %v3384
    %v3389 = vmul.f32 1.0, %v3388
    %v3390 = vrcp.pop %v3385
    %v3391 = vmul.f32 1.0, %v3390
    %v3392 = vtanh.pop %v3373
    %v3394 = vrot.slane %v3198, 7
    %v3396 = vmul.f32 %v3389, %v3394
    %v3397 = vmul.f32 %v3387, %v3392
    %v3398 = vadd.f32 %v3396, %v3397
    %v3399 = vtanh.pop %v3398
    %v3400 = vmul.f32 %v3391, %v3399
    %v3402 = vrot.slane %v3400, 3
    %3404 = vmatprep.subr.mxu0 %v2555
    %3405 = vmatpush1.msra.mxu0 %v2554
    %3406 = vmatprep.subr.mxu0 %v2559
    %3407 = vmatpush1.msra.mxu0 %v2558
    %3408 = vmatprep.subr.mxu0 %v2563
    %3409 = vmatpush1.msra.mxu0 %v2562
    %3410 = vmatprep.subr.mxu0 %v2567
    %3411 = vmatpush1.msra.mxu0 %v2566
    %3412 = vmatprep.subr.mxu0 %v2571
    %3413 = vmatpush1.msra.mxu0 %v2570
    %3414 = vmatprep.subr.mxu0 %v2575
    %3415 = vmatpush1.msra.mxu0 %v2574
    %3416 = vmatprep.subr.mxu0 %v2579
    %3417 = vmatpush1.msra.mxu0 %v2578
    %3418 = vmatprep.subr.mxu0 %v2583
    %3419 = vmatpush1.msra.mxu0 %v2582
    %3420 = vmatprep.subr.mxu0 %v2587
    %3421 = vmatpush1.msra.mxu0 %v2586
    %3422 = vmatprep.subr.mxu0 %v2591
    %3423 = vmatpush1.msra.mxu0 %v2590
    %3424 = vmatprep.subr.mxu0 %v2595
    %3425 = vmatpush1.msra.mxu0 %v2594
    %3426 = vmatprep.subr.mxu0 %v2599
    %3427 = vmatpush1.msra.mxu0 %v2598
    %3428 = vmatprep.subr.mxu0 %v2603
    %3429 = vmatpush1.msra.mxu0 %v2602
    %3430 = vmatprep.subr.mxu0 %v2607
    %3431 = vmatpush1.msra.mxu0 %v2606
    %3432 = vmatprep.subr.mxu0 %v2611
    %3433 = vmatpush1.msra.mxu0 %v2610
    %3434 = vmatprep.subr.mxu0 %v2615
    %3435 = vmatpush1.msra.mxu0 %v2614
    %3436 = vmatprep.subr.mxu0 0.0
    %3437 = vmatpush1.msra.mxu0 0.0
    %3438 = vmatprep.subr.mxu0 0.0
    %3439 = vmatpush1.msra.mxu0 0.0
    %3440 = vmatprep.subr.mxu0 0.0
    %3441 = vmatpush1.msra.mxu0 0.0
    %3442 = vmatprep.subr.mxu0 0.0
    %3443 = vmatpush1.msra.mxu0 0.0
    %3444 = vmatprep.subr.mxu0 0.0
    %3445 = vmatpush1.msra.mxu0 0.0
    %3446 = vmatprep.subr.mxu0 0.0
    %3447 = vmatpush1.msra.mxu0 0.0
    %3448 = vmatprep.subr.mxu0 0.0
    %3449 = vmatpush1.msra.mxu0 0.0
    %3450 = vmatprep.subr.mxu0 0.0
    %3451 = vmatpush1.msra.mxu0 0.0
    %3452 = vmatprep.subr.mxu0 0.0
    %3453 = vmatpush1.msra.mxu0 0.0
    %3454 = vmatprep.subr.mxu0 0.0
    %3455 = vmatpush1.msra.mxu0 0.0
    %3456 = vmatprep.subr.mxu0 0.0
    %3457 = vmatpush1.msra.mxu0 0.0
    %3458 = vmatprep.subr.mxu0 0.0
    %3459 = vmatpush1.msra.mxu0 0.0
    %3460 = vmatprep.subr.mxu0 0.0
    %3461 = vmatpush1.msra.mxu0 0.0
    %3462 = vmatprep.subr.mxu0 0.0
    %3463 = vmatpush1.msra.mxu0 0.0
    %3464 = vmatprep.subr.mxu0 0.0
    %3465 = vmatpush1.msra.mxu0 0.0
    %3466 = vmatprep.subr.mxu0 0.0
    %3467 = vmatpush1.msra.mxu0 0.0
    %3468 = vmatprep.mubr.f32.mxu0 0.0
    %3469 = vmatmul.mubr.f32.gmra.mrb[0].mxu0 %v3402
    %v3470 = vpop.f32.mrb[0].mxu0
    %v3471 = vadd.f32 0.0, %v3470
    %v3472 = vpop.f32.mrb[0].mxu0
    %v3473 = vadd.f32 0.0, %v3472
    %3474 = vdwg.mxu0
    %3475 = vmatprep.subr.mxu0 %v2557
    %3476 = vmatpush1.msra.mxu0 %v2556
    %3477 = vmatprep.subr.mxu0 %v2561
    %3478 = vmatpush1.msra.mxu0 %v2560
    %3479 = vmatprep.subr.mxu0 %v2565
    %3480 = vmatpush1.msra.mxu0 %v2564
    %3481 = vmatprep.subr.mxu0 %v2569
    %3482 = vmatpush1.msra.mxu0 %v2568
    %3483 = vmatprep.subr.mxu0 %v2573
    %3484 = vmatpush1.msra.mxu0 %v2572
    %3485 = vmatprep.subr.mxu0 %v2577
    %3486 = vmatpush1.msra.mxu0 %v2576
    %3487 = vmatprep.subr.mxu0 %v2581
    %3488 = vmatpush1.msra.mxu0 %v2580
    %3489 = vmatprep.subr.mxu0 %v2585
    %3490 = vmatpush1.msra.mxu0 %v2584
    %3491 = vmatprep.subr.mxu0 %v2589
    %3492 = vmatpush1.msra.mxu0 %v2588
    %3493 = vmatprep.subr.mxu0 %v2593
    %3494 = vmatpush1.msra.mxu0 %v2592
    %3495 = vmatprep.subr.mxu0 %v2597
    %3496 = vmatpush1.msra.mxu0 %v2596
    %3497 = vmatprep.subr.mxu0 %v2601
    %3498 = vmatpush1.msra.mxu0 %v2600
    %3499 = vmatprep.subr.mxu0 %v2605
    %3500 = vmatpush1.msra.mxu0 %v2604
    %3501 = vmatprep.subr.mxu0 %v2609
    %3502 = vmatpush1.msra.mxu0 %v2608
    %3503 = vmatprep.subr.mxu0 %v2613
    %3504 = vmatpush1.msra.mxu0 %v2612
    %3505 = vmatprep.subr.mxu0 %v2617
    %3506 = vmatpush1.msra.mxu0 %v2616
    %3507 = vmatprep.subr.mxu0 0.0
    %3508 = vmatpush1.msra.mxu0 0.0
    %3509 = vmatprep.subr.mxu0 0.0
    %3510 = vmatpush1.msra.mxu0 0.0
    %3511 = vmatprep.subr.mxu0 0.0
    %3512 = vmatpush1.msra.mxu0 0.0
    %3513 = vmatprep.subr.mxu0 0.0
    %3514 = vmatpush1.msra.mxu0 0.0
    %3515 = vmatprep.subr.mxu0 0.0
    %3516 = vmatpush1.msra.mxu0 0.0
    %3517 = vmatprep.subr.mxu0 0.0
    %3518 = vmatpush1.msra.mxu0 0.0
    %3519 = vmatprep.subr.mxu0 0.0
    %3520 = vmatpush1.msra.mxu0 0.0
    %3521 = vmatprep.subr.mxu0 0.0
    %3522 = vmatpush1.msra.mxu0 0.0
    %3523 = vmatprep.subr.mxu0 0.0
    %3524 = vmatpush1.msra.mxu0 0.0
    %3525 = vmatprep.subr.mxu0 0.0
    %3526 = vmatpush1.msra.mxu0 0.0
    %3527 = vmatprep.subr.mxu0 0.0
    %3528 = vmatpush1.msra.mxu0 0.0
    %3529 = vmatprep.subr.mxu0 0.0
    %3530 = vmatpush1.msra.mxu0 0.0
    %3531 = vmatprep.subr.mxu0 0.0
    %3532 = vmatpush1.msra.mxu0 0.0
    %3533 = vmatprep.subr.mxu0 0.0
    %3534 = vmatpush1.msra.mxu0 0.0
    %3535 = vmatprep.subr.mxu0 0.0
    %3536 = vmatpush1.msra.mxu0 0.0
    %3537 = vmatprep.subr.mxu0 0.0
    %3538 = vmatpush1.msra.mxu0 0.0
    %3539 = vmatprep.mubr.f32.mxu0 0.0
    %3540 = vmatmul.mubr.f32.gmra.mrb[0].mxu0 %v3402
    %v3541 = vpop.f32.mrb[0].mxu0
    %v3542 = vadd.f32 0.0, %v3541
    %v3543 = vpop.f32.mrb[0].mxu0
    %v3544 = vadd.f32 0.0, %v3543
    %3545 = vdwg.mxu0
    %v3550 = vrot.slane %v3471, 4
    %v3551 = vrot.slane %v3473, 4
    %v3552 = vrot.slane %v3542, 4
    %v3553 = vrot.slane %v3544, 4
    %v3558 = vadd.f32 %v2630, %v3550
    %v3559 = vadd.f32 %v2631, %v3551
    %v3560 = vadd.f32 %v2632, %v3552
    %v3561 = vadd.f32 %v2633, %v3553
    %v3562 = vxor.u32 %v3558, 2147483648
    %v3563 = vxor.u32 %v3559, 2147483648
    %v3564 = vxor.u32 %v3560, 2147483648
    %v3565 = vmul.f32 %v3562, 1.442695
    %v3566 = vpow.pop %v3565
    %v3567 = vmul.f32 %v3563, 1.442695
    %v3568 = vpow.pop %v3567
    %v3569 = vmul.f32 %v3564, 1.442695
    %v3570 = vpow.pop %v3569
    %v3571 = vadd.f32 %v3566, 1.0
    %v3572 = vadd.f32 %v3568, 1.0
    %v3573 = vadd.f32 %v3570, 1.0
    %v3574 = vrcp.pop %v3571
    %v3575 = vmul.f32 1.0, %v3574
    %v3576 = vrcp.pop %v3572
    %v3577 = vmul.f32 1.0, %v3576
    %v3578 = vrcp.pop %v3573
    %v3579 = vmul.f32 1.0, %v3578
    %v3580 = vtanh.pop %v3561
    %v3582 = vrot.slane %v3398, 7
    %v3584 = vmul.f32 %v3577, %v3582
    %v3585 = vmul.f32 %v3575, %v3580
    %v3586 = vadd.f32 %v3584, %v3585
    %v3587 = vtanh.pop %v3586
    %v3588 = vmul.f32 %v3579, %v3587
    %v3590 = vrot.slane %v3588, 4
    %3592 = vmatprep.subr.mxu0 %v2555
    %3593 = vmatpush1.msra.mxu0 %v2554
    %3594 = vmatprep.subr.mxu0 %v2559
    %3595 = vmatpush1.msra.mxu0 %v2558
    %3596 = vmatprep.subr.mxu0 %v2563
    %3597 = vmatpush1.msra.mxu0 %v2562
    %3598 = vmatprep.subr.mxu0 %v2567
    %3599 = vmatpush1.msra.mxu0 %v2566
    %3600 = vmatprep.subr.mxu0 %v2571
    %3601 = vmatpush1.msra.mxu0 %v2570
    %3602 = vmatprep.subr.mxu0 %v2575
    %3603 = vmatpush1.msra.mxu0 %v2574
    %3604 = vmatprep.subr.mxu0 %v2579
    %3605 = vmatpush1.msra.mxu0 %v2578
    %3606 = vmatprep.subr.mxu0 %v2583
    %3607 = vmatpush1.msra.mxu0 %v2582
    %3608 = vmatprep.subr.mxu0 %v2587
    %3609 = vmatpush1.msra.mxu0 %v2586
    %3610 = vmatprep.subr.mxu0 %v2591
    %3611 = vmatpush1.msra.mxu0 %v2590
    %3612 = vmatprep.subr.mxu0 %v2595
    %3613 = vmatpush1.msra.mxu0 %v2594
    %3614 = vmatprep.subr.mxu0 %v2599
    %3615 = vmatpush1.msra.mxu0 %v2598
    %3616 = vmatprep.subr.mxu0 %v2603
    %3617 = vmatpush1.msra.mxu0 %v2602
    %3618 = vmatprep.subr.mxu0 %v2607
    %3619 = vmatpush1.msra.mxu0 %v2606
    %3620 = vmatprep.subr.mxu0 %v2611
    %3621 = vmatpush1.msra.mxu0 %v2610
    %3622 = vmatprep.subr.mxu0 %v2615
    %3623 = vmatpush1.msra.mxu0 %v2614
    %3624 = vmatprep.subr.mxu0 0.0
    %3625 = vmatpush1.msra.mxu0 0.0
    %3626 = vmatprep.subr.mxu0 0.0
    %3627 = vmatpush1.msra.mxu0 0.0
    %3628 = vmatprep.subr.mxu0 0.0
    %3629 = vmatpush1.msra.mxu0 0.0
    %3630 = vmatprep.subr.mxu0 0.0
    %3631 = vmatpush1.msra.mxu0 0.0
    %3632 = vmatprep.subr.mxu0 0.0
    %3633 = vmatpush1.msra.mxu0 0.0
    %3634 = vmatprep.subr.mxu0 0.0
    %3635 = vmatpush1.msra.mxu0 0.0
    %3636 = vmatprep.subr.mxu0 0.0
    %3637 = vmatpush1.msra.mxu0 0.0
    %3638 = vmatprep.subr.mxu0 0.0
    %3639 = vmatpush1.msra.mxu0 0.0
    %3640 = vmatprep.subr.mxu0 0.0
    %3641 = vmatpush1.msra.mxu0 0.0
    %3642 = vmatprep.subr.mxu0 0.0
    %3643 = vmatpush1.msra.mxu0 0.0
    %3644 = vmatprep.subr.mxu0 0.0
    %3645 = vmatpush1.msra.mxu0 0.0
    %3646 = vmatprep.subr.mxu0 0.0
    %3647 = vmatpush1.msra.mxu0 0.0
    %3648 = vmatprep.subr.mxu0 0.0
    %3649 = vmatpush1.msra.mxu0 0.0
    %3650 = vmatprep.subr.mxu0 0.0
    %3651 = vmatpush1.msra.mxu0 0.0
    %3652 = vmatprep.subr.mxu0 0.0
    %3653 = vmatpush1.msra.mxu0 0.0
    %3654 = vmatprep.subr.mxu0 0.0
    %3655 = vmatpush1.msra.mxu0 0.0
    %3656 = vmatprep.mubr.f32.mxu0 0.0
    %3657 = vmatmul.mubr.f32.gmra.mrb[0].mxu0 %v3590
    %v3658 = vpop.f32.mrb[0].mxu0
    %v3659 = vadd.f32 0.0, %v3658
    %v3660 = vpop.f32.mrb[0].mxu0
    %v3661 = vadd.f32 0.0, %v3660
    %3662 = vdwg.mxu0
    %3663 = vmatprep.subr.mxu0 %v2557
    %3664 = vmatpush1.msra.mxu0 %v2556
    %3665 = vmatprep.subr.mxu0 %v2561
    %3666 = vmatpush1.msra.mxu0 %v2560
    %3667 = vmatprep.subr.mxu0 %v2565
    %3668 = vmatpush1.msra.mxu0 %v2564
    %3669 = vmatprep.subr.mxu0 %v2569
    %3670 = vmatpush1.msra.mxu0 %v2568
    %3671 = vmatprep.subr.mxu0 %v2573
    %3672 = vmatpush1.msra.mxu0 %v2572
    %3673 = vmatprep.subr.mxu0 %v2577
    %3674 = vmatpush1.msra.mxu0 %v2576
    %3675 = vmatprep.subr.mxu0 %v2581
    %3676 = vmatpush1.msra.mxu0 %v2580
    %3677 = vmatprep.subr.mxu0 %v2585
    %3678 = vmatpush1.msra.mxu0 %v2584
    %3679 = vmatprep.subr.mxu0 %v2589
    %3680 = vmatpush1.msra.mxu0 %v2588
    %3681 = vmatprep.subr.mxu0 %v2593
    %3682 = vmatpush1.msra.mxu0 %v2592
    %3683 = vmatprep.subr.mxu0 %v2597
    %3684 = vmatpush1.msra.mxu0 %v2596
    %3685 = vmatprep.subr.mxu0 %v2601
    %3686 = vmatpush1.msra.mxu0 %v2600
    %3687 = vmatprep.subr.mxu0 %v2605
    %3688 = vmatpush1.msra.mxu0 %v2604
    %3689 = vmatprep.subr.mxu0 %v2609
    %3690 = vmatpush1.msra.mxu0 %v2608
    %3691 = vmatprep.subr.mxu0 %v2613
    %3692 = vmatpush1.msra.mxu0 %v2612
    %3693 = vmatprep.subr.mxu0 %v2617
    %3694 = vmatpush1.msra.mxu0 %v2616
    %3695 = vmatprep.subr.mxu0 0.0
    %3696 = vmatpush1.msra.mxu0 0.0
    %3697 = vmatprep.subr.mxu0 0.0
    %3698 = vmatpush1.msra.mxu0 0.0
    %3699 = vmatprep.subr.mxu0 0.0
    %3700 = vmatpush1.msra.mxu0 0.0
    %3701 = vmatprep.subr.mxu0 0.0
    %3702 = vmatpush1.msra.mxu0 0.0
    %3703 = vmatprep.subr.mxu0 0.0
    %3704 = vmatpush1.msra.mxu0 0.0
    %3705 = vmatprep.subr.mxu0 0.0
    %3706 = vmatpush1.msra.mxu0 0.0
    %3707 = vmatprep.subr.mxu0 0.0
    %3708 = vmatpush1.msra.mxu0 0.0
    %3709 = vmatprep.subr.mxu0 0.0
    %3710 = vmatpush1.msra.mxu0 0.0
    %3711 = vmatprep.subr.mxu0 0.0
    %3712 = vmatpush1.msra.mxu0 0.0
    %3713 = vmatprep.subr.mxu0 0.0
    %3714 = vmatpush1.msra.mxu0 0.0
    %3715 = vmatprep.subr.mxu0 0.0
    %3716 = vmatpush1.msra.mxu0 0.0
    %3717 = vmatprep.subr.mxu0 0.0
    %3718 = vmatpush1.msra.mxu0 0.0
    %3719 = vmatprep.subr.mxu0 0.0
    %3720 = vmatpush1.msra.mxu0 0.0
    %3721 = vmatprep.subr.mxu0 0.0
    %3722 = vmatpush1.msra.mxu0 0.0
    %3723 = vmatprep.subr.mxu0 0.0
    %3724 = vmatpush1.msra.mxu0 0.0
    %3725 = vmatprep.subr.mxu0 0.0
    %3726 = vmatpush1.msra.mxu0 0.0
    %3727 = vmatprep.mubr.f32.mxu0 0.0
    %3728 = vmatmul.mubr.f32.gmra.mrb[0].mxu0 %v3590
    %v3729 = vpop.f32.mrb[0].mxu0
    %v3730 = vadd.f32 0.0, %v3729
    %v3731 = vpop.f32.mrb[0].mxu0
    %v3732 = vadd.f32 0.0, %v3731
    %3733 = vdwg.mxu0
    %v3738 = vrot.slane %v3659, 3
    %v3739 = vrot.slane %v3661, 3
    %v3740 = vrot.slane %v3730, 3
    %v3741 = vrot.slane %v3732, 3
    %v3746 = vadd.f32 %v2812, %v3738
    %v3747 = vadd.f32 %v2813, %v3739
    %v3748 = vadd.f32 %v2814, %v3740
    %v3749 = vadd.f32 %v2815, %v3741
    %v3750 = vxor.u32 %v3746, 2147483648
    %v3751 = vxor.u32 %v3747, 2147483648
    %v3752 = vxor.u32 %v3748, 2147483648
    %v3753 = vmul.f32 %v3750, 1.442695
    %v3754 = vpow.pop %v3753
    %v3755 = vmul.f32 %v3751, 1.442695
    %v3756 = vpow.pop %v3755
    %v3757 = vmul.f32 %v3752, 1.442695
    %v3758 = vpow.pop %v3757
    %v3759 = vadd.f32 %v3754, 1.0
    %v3760 = vadd.f32 %v3756, 1.0
    %v3761 = vadd.f32 %v3758, 1.0
    %v3762 = vrcp.pop %v3759
    %v3763 = vmul.f32 1.0, %v3762
    %v3764 = vrcp.pop %v3760
    %v3765 = vmul.f32 1.0, %v3764
    %v3766 = vrcp.pop %v3761
    %v3767 = vmul.f32 1.0, %v3766
    %v3768 = vtanh.pop %v3749
    %v3770 = vrot.slane %v3586, 7
    %v3772 = vmul.f32 %v3765, %v3770
    %v3773 = vmul.f32 %v3763, %v3768
    %v3774 = vadd.f32 %v3772, %v3773
    %v3775 = vtanh.pop %v3774
    %v3776 = vmul.f32 %v3767, %v3775
    %v3778 = vrot.slane %v3776, 5
    %3780 = vmatprep.subr.mxu0 %v2555
    %3781 = vmatpush1.msra.mxu0 %v2554
    %3782 = vmatprep.subr.mxu0 %v2559
    %3783 = vmatpush1.msra.mxu0 %v2558
    %3784 = vmatprep.subr.mxu0 %v2563
    %3785 = vmatpush1.msra.mxu0 %v2562
    %3786 = vmatprep.subr.mxu0 %v2567
    %3787 = vmatpush1.msra.mxu0 %v2566
    %3788 = vmatprep.subr.mxu0 %v2571
    %3789 = vmatpush1.msra.mxu0 %v2570
    %3790 = vmatprep.subr.mxu0 %v2575
    %3791 = vmatpush1.msra.mxu0 %v2574
    %3792 = vmatprep.subr.mxu0 %v2579
    %3793 = vmatpush1.msra.mxu0 %v2578
    %3794 = vmatprep.subr.mxu0 %v2583
    %3795 = vmatpush1.msra.mxu0 %v2582
    %3796 = vmatprep.subr.mxu0 %v2587
    %3797 = vmatpush1.msra.mxu0 %v2586
    %3798 = vmatprep.subr.mxu0 %v2591
    %3799 = vmatpush1.msra.mxu0 %v2590
    %3800 = vmatprep.subr.mxu0 %v2595
    %3801 = vmatpush1.msra.mxu0 %v2594
    %3802 = vmatprep.subr.mxu0 %v2599
    %3803 = vmatpush1.msra.mxu0 %v2598
    %3804 = vmatprep.subr.mxu0 %v2603
    %3805 = vmatpush1.msra.mxu0 %v2602
    %3806 = vmatprep.subr.mxu0 %v2607
    %3807 = vmatpush1.msra.mxu0 %v2606
    %3808 = vmatprep.subr.mxu0 %v2611
    %3809 = vmatpush1.msra.mxu0 %v2610
    %3810 = vmatprep.subr.mxu0 %v2615
    %3811 = vmatpush1.msra.mxu0 %v2614
    %3812 = vmatprep.subr.mxu0 0.0
    %3813 = vmatpush1.msra.mxu0 0.0
    %3814 = vmatprep.subr.mxu0 0.0
    %3815 = vmatpush1.msra.mxu0 0.0
    %3816 = vmatprep.subr.mxu0 0.0
    %3817 = vmatpush1.msra.mxu0 0.0
    %3818 = vmatprep.subr.mxu0 0.0
    %3819 = vmatpush1.msra.mxu0 0.0
    %3820 = vmatprep.subr.mxu0 0.0
    %3821 = vmatpush1.msra.mxu0 0.0
    %3822 = vmatprep.subr.mxu0 0.0
    %3823 = vmatpush1.msra.mxu0 0.0
    %3824 = vmatprep.subr.mxu0 0.0
    %3825 = vmatpush1.msra.mxu0 0.0
    %3826 = vmatprep.subr.mxu0 0.0
    %3827 = vmatpush1.msra.mxu0 0.0
    %3828 = vmatprep.subr.mxu0 0.0
    %3829 = vmatpush1.msra.mxu0 0.0
    %3830 = vmatprep.subr.mxu0 0.0
    %3831 = vmatpush1.msra.mxu0 0.0
    %3832 = vmatprep.subr.mxu0 0.0
    %3833 = vmatpush1.msra.mxu0 0.0
    %3834 = vmatprep.subr.mxu0 0.0
    %3835 = vmatpush1.msra.mxu0 0.0
    %3836 = vmatprep.subr.mxu0 0.0
    %3837 = vmatpush1.msra.mxu0 0.0
    %3838 = vmatprep.subr.mxu0 0.0
    %3839 = vmatpush1.msra.mxu0 0.0
    %3840 = vmatprep.subr.mxu0 0.0
    %3841 = vmatpush1.msra.mxu0 0.0
    %3842 = vmatprep.subr.mxu0 0.0
    %3843 = vmatpush1.msra.mxu0 0.0
    %3844 = vmatprep.mubr.f32.mxu0 0.0
    %3845 = vmatmul.mubr.f32.gmra.mrb[0].mxu0 %v3778
    %v3846 = vpop.f32.mrb[0].mxu0
    %v3847 = vadd.f32 0.0, %v3846
    %v3848 = vpop.f32.mrb[0].mxu0
    %v3849 = vadd.f32 0.0, %v3848
    %3850 = vdwg.mxu0
    %3851 = vmatprep.subr.mxu0 %v2557
    %3852 = vmatpush1.msra.mxu0 %v2556
    %3853 = vmatprep.subr.mxu0 %v2561
    %3854 = vmatpush1.msra.mxu0 %v2560
    %3855 = vmatprep.subr.mxu0 %v2565
    %3856 = vmatpush1.msra.mxu0 %v2564
    %3857 = vmatprep.subr.mxu0 %v2569
    %3858 = vmatpush1.msra.mxu0 %v2568
    %3859 = vmatprep.subr.mxu0 %v2573
    %3860 = vmatpush1.msra.mxu0 %v2572
    %3861 = vmatprep.subr.mxu0 %v2577
    %3862 = vmatpush1.msra.mxu0 %v2576
    %3863 = vmatprep.subr.mxu0 %v2581
    %3864 = vmatpush1.msra.mxu0 %v2580
    %3865 = vmatprep.subr.mxu0 %v2585
    %3866 = vmatpush1.msra.mxu0 %v2584
    %3867 = vmatprep.subr.mxu0 %v2589
    %3868 = vmatpush1.msra.mxu0 %v2588
    %3869 = vmatprep.subr.mxu0 %v2593
    %3870 = vmatpush1.msra.mxu0 %v2592
    %3871 = vmatprep.subr.mxu0 %v2597
    %3872 = vmatpush1.msra.mxu0 %v2596
    %3873 = vmatprep.subr.mxu0 %v2601
    %3874 = vmatpush1.msra.mxu0 %v2600
    %3875 = vmatprep.subr.mxu0 %v2605
    %3876 = vmatpush1.msra.mxu0 %v2604
    %3877 = vmatprep.subr.mxu0 %v2609
    %3878 = vmatpush1.msra.mxu0 %v2608
    %3879 = vmatprep.subr.mxu0 %v2613
    %3880 = vmatpush1.msra.mxu0 %v2612
    %3881 = vmatprep.subr.mxu0 %v2617
    %3882 = vmatpush1.msra.mxu0 %v2616
    %3883 = vmatprep.subr.mxu0 0.0
    %3884 = vmatpush1.msra.mxu0 0.0
    %3885 = vmatprep.subr.mxu0 0.0
    %3886 = vmatpush1.msra.mxu0 0.0
    %3887 = vmatprep.subr.mxu0 0.0
    %3888 = vmatpush1.msra.mxu0 0.0
    %3889 = vmatprep.subr.mxu0 0.0
    %3890 = vmatpush1.msra.mxu0 0.0
    %3891 = vmatprep.subr.mxu0 0.0
    %3892 = vmatpush1.msra.mxu0 0.0
    %3893 = vmatprep.subr.mxu0 0.0
    %3894 = vmatpush1.msra.mxu0 0.0
    %3895 = vmatprep.subr.mxu0 0.0
    %3896 = vmatpush1.msra.mxu0 0.0
    %3897 = vmatprep.subr.mxu0 0.0
    %3898 = vmatpush1.msra.mxu0 0.0
    %3899 = vmatprep.subr.mxu0 0.0
    %3900 = vmatpush1.msra.mxu0 0.0
    %3901 = vmatprep.subr.mxu0 0.0
    %3902 = vmatpush1.msra.mxu0 0.0
    %3903 = vmatprep.subr.mxu0 0.0
    %3904 = vmatpush1.msra.mxu0 0.0
    %3905 = vmatprep.subr.mxu0 0.0
    %3906 = vmatpush1.msra.mxu0 0.0
    %3907 = vmatprep.subr.mxu0 0.0
    %3908 = vmatpush1.msra.mxu0 0.0
    %3909 = vmatprep.subr.mxu0 0.0
    %3910 = vmatpush1.msra.mxu0 0.0
    %3911 = vmatprep.subr.mxu0 0.0
    %3912 = vmatpush1.msra.mxu0 0.0
    %3913 = vmatprep.subr.mxu0 0.0
    %3914 = vmatpush1.msra.mxu0 0.0
    %3915 = vmatprep.mubr.f32.mxu0 0.0
    %3916 = vmatmul.mubr.f32.gmra.mrb[0].mxu0 %v3778
    %v3917 = vpop.f32.mrb[0].mxu0
    %v3918 = vadd.f32 0.0, %v3917
    %v3919 = vpop.f32.mrb[0].mxu0
    %v3920 = vadd.f32 0.0, %v3919
    %3921 = vdwg.mxu0
    %v3926 = vrot.slane %v3847, 2
    %v3927 = vrot.slane %v3849, 2
    %v3928 = vrot.slane %v3918, 2
    %v3929 = vrot.slane %v3920, 2
    %v3934 = vadd.f32 %v3009, %v3926
    %v3935 = vadd.f32 %v3010, %v3927
    %v3936 = vadd.f32 %v3011, %v3928
    %v3937 = vadd.f32 %v3012, %v3929
    %v3938 = vxor.u32 %v3934, 2147483648
    %v3939 = vxor.u32 %v3935, 2147483648
    %v3940 = vxor.u32 %v3936, 2147483648
    %v3941 = vmul.f32 %v3938, 1.442695
    %v3942 = vpow.pop %v3941
    %v3943 = vmul.f32 %v3939, 1.442695
    %v3944 = vpow.pop %v3943
    %v3945 = vmul.f32 %v3940, 1.442695
    %v3946 = vpow.pop %v3945
    %v3947 = vadd.f32 %v3942, 1.0
    %v3948 = vadd.f32 %v3944, 1.0
    %v3949 = vadd.f32 %v3946, 1.0
    %v3950 = vrcp.pop %v3947
    %v3951 = vmul.f32 1.0, %v3950
    %v3952 = vrcp.pop %v3948
    %v3953 = vmul.f32 1.0, %v3952
    %v3954 = vrcp.pop %v3949
    %v3955 = vmul.f32 1.0, %v3954
    %v3956 = vtanh.pop %v3937
    %v3958 = vrot.slane %v3774, 7
    %v3960 = vmul.f32 %v3953, %v3958
    %v3961 = vmul.f32 %v3951, %v3956
    %v3962 = vadd.f32 %v3960, %v3961
    %v3963 = vtanh.pop %v3962
    %v3964 = vmul.f32 %v3955, %v3963
    %v3966 = vrot.slane %v3964, 6
    %3968 = vmatprep.subr.mxu0 %v2555
    %3969 = vmatpush1.msra.mxu0 %v2554
    %3970 = vmatprep.subr.mxu0 %v2559
    %3971 = vmatpush1.msra.mxu0 %v2558
    %3972 = vmatprep.subr.mxu0 %v2563
    %3973 = vmatpush1.msra.mxu0 %v2562
    %3974 = vmatprep.subr.mxu0 %v2567
    %3975 = vmatpush1.msra.mxu0 %v2566
    %3976 = vmatprep.subr.mxu0 %v2571
    %3977 = vmatpush1.msra.mxu0 %v2570
    %3978 = vmatprep.subr.mxu0 %v2575
    %3979 = vmatpush1.msra.mxu0 %v2574
    %3980 = vmatprep.subr.mxu0 %v2579
    %3981 = vmatpush1.msra.mxu0 %v2578
    %3982 = vmatprep.subr.mxu0 %v2583
    %3983 = vmatpush1.msra.mxu0 %v2582
    %3984 = vmatprep.subr.mxu0 %v2587
    %3985 = vmatpush1.msra.mxu0 %v2586
    %3986 = vmatprep.subr.mxu0 %v2591
    %3987 = vmatpush1.msra.mxu0 %v2590
    %3988 = vmatprep.subr.mxu0 %v2595
    %3989 = vmatpush1.msra.mxu0 %v2594
    %3990 = vmatprep.subr.mxu0 %v2599
    %3991 = vmatpush1.msra.mxu0 %v2598
    %3992 = vmatprep.subr.mxu0 %v2603
    %3993 = vmatpush1.msra.mxu0 %v2602
    %3994 = vmatprep.subr.mxu0 %v2607
    %3995 = vmatpush1.msra.mxu0 %v2606
    %3996 = vmatprep.subr.mxu0 %v2611
    %3997 = vmatpush1.msra.mxu0 %v2610
    %3998 = vmatprep.subr.mxu0 %v2615
    %3999 = vmatpush1.msra.mxu0 %v2614
    %4000 = vmatprep.subr.mxu0 0.0
    %4001 = vmatpush1.msra.mxu0 0.0
    %4002 = vmatprep.subr.mxu0 0.0
    %4003 = vmatpush1.msra.mxu0 0.0
    %4004 = vmatprep.subr.mxu0 0.0
    %4005 = vmatpush1.msra.mxu0 0.0
    %4006 = vmatprep.subr.mxu0 0.0
    %4007 = vmatpush1.msra.mxu0 0.0
    %4008 = vmatprep.subr.mxu0 0.0
    %4009 = vmatpush1.msra.mxu0 0.0
    %4010 = vmatprep.subr.mxu0 0.0
    %4011 = vmatpush1.msra.mxu0 0.0
    %4012 = vmatprep.subr.mxu0 0.0
    %4013 = vmatpush1.msra.mxu0 0.0
    %4014 = vmatprep.subr.mxu0 0.0
    %4015 = vmatpush1.msra.mxu0 0.0
    %4016 = vmatprep.subr.mxu0 0.0
    %4017 = vmatpush1.msra.mxu0 0.0
    %4018 = vmatprep.subr.mxu0 0.0
    %4019 = vmatpush1.msra.mxu0 0.0
    %4020 = vmatprep.subr.mxu0 0.0
    %4021 = vmatpush1.msra.mxu0 0.0
    %4022 = vmatprep.subr.mxu0 0.0
    %4023 = vmatpush1.msra.mxu0 0.0
    %4024 = vmatprep.subr.mxu0 0.0
    %4025 = vmatpush1.msra.mxu0 0.0
    %4026 = vmatprep.subr.mxu0 0.0
    %4027 = vmatpush1.msra.mxu0 0.0
    %4028 = vmatprep.subr.mxu0 0.0
    %4029 = vmatpush1.msra.mxu0 0.0
    %4030 = vmatprep.subr.mxu0 0.0
    %4031 = vmatpush1.msra.mxu0 0.0
    %4032 = vmatprep.mubr.f32.mxu0 0.0
    %4033 = vmatmul.mubr.f32.gmra.mrb[0].mxu0 %v3966
    %v4034 = vpop.f32.mrb[0].mxu0
    %v4035 = vadd.f32 0.0, %v4034
    %v4036 = vpop.f32.mrb[0].mxu0
    %v4037 = vadd.f32 0.0, %v4036
    %4038 = vdwg.mxu0
    %4039 = vmatprep.subr.mxu0 %v2557
    %4040 = vmatpush1.msra.mxu0 %v2556
    %4041 = vmatprep.subr.mxu0 %v2561
    %4042 = vmatpush1.msra.mxu0 %v2560
    %4043 = vmatprep.subr.mxu0 %v2565
    %4044 = vmatpush1.msra.mxu0 %v2564
    %4045 = vmatprep.subr.mxu0 %v2569
    %4046 = vmatpush1.msra.mxu0 %v2568
    %4047 = vmatprep.subr.mxu0 %v2573
    %4048 = vmatpush1.msra.mxu0 %v2572
    %4049 = vmatprep.subr.mxu0 %v2577
    %4050 = vmatpush1.msra.mxu0 %v2576
    %4051 = vmatprep.subr.mxu0 %v2581
    %4052 = vmatpush1.msra.mxu0 %v2580
    %4053 = vmatprep.subr.mxu0 %v2585
    %4054 = vmatpush1.msra.mxu0 %v2584
    %4055 = vmatprep.subr.mxu0 %v2589
    %4056 = vmatpush1.msra.mxu0 %v2588
    %4057 = vmatprep.subr.mxu0 %v2593
    %4058 = vmatpush1.msra.mxu0 %v2592
    %4059 = vmatprep.subr.mxu0 %v2597
    %4060 = vmatpush1.msra.mxu0 %v2596
    %4061 = vmatprep.subr.mxu0 %v2601
    %4062 = vmatpush1.msra.mxu0 %v2600
    %4063 = vmatprep.subr.mxu0 %v2605
    %4064 = vmatpush1.msra.mxu0 %v2604
    %4065 = vmatprep.subr.mxu0 %v2609
    %4066 = vmatpush1.msra.mxu0 %v2608
    %4067 = vmatprep.subr.mxu0 %v2613
    %4068 = vmatpush1.msra.mxu0 %v2612
    %4069 = vmatprep.subr.mxu0 %v2617
    %4070 = vmatpush1.msra.mxu0 %v2616
    %4071 = vmatprep.subr.mxu0 0.0
    %4072 = vmatpush1.msra.mxu0 0.0
    %4073 = vmatprep.subr.mxu0 0.0
    %4074 = vmatpush1.msra.mxu0 0.0
    %4075 = vmatprep.subr.mxu0 0.0
    %4076 = vmatpush1.msra.mxu0 0.0
    %4077 = vmatprep.subr.mxu0 0.0
    %4078 = vmatpush1.msra.mxu0 0.0
    %4079 = vmatprep.subr.mxu0 0.0
    %4080 = vmatpush1.msra.mxu0 0.0
    %4081 = vmatprep.subr.mxu0 0.0
    %4082 = vmatpush1.msra.mxu0 0.0
    %4083 = vmatprep.subr.mxu0 0.0
    %4084 = vmatpush1.msra.mxu0 0.0
    %4085 = vmatprep.subr.mxu0 0.0
    %4086 = vmatpush1.msra.mxu0 0.0
    %4087 = vmatprep.subr.mxu0 0.0
    %4088 = vmatpush1.msra.mxu0 0.0
    %4089 = vmatprep.subr.mxu0 0.0
    %4090 = vmatpush1.msra.mxu0 0.0
    %4091 = vmatprep.subr.mxu0 0.0
    %4092 = vmatpush1.msra.mxu0 0.0
    %4093 = vmatprep.subr.mxu0 0.0
    %4094 = vmatpush1.msra.mxu0 0.0
    %4095 = vmatprep.subr.mxu0 0.0
    %4096 = vmatpush1.msra.mxu0 0.0
    %4097 = vmatprep.subr.mxu0 0.0
    %4098 = vmatpush1.msra.mxu0 0.0
    %4099 = vmatprep.subr.mxu0 0.0
    %4100 = vmatpush1.msra.mxu0 0.0
    %4101 = vmatprep.subr.mxu0 0.0
    %4102 = vmatpush1.msra.mxu0 0.0
    %4103 = vmatprep.mubr.f32.mxu0 0.0
    %4104 = vmatmul.mubr.f32.gmra.mrb[0].mxu0 %v3966
    %v4105 = vpop.f32.mrb[0].mxu0
    %v4106 = vadd.f32 0.0, %v4105
    %v4107 = vpop.f32.mrb[0].mxu0
    %v4108 = vadd.f32 0.0, %v4107
    %4109 = vdwg.mxu0
    %v4114 = vrot.slane %v4035, 1
    %v4115 = vrot.slane %v4037, 1
    %v4116 = vrot.slane %v4106, 1
    %v4117 = vrot.slane %v4108, 1
    %v4122 = vadd.f32 %v3209, %v4114
    %v4123 = vadd.f32 %v3210, %v4115
    %v4124 = vadd.f32 %v3211, %v4116
    %v4125 = vadd.f32 %v3212, %v4117
    %v4126 = vxor.u32 %v4122, 2147483648
    %v4127 = vxor.u32 %v4123, 2147483648
    %v4128 = vxor.u32 %v4124, 2147483648
    %v4129 = vmul.f32 %v4126, 1.442695
    %v4130 = vpow.pop %v4129
    %v4131 = vmul.f32 %v4127, 1.442695
    %v4132 = vpow.pop %v4131
    %v4133 = vmul.f32 %v4128, 1.442695
    %v4134 = vpow.pop %v4133
    %v4135 = vadd.f32 %v4130, 1.0
    %v4136 = vadd.f32 %v4132, 1.0
    %v4137 = vadd.f32 %v4134, 1.0
    %v4138 = vrcp.pop %v4135
    %v4139 = vmul.f32 1.0, %v4138
    %v4140 = vrcp.pop %v4136
    %v4141 = vmul.f32 1.0, %v4140
    %v4142 = vrcp.pop %v4137
    %v4143 = vmul.f32 1.0, %v4142
    %v4144 = vtanh.pop %v4125
    %v4146 = vrot.slane %v3962, 7
    %v4148 = vmul.f32 %v4141, %v4146
    %v4149 = vmul.f32 %v4139, %v4144
    %v4150 = vadd.f32 %v4148, %v4149
    %v4151 = vtanh.pop %v4150
    %v4152 = vmul.f32 %v4143, %v4151
    %vm4153 = vcmask 1040384
    %v4154 = vsel %vm4153, %v2803, %v3000
    %vm4155 = vcmask 1041408
    %v4156 = vsel %vm4155, %v4154, %v3200
    %vm4157 = vcmask 1042432
    %v4158 = vsel %vm4157, %v4156, %v3400
    %vm4159 = vcmask 1043456
    %v4160 = vsel %vm4159, %v4158, %v3588
    %vm4161 = vcmask 1044480
    %v4162 = vsel %vm4161, %v4160, %v3776
    %vm4163 = vcmask 1045504
    %v4164 = vsel %vm4163, %v4162, %v3964
    %vm4165 = vcmask 1046528
    %v4166 = vsel %vm4165, %v4164, %v4152
    %v4168 = vrot.slane %v4152, 7
    %v4170 = vrot.slane %v3964, 5
    %v4172 = vrot.slane %v3776, 3
    %v4174 = vrot.slane %v3588, 1
    %v4176 = vrot.slane %v3400, 7
    %v4178 = vrot.slane %v3200, 5
    %v4180 = vrot.slane %v3000, 3
    %v4183 = vrot.slane %v2803, 1
    %v4185 = vsel %vm4153, %v4168, %v4170
    %v4186 = vsel %vm4155, %v4185, %v4172
    %v4187 = vsel %vm4157, %v4186, %v4174
    %v4188 = vsel %vm4159, %v4187, %v4176
    %v4189 = vsel %vm4161, %v4188, %v4178
    %v4190 = vsel %vm4163, %v4189, %v4180
    %v4191 = vsel %vm4165, %v4190, %v4183
    %v4192 = vld [vmem:[#allocation12] sm:$0xff]
    %v4193 = vld [vmem:[#allocation12 + $0x8] sm:$0xff]
    %v4194 = vld [vmem:[#allocation12 + $0x10] sm:$0xff]
    %v4195 = vld [vmem:[#allocation12 + $0x18] sm:$0xff]
    %v4196 = vld [vmem:[#allocation12 + $0x20] sm:$0xff]
    %v4197 = vld [vmem:[#allocation12 + $0x28] sm:$0xff]
    %v4198 = vld [vmem:[#allocation12 + $0x30] sm:$0xff]
    %v4199 = vld [vmem:[#allocation12 + $0x38] sm:$0xff]
    %v4200 = vld [vmem:[#allocation12 + $0x40] sm:$0xff]
    %v4201 = vld [vmem:[#allocation12 + $0x48] sm:$0xff]
    %v4202 = vld [vmem:[#allocation12 + $0x50] sm:$0xff]
    %v4203 = vld [vmem:[#allocation12 + $0x58] sm:$0xff]
    %v4204 = vld [vmem:[#allocation12 + $0x60] sm:$0xff]
    %v4205 = vld [vmem:[#allocation12 + $0x68] sm:$0xff]
    %v4206 = vld [vmem:[#allocation12 + $0x70] sm:$0xff]
    %v4207 = vld [vmem:[#allocation12 + $0x78] sm:$0xff]
    %v4208 = vld [vmem:[#allocation14] sm:$0xff]
    %v4209 = vld [vmem:[#allocation14 + $0x8] sm:$0xff]
    %v4210 = vld [vmem:[#allocation14 + $0x10] sm:$0xff]
    %v4211 = vld [vmem:[#allocation14 + $0x18] sm:$0xff]
    %v4212 = vld [vmem:[#allocation14 + $0x20] sm:$0xff]
    %v4213 = vld [vmem:[#allocation14 + $0x28] sm:$0xff]
    %v4214 = vld [vmem:[#allocation14 + $0x30] sm:$0xff]
    %v4215 = vld [vmem:[#allocation14 + $0x38] sm:$0xff]
    %v4216 = vld [vmem:[#allocation14 + $0x40] sm:$0xff]
    %v4217 = vld [vmem:[#allocation14 + $0x48] sm:$0xff]
    %v4218 = vld [vmem:[#allocation14 + $0x50] sm:$0xff]
    %v4219 = vld [vmem:[#allocation14 + $0x58] sm:$0xff]
    %v4220 = vld [vmem:[#allocation14 + $0x60] sm:$0xff]
    %v4221 = vld [vmem:[#allocation14 + $0x68] sm:$0xff]
    %v4222 = vld [vmem:[#allocation14 + $0x70] sm:$0xff]
    %v4223 = vld [vmem:[#allocation14 + $0x78] sm:$0xff]
    %4224 = vmatprep.subr.mxu0 0.0
    %4225 = vmatpush1.msra.mxu0 %v4208
    %4226 = vmatprep.subr.mxu0 0.0
    %4227 = vmatpush1.msra.mxu0 %v4209
    %4228 = vmatprep.subr.mxu0 0.0
    %4229 = vmatpush1.msra.mxu0 %v4210
    %4230 = vmatprep.subr.mxu0 0.0
    %4231 = vmatpush1.msra.mxu0 %v4211
    %4232 = vmatprep.subr.mxu0 0.0
    %4233 = vmatpush1.msra.mxu0 %v4212
    %4234 = vmatprep.subr.mxu0 0.0
    %4235 = vmatpush1.msra.mxu0 %v4213
    %4236 = vmatprep.subr.mxu0 0.0
    %4237 = vmatpush1.msra.mxu0 %v4214
    %4238 = vmatprep.subr.mxu0 0.0
    %4239 = vmatpush1.msra.mxu0 %v4215
    %4240 = vmatprep.subr.mxu0 0.0
    %4241 = vmatpush1.msra.mxu0 %v4216
    %4242 = vmatprep.subr.mxu0 0.0
    %4243 = vmatpush1.msra.mxu0 %v4217
    %4244 = vmatprep.subr.mxu0 0.0
    %4245 = vmatpush1.msra.mxu0 %v4218
    %4246 = vmatprep.subr.mxu0 0.0
    %4247 = vmatpush1.msra.mxu0 %v4219
    %4248 = vmatprep.subr.mxu0 0.0
    %4249 = vmatpush1.msra.mxu0 %v4220
    %4250 = vmatprep.subr.mxu0 0.0
    %4251 = vmatpush1.msra.mxu0 %v4221
    %4252 = vmatprep.subr.mxu0 0.0
    %4253 = vmatpush1.msra.mxu0 %v4222
    %4254 = vmatprep.subr.mxu0 0.0
    %4255 = vmatpush1.msra.mxu0 %v4223
    %4256 = vmatprep.subr.mxu0 0.0
    %4257 = vmatpush1.msra.mxu0 0.0
    %4258 = vmatprep.subr.mxu0 0.0
    %4259 = vmatpush1.msra.mxu0 0.0
    %4260 = vmatprep.subr.mxu0 0.0
    %4261 = vmatpush1.msra.mxu0 0.0
    %4262 = vmatprep.subr.mxu0 0.0
    %4263 = vmatpush1.msra.mxu0 0.0
    %4264 = vmatprep.subr.mxu0 0.0
    %4265 = vmatpush1.msra.mxu0 0.0
    %4266 = vmatprep.subr.mxu0 0.0
    %4267 = vmatpush1.msra.mxu0 0.0
    %4268 = vmatprep.subr.mxu0 0.0
    %4269 = vmatpush1.msra.mxu0 0.0
    %4270 = vmatprep.subr.mxu0 0.0
    %4271 = vmatpush1.msra.mxu0 0.0
    %4272 = vmatprep.subr.mxu0 0.0
    %4273 = vmatpush1.msra.mxu0 0.0
    %4274 = vmatprep.subr.mxu0 0.0
    %4275 = vmatpush1.msra.mxu0 0.0
    %4276 = vmatprep.subr.mxu0 0.0
    %4277 = vmatpush1.msra.mxu0 0.0
    %4278 = vmatprep.subr.mxu0 0.0
    %4279 = vmatpush1.msra.mxu0 0.0
    %4280 = vmatprep.subr.mxu0 0.0
    %4281 = vmatpush1.msra.mxu0 0.0
    %4282 = vmatprep.subr.mxu0 0.0
    %4283 = vmatpush1.msra.mxu0 0.0
    %4284 = vmatprep.subr.mxu0 0.0
    %4285 = vmatpush1.msra.mxu0 0.0
    %4286 = vmatprep.subr.mxu0 0.0
    %4287 = vmatpush1.msra.mxu0 0.0
    %4288 = vmatprep.mubr.f32.mxu0 0.0
    %4289 = vmatmul.mubr.f32.gmra.mrb[0].mxu0 %v4191
    %v4290 = vpop.f32.mrb[0].mxu0
    %v4291 = vadd.f32 0.0, %v4290
    %v4292 = vpop.f32.mrb[0].mxu0
    %4293 = vdwg.mxu0
    %4294 = vmatprep.subr.mxu0 0.0
    %4295 = vmatpush1.msra.mxu0 %v4192
    %4296 = vmatprep.subr.mxu0 0.0
    %4297 = vmatpush1.msra.mxu0 %v4193
    %4298 = vmatprep.subr.mxu0 0.0
    %4299 = vmatpush1.msra.mxu0 %v4194
    %4300 = vmatprep.subr.mxu0 0.0
    %4301 = vmatpush1.msra.mxu0 %v4195
    %4302 = vmatprep.subr.mxu0 0.0
    %4303 = vmatpush1.msra.mxu0 %v4196
    %4304 = vmatprep.subr.mxu0 0.0
    %4305 = vmatpush1.msra.mxu0 %v4197
    %4306 = vmatprep.subr.mxu0 0.0
    %4307 = vmatpush1.msra.mxu0 %v4198
    %4308 = vmatprep.subr.mxu0 0.0
    %4309 = vmatpush1.msra.mxu0 %v4199
    %4310 = vmatprep.subr.mxu0 0.0
    %4311 = vmatpush1.msra.mxu0 %v4200
    %4312 = vmatprep.subr.mxu0 0.0
    %4313 = vmatpush1.msra.mxu0 %v4201
    %4314 = vmatprep.subr.mxu0 0.0
    %4315 = vmatpush1.msra.mxu0 %v4202
    %4316 = vmatprep.subr.mxu0 0.0
    %4317 = vmatpush1.msra.mxu0 %v4203
    %4318 = vmatprep.subr.mxu0 0.0
    %4319 = vmatpush1.msra.mxu0 %v4204
    %4320 = vmatprep.subr.mxu0 0.0
    %4321 = vmatpush1.msra.mxu0 %v4205
    %4322 = vmatprep.subr.mxu0 0.0
    %4323 = vmatpush1.msra.mxu0 %v4206
    %4324 = vmatprep.subr.mxu0 0.0
    %4325 = vmatpush1.msra.mxu0 %v4207
    %4326 = vmatprep.subr.mxu0 0.0
    %4327 = vmatpush1.msra.mxu0 0.0
    %4328 = vmatprep.subr.mxu0 0.0
    %4329 = vmatpush1.msra.mxu0 0.0
    %4330 = vmatprep.subr.mxu0 0.0
    %4331 = vmatpush1.msra.mxu0 0.0
    %4332 = vmatprep.subr.mxu0 0.0
    %4333 = vmatpush1.msra.mxu0 0.0
    %4334 = vmatprep.subr.mxu0 0.0
    %4335 = vmatpush1.msra.mxu0 0.0
    %4336 = vmatprep.subr.mxu0 0.0
    %4337 = vmatpush1.msra.mxu0 0.0
    %4338 = vmatprep.subr.mxu0 0.0
    %4339 = vmatpush1.msra.mxu0 0.0
    %4340 = vmatprep.subr.mxu0 0.0
    %4341 = vmatpush1.msra.mxu0 0.0
    %4342 = vmatprep.subr.mxu0 0.0
    %4343 = vmatpush1.msra.mxu0 0.0
    %4344 = vmatprep.subr.mxu0 0.0
    %4345 = vmatpush1.msra.mxu0 0.0
    %4346 = vmatprep.subr.mxu0 0.0
    %4347 = vmatpush1.msra.mxu0 0.0
    %4348 = vmatprep.subr.mxu0 0.0
    %4349 = vmatpush1.msra.mxu0 0.0
    %4350 = vmatprep.subr.mxu0 0.0
    %4351 = vmatpush1.msra.mxu0 0.0
    %4352 = vmatprep.subr.mxu0 0.0
    %4353 = vmatpush1.msra.mxu0 0.0
    %4354 = vmatprep.subr.mxu0 0.0
    %4355 = vmatpush1.msra.mxu0 0.0
    %4356 = vmatprep.subr.mxu0 0.0
    %4357 = vmatpush1.msra.mxu0 0.0
    %4358 = vmatprep.mubr.f32.mxu0 0.0
    %4359 = vmatmul.mubr.f32.gmra.mrb[0].mxu0 %v4166
    %v4360 = vpop.f32.mrb[0].mxu0
    %v4361 = vadd.f32 %v4291, %v4360
    %v4362 = vpop.f32.mrb[0].mxu0
    %4363 = vdwg.mxu0
    %v4364 = vld [vmem:[%s14] sm:$0x1]
    %v4366 = vlaneseq
    %v4367 = vshrl.u32 %v4366, 7
    %v4368 = vsub.s32 0, %v4367
    %v4369 = vrot.slane %v4364, %v4368
    %v4371 = vadd.f32 %v4361, %v4369
    %v4372 = vld [vmem:[#allocation15] sm:$0xff]
    %v4373 = vld [vmem:[#allocation15 + $0x8] sm:$0xff]
    %v4374 = vld [vmem:[#allocation15 + $0x10] sm:$0xff]
    %v4375 = vld [vmem:[#allocation15 + $0x18] sm:$0xff]
    %v4376 = vld [vmem:[#allocation15 + $0x20] sm:$0xff]
    %v4377 = vld [vmem:[#allocation15 + $0x28] sm:$0xff]
    %v4378 = vld [vmem:[#allocation15 + $0x30] sm:$0xff]
    %v4379 = vld [vmem:[#allocation15 + $0x38] sm:$0xff]
    %v4380 = vld [vmem:[#allocation15 + $0x40] sm:$0xff]
    %v4381 = vld [vmem:[#allocation15 + $0x48] sm:$0xff]
    %v4382 = vld [vmem:[#allocation15 + $0x50] sm:$0xff]
    %v4383 = vld [vmem:[#allocation15 + $0x58] sm:$0xff]
    %v4384 = vld [vmem:[#allocation15 + $0x60] sm:$0xff]
    %v4385 = vld [vmem:[#allocation15 + $0x68] sm:$0xff]
    %v4386 = vld [vmem:[#allocation15 + $0x70] sm:$0xff]
    %v4387 = vld [vmem:[#allocation15 + $0x78] sm:$0xff]
    %v4388 = vld [vmem:[%s16] sm:$0x1]
    %v4390 = vlaneseq
    %v4391 = vshrl.u32 %v4390, 7
    %v4392 = vsub.s32 0, %v4391
    %v4393 = vrot.slane %v4388, %v4392
    %4395 = vmatprep.subr.mxu0 0.0
    %4396 = vmatpush1.msra.mxu0 %v4372
    %4397 = vmatprep.subr.mxu0 0.0
    %4398 = vmatpush1.msra.mxu0 %v4373
    %4399 = vmatprep.subr.mxu0 0.0
    %4400 = vmatpush1.msra.mxu0 %v4374
    %4401 = vmatprep.subr.mxu0 0.0
    %4402 = vmatpush1.msra.mxu0 %v4375
    %4403 = vmatprep.subr.mxu0 0.0
    %4404 = vmatpush1.msra.mxu0 %v4376
    %4405 = vmatprep.subr.mxu0 0.0
    %4406 = vmatpush1.msra.mxu0 %v4377
    %4407 = vmatprep.subr.mxu0 0.0
    %4408 = vmatpush1.msra.mxu0 %v4378
    %4409 = vmatprep.subr.mxu0 0.0
    %4410 = vmatpush1.msra.mxu0 %v4379
    %4411 = vmatprep.subr.mxu0 0.0
    %4412 = vmatpush1.msra.mxu0 %v4380
    %4413 = vmatprep.subr.mxu0 0.0
    %4414 = vmatpush1.msra.mxu0 %v4381
    %4415 = vmatprep.subr.mxu0 0.0
    %4416 = vmatpush1.msra.mxu0 %v4382
    %4417 = vmatprep.subr.mxu0 0.0
    %4418 = vmatpush1.msra.mxu0 %v4383
    %4419 = vmatprep.subr.mxu0 0.0
    %4420 = vmatpush1.msra.mxu0 %v4384
    %4421 = vmatprep.subr.mxu0 0.0
    %4422 = vmatpush1.msra.mxu0 %v4385
    %4423 = vmatprep.subr.mxu0 0.0
    %4424 = vmatpush1.msra.mxu0 %v4386
    %4425 = vmatprep.subr.mxu0 0.0
    %4426 = vmatpush1.msra.mxu0 %v4387
    %4427 = vmatprep.subr.mxu0 0.0
    %4428 = vmatpush1.msra.mxu0 0.0
    %4429 = vmatprep.subr.mxu0 0.0
    %4430 = vmatpush1.msra.mxu0 0.0
    %4431 = vmatprep.subr.mxu0 0.0
    %4432 = vmatpush1.msra.mxu0 0.0
    %4433 = vmatprep.subr.mxu0 0.0
    %4434 = vmatpush1.msra.mxu0 0.0
    %4435 = vmatprep.subr.mxu0 0.0
    %4436 = vmatpush1.msra.mxu0 0.0
    %4437 = vmatprep.subr.mxu0 0.0
    %4438 = vmatpush1.msra.mxu0 0.0
    %4439 = vmatprep.subr.mxu0 0.0
    %4440 = vmatpush1.msra.mxu0 0.0
    %4441 = vmatprep.subr.mxu0 0.0
    %4442 = vmatpush1.msra.mxu0 0.0
    %4443 = vmatprep.subr.mxu0 0.0
    %4444 = vmatpush1.msra.mxu0 0.0
    %4445 = vmatprep.subr.mxu0 0.0
    %4446 = vmatpush1.msra.mxu0 0.0
    %4447 = vmatprep.subr.mxu0 0.0
    %4448 = vmatpush1.msra.mxu0 0.0
    %4449 = vmatprep.subr.mxu0 0.0
    %4450 = vmatpush1.msra.mxu0 0.0
    %4451 = vmatprep.subr.mxu0 0.0
    %4452 = vmatpush1.msra.mxu0 0.0
    %4453 = vmatprep.subr.mxu0 0.0
    %4454 = vmatpush1.msra.mxu0 0.0
    %4455 = vmatprep.subr.mxu0 0.0
    %4456 = vmatpush1.msra.mxu0 0.0
    %4457 = vmatprep.subr.mxu0 0.0
    %4458 = vmatpush1.msra.mxu0 0.0
    %4459 = vmatprep.mubr.f32.mxu0 0.0
    %4460 = vmatmul.mubr.f32.gmra.mrb[0].mxu0 %v4371
    %v4461 = vpop.f32.mrb[0].mxu0
    %v4462 = vadd.f32 %v4393, %v4461
    %v4463 = vpop.f32.mrb[0].mxu0
    %4464 = vdwg.mxu0
    %4465 = vst [vmem:[#allocation17] sm:$0xff] %v4462
    // Predicated region
    $region102: #{tpu_custom_call.1} parent=1 // pred_check
      _
    $region103: #{tpu_custom_call.1} parent=1 // pred_check_branch
      %4467 = sbr.rel (0) target = $region105
    $region104: #{tpu_custom_call.1} parent=1 // pred_region
      %s4469 = ssub.s32 128, 128
      %4470 = vsyncadd [#allocation5], %s4469
      %s4472 = sshll.u32 [#allocation17], 4
      %s4473 = int_to_ptr.vmem [resolvable:$true] %s4472
      %4475 = dma.vmem_to_hbm [thread:$0]  %s4473, 128, %s17, [#allocation5]
    $region105: #{tpu_custom_call.1} parent=1 // pred_fallthru
      _
    // Predicated region
    $region106: #{tpu_custom_call.1} parent=1 // pred_check
      _
    $region107: #{tpu_custom_call.1} parent=1 // pred_check_branch
      %4477 = sbr.rel (0) target = $region109
    $region108: #{tpu_custom_call.1} parent=1 // pred_region
      %4478 = dma.done [#allocation5], 128
    $region109: #{tpu_custom_call.1} parent=1 // pred_fallthru
      _
    %4479 = vsyncpa [#allocation4], 1
    %4480 = vsyncpa [#allocation7], 1
    %4481 = vsyncpa [#allocation10], 1
    %4482 = vsyncpa [#allocation13], 1
    %4483 = vsyncpa [#allocation16], 1
    %4484 = vsyncpa [#allocation5], 1

</llo_original>
